<compile_context>
chip_gen: v7x
topology: tpu7x:2x2x1
jax: 0.10.0
libtpu: 0.0.40
codegen_flags: <defaults>
</compile_context>

<pallas_src>
import functools
import math

import jax
import jax.numpy as jnp
import numpy as np
from jax import lax
from jax.experimental import pallas as pl
from jax.experimental.pallas import tpu as pltpu

# ----------------------------- module constants -----------------------------
FRAME_LEN = 512
FRAME_HOP = 256
N_FFT = 512                        # round_pow_of_two(512)
NUM_BINS = N_FFT // 2 + 1          # 257
F_PAD = 384                        # 257 padded up to 3*128 (lane-dense)
NUM_SPKS = 2
NUM_MICS = 7                       # princeton geometry
EPSILON = float(jnp.finfo(jnp.float32).eps)
EPS2 = EPSILON * EPSILON           # guard for fused rsqrt denominators

# ipd_index = '1,4;2,5;3,6'  -> contiguous slices [1:4] - [4:7]
# ang_index = '1,0;...;6,0'  -> [1:7] - [0:1]
AF_IDX_L = [1, 2, 3, 4, 5, 6]
AF_IDX_R = [0, 0, 0, 0, 0, 0]

VMEM_LIMIT = 32 * 1024 * 1024      # explicit scoped-VMEM budget (perf review)

# TODO(synk): set STFT_DTYPE = jnp.bfloat16 on v5e/v6e/v7x for ~1.5-2x on the
# STFT stage (full MXU rate, half HBM traffic); kept f32 here because the
# returned per-bin phase (atan2) is sensitive to bf16 rounding at low-magnitude
# bins (see the perf review's own correctness note).
STFT_DTYPE = jnp.float32


# ------------------------- STFT weights (init_kernel) ------------------------
def make_stft_weights():
    """Fused real|imag DFT filter bank (sqrt-hann window, normalized),
    transposed so `frames @ K` reproduces F.conv1d(x, K, stride=hop), with the
    bin axis zero-padded to F_PAD.  Shape: (FRAME_LEN, 2*F_PAD)."""
    n = jnp.arange(FRAME_LEN, dtype=jnp.float32)
    # torch.hann_window is periodic: 0.5*(1 - cos(2*pi*n/L)); sqrt -> sqrt_hann
    w = jnp.sqrt(0.5 - 0.5 * jnp.cos(2.0 * jnp.pi * n / FRAME_LEN))
    s = 0.5 * (N_FFT * N_FFT / FRAME_HOP) ** 0.5
    f = jnp.arange(NUM_BINS, dtype=jnp.float32)
    ang = 2.0 * jnp.pi * f[:, None] * n[None, :] / N_FFT
    k_real = (jnp.cos(ang) / s) * w[None, :]        # (F, L)
    k_imag = (-jnp.sin(ang) / s) * w[None, :]       # (F, L)  (rfft imag sign)
    pad = ((0, F_PAD - NUM_BINS), (0, 0))
    k_real = jnp.pad(k_real, pad)
    k_imag = jnp.pad(k_imag, pad)
    return jnp.concatenate([k_real.T, k_imag.T], axis=1)    # (L, 2*F_PAD)


# ------------------------------ Pallas kernels ------------------------------
def stft_kernel(frames_ref, k_ref, ri_ref):
    """(tm, 512) frames @ (512, 768) fused real|imag DFT bank -> one fused
    output ref (single output DMA stream, no in-kernel split copy)."""
    ri_ref[...] = jnp.dot(frames_ref[...], k_ref[...],
                          preferred_element_type=jnp.float32)


def stats_kernel(ri_ref, sf_ref, sf2_ref, syr_ref, syi_ref, *, nt, tt):
    """Pass 1: per-(batch, time-tile) partial sums for the cross-time
    reductions (log-mag MVN mean/var, IPD mean phasor)."""
    ri = ri_ref[0]                            # (C, Tt, 2*Fp)
    r = ri[:, :, :F_PAD]
    i = ri[:, :, F_PAD:]
    r0, i0 = r[0], i[0]

    mag0 = jnp.sqrt(r0 * r0 + i0 * i0)
    f = jnp.log(jnp.maximum(mag0, EPSILON))
    # padded time rows would contribute log(eps); mask them out of the sums
    t0 = pl.program_id(1) * tt
    valid = (lax.broadcasted_iota(jnp.int32, (tt, F_PAD), 0) + t0) < nt
    fm = jnp.where(valid, f, 0.0)
    sf_ref[...] = jnp.sum(fm, axis=0)[None, None, None, :]
    sf2_ref[...] = jnp.sum(fm * fm, axis=0)[None, None, None, :]

    # IPD phasors via complex identities (padded rows are exactly zero)
    rl, il = r[1:4], i[1:4]
    rr, ir = r[4:7], i[4:7]
    inv_m = lax.rsqrt((rl * rl + il * il) * (rr * rr + ir * ir) + EPS2)
    yr = (rl * rr + il * ir) * inv_m          # cos(pha_l - pha_r)
    yi = (il * rr - rl * ir) * inv_m          # sin(pha_l - pha_r)
    syr_ref[...] = jnp.sum(yr, axis=1)[None, None, :, :]
    syi_ref[...] = jnp.sum(yi, axis=1)[None, None, :, :]


def feature_kernel(ri_ref, meanf_ref, invstd_ref, yrm_ref, yim_ref, invh_ref,
                   cd_ref, sd_ref, mag_ref, f_ref, ipd_ref, ang_ref):
    """Pass 2: fused spectral + spatial features for one (batch, time tile).

    Trig-free identities:
        cos(pa - pb) = (ra*rb + ia*ib) / (|za||zb|)
        sin(pa - pb) = (ia*rb - ra*ib) / (|za||zb|)
        cos(x - d)   = cos(x)*cos(d) + sin(x)*sin(d)
    """
    ri = ri_ref[0]                            # (C, Tt, 2*Fp)
    r = ri[:, :, :F_PAD]
    i = ri[:, :, F_PAD:]
    r0, i0 = r[0], i[0]
    p0 = r0 * r0 + i0 * i0
    mag0 = jnp.sqrt(p0)
    mag_ref[0] = mag0

    # log-mag MVN with pre-reduced mean / inv-std (exact, torch semantics)
    f = jnp.log(jnp.maximum(mag0, EPSILON))
    f_ref[0] = (f - meanf_ref[0, 0][None, :]) * invstd_ref[0, 0][None, :]

    # ---- IPD (pairs (1,4),(2,5),(3,6)), mean-normalize v2, cos output ----
    rl, il = r[1:4], i[1:4]
    rr, ir = r[4:7], i[4:7]
    inv_m = lax.rsqrt((rl * rl + il * il) * (rr * rr + ir * ir) + EPS2)
    yr = (rl * rr + il * ir) * inv_m
    yi = (il * rr - rl * ir) * inv_m
    yrm = yrm_ref[0][:, None, :]
    yim = yim_ref[0][:, None, :]
    # cos(pd - atan2(yim, yrm)) == (yr*yrm + yi*yim) / |(yrm, yim)|
    ipd_ref[0] = (yr * yrm + yi * yim) * invh_ref[0][:, None, :]

    # ---- Angle features: cos(pha_l - pha_0 - dif_s), mean over 6 pairs ----
    # Pair-accumulation loop: live intermediates stay (Tt, Fp), no (6,Tt,Fp).
    cd = cd_ref[0]                            # (S, 6, Fp) cos(dif)
    sd = sd_ref[0]                            # (S, 6, Fp) sin(dif)
    tt = r.shape[1]
    acc = [jnp.zeros((tt, F_PAD), jnp.float32) for _ in range(NUM_SPKS)]
    for p_idx in range(6):
        c = p_idx + 1
        rc, ic = r[c], i[c]
        inv_d = lax.rsqrt((rc * rc + ic * ic) * p0 + EPS2)
        num_c = rc * r0 + ic * i0             # |zl||z0| cos(pha_l - pha_0)
        num_s = ic * r0 - rc * i0             # |zl||z0| sin(pha_l - pha_0)
        for s in range(NUM_SPKS):
            acc[s] = acc[s] + (num_c * cd[s, p_idx][None, :]
                               + num_s * sd[s, p_idx][None, :]) * inv_d
    for s in range(NUM_SPKS):
        ang_ref[0, s] = acc[s] * (1.0 / 6.0)


# --------------------------------- glue -------------------------------------
def _phase_delay_cos_sin(doa):
    """cos/sin of AngleFeature._oracle_phase_delay differences (princeton
    7-mic geometry), zero-padded to F_PAD.  doa: (N,) -> two (N, 6, F_PAD)."""
    R, velocity, sr = 0.0425, 340.0, 16000.0
    zero = jnp.zeros_like(doa)
    tau = R * jnp.stack(
        [zero,
         -jnp.cos(doa), -jnp.cos(jnp.pi / 3 - doa), -jnp.cos(2 * jnp.pi / 3 - doa),
         jnp.cos(doa), jnp.cos(jnp.pi / 3 - doa), jnp.cos(2 * jnp.pi / 3 - doa)],
        axis=-1) / velocity                                         # (N, 7)
    omega = jnp.pi * sr * jnp.arange(NUM_BINS, dtype=jnp.float32) / (NUM_BINS - 1)
    phi = tau[:, :, None] * (-omega)[None, None, :]                 # (N, 7, F)
    dif = phi[:, AF_IDX_L] - phi[:, AF_IDX_R]                       # (N, 6, F)
    dif = jnp.pad(dif, ((0, 0), (0, 0), (0, F_PAD - NUM_BINS)))
    return jnp.cos(dif), jnp.sin(dif)


def _round_up(x, m):
    return -(-x // m) * m


def feature_extractor_forward(mix, doa, mask, k_fused):
    """
    mix : (N, C, S) multi-channel waveform
    doa : list of NUM_SPKS arrays, each (N,)
    mask: (N, NUM_SPKS, T) per-speaker TF masks (T == number of STFT frames)
    returns (mag[:,0], pha[:,0], feature) like FeatureExtractor.forward
    """
    nb, nc, ns = mix.shape
    nt = (ns - FRAME_LEN) // FRAME_HOP + 1
    assert FRAME_LEN == 2 * FRAME_HOP   # framing-by-chunks relies on this

    # time tiling (bounds VMEM per step at production sequence lengths)
    tt = min(128, _round_up(nt, 8))
    t_pad = _round_up(nt, tt)
    n_tt = t_pad // tt

    # -- framing without gather: concat adjacent hop-sized chunks (layout only)
    # TODO(synk): on v5e, replace the materialized frames array with manual DMA
    # of two hop-offset windows per tile (memory_space=pl.ANY) to cut HBM traffic.
    x = mix.reshape(nb * nc, ns)[:, :FRAME_HOP * (nt + 1)]
    chunks = x.reshape(nb * nc, nt + 1, FRAME_HOP)
    frames = jnp.concatenate([chunks[:, :-1], chunks[:, 1:]], axis=-1)
    if t_pad != nt:
        frames = jnp.pad(frames, ((0, 0), (0, t_pad - nt), (0, 0)))
    frames = frames.reshape(nb * nc * t_pad, FRAME_LEN).astype(STFT_DTYPE)

    # -- STFT: one fused MXU matmul per tile, single lane-dense output ref --
    rows = nb * nc * t_pad
    tm = 8
    for cand in (512, 256, 128, 64, 32, 16, 8):   # biggest divisor, no row pad
        if rows % cand == 0:
            tm = cand
            break

    ri_flat = pl.pallas_call(
        stft_kernel,
        out_shape=jax.ShapeDtypeStruct((rows, 2 * F_PAD), jnp.float32),
        grid=(rows // tm,),
        in_specs=[
            pl.BlockSpec((tm, FRAME_LEN), lambda m: (m, 0)),
            # TODO(synk): pipeline_mode=pl.Buffered(1) would single-buffer the
            # resident DFT bank and save ~1.5 MiB of VMEM headroom.
            pl.BlockSpec((FRAME_LEN, 2 * F_PAD), lambda m: (0, 0)),
        ],
        out_specs=pl.BlockSpec((tm, 2 * F_PAD), lambda m: (m, 0)),
        compiler_params=pltpu.CompilerParams(
            dimension_semantics=("parallel",),
            vmem_limit_bytes=VMEM_LIMIT),
    )(frames, k_fused.astype(STFT_DTYPE))
    ri4 = ri_flat.reshape(nb, nc, t_pad, 2 * F_PAD)     # (N, C, Tp, 2*Fp), free

    # -- pass 1: per-tile partial sums for the cross-time reductions --
    sf, sf2, syr, syi = pl.pallas_call(
        functools.partial(stats_kernel, nt=nt, tt=tt),
        out_shape=(
            jax.ShapeDtypeStruct((nb, n_tt, 1, F_PAD), jnp.float32),
            jax.ShapeDtypeStruct((nb, n_tt, 1, F_PAD), jnp.float32),
            jax.ShapeDtypeStruct((nb, n_tt, 3, F_PAD), jnp.float32),
            jax.ShapeDtypeStruct((nb, n_tt, 3, F_PAD), jnp.float32),
        ),
        grid=(nb, n_tt),
        in_specs=[pl.BlockSpec((1, nc, tt, 2 * F_PAD), lambda n, t: (n, 0, t, 0))],
        out_specs=(
            pl.BlockSpec((1, 1, 1, F_PAD), lambda n, t: (n, t, 0, 0)),
            pl.BlockSpec((1, 1, 1, F_PAD), lambda n, t: (n, t, 0, 0)),
            pl.BlockSpec((1, 1, 3, F_PAD), lambda n, t: (n, t, 0, 0)),
            pl.BlockSpec((1, 1, 3, F_PAD), lambda n, t: (n, t, 0, 0)),
        ),
        compiler_params=pltpu.CompilerParams(
            dimension_semantics=("parallel", "parallel"),
            vmem_limit_bytes=VMEM_LIMIT),
    )(ri4)

    # tiny finalize in XLA glue (exact reciprocals; matches torch semantics)
    mean_f = jnp.sum(sf, axis=1) / nt                                 # (N,1,Fp)
    var_f = (jnp.sum(sf2, axis=1) - nt * mean_f * mean_f) / max(nt - 1, 1)
    inv_std = 1.0 / (jnp.sqrt(jnp.maximum(var_f, 0.0)) + EPSILON)
    yrm = jnp.sum(syr, axis=1) / nt                                   # (N,3,Fp)
    yim = jnp.sum(syi, axis=1) / nt
    inv_h = 1.0 / (jnp.sqrt(yrm * yrm + yim * yim) + EPSILON)

    # -- per-speaker oracle phase-delay cos/sin (tiny trig, glue) --
    cs = [_phase_delay_cos_sin(d) for d in doa]
    cd = jnp.stack([c for c, _ in cs], axis=1)                        # (N,S,6,Fp)
    sd = jnp.stack([s for _, s in cs], axis=1)

    # -- pass 2: fused spectral + spatial feature kernel, T-tiled --
    mag_k, f_k, ipd_k, ang_k = pl.pallas_call(
        feature_kernel,
        out_shape=(
            jax.ShapeDtypeStruct((nb, t_pad, F_PAD), jnp.float32),
            jax.ShapeDtypeStruct((nb, t_pad, F_PAD), jnp.float32),
            jax.ShapeDtypeStruct((nb, 3, t_pad, F_PAD), jnp.float32),
            jax.ShapeDtypeStruct((nb, NUM_SPKS, t_pad, F_PAD), jnp.float32),
        ),
        grid=(nb, n_tt),
        in_specs=[
            pl.BlockSpec((1, nc, tt, 2 * F_PAD), lambda n, t: (n, 0, t, 0)),
            pl.BlockSpec((1, 1, F_PAD), lambda n, t: (n, 0, 0)),
            pl.BlockSpec((1, 1, F_PAD), lambda n, t: (n, 0, 0)),
            pl.BlockSpec((1, 3, F_PAD), lambda n, t: (n, 0, 0)),
            pl.BlockSpec((1, 3, F_PAD), lambda n, t: (n, 0, 0)),
            pl.BlockSpec((1, 3, F_PAD), lambda n, t: (n, 0, 0)),
            pl.BlockSpec((1, NUM_SPKS, 6, F_PAD), lambda n, t: (n, 0, 0, 0)),
            pl.BlockSpec((1, NUM_SPKS, 6, F_PAD), lambda n, t: (n, 0, 0, 0)),
        ],
        out_specs=(
            pl.BlockSpec((1, tt, F_PAD), lambda n, t: (n, t, 0)),
            pl.BlockSpec((1, tt, F_PAD), lambda n, t: (n, t, 0)),
            pl.BlockSpec((1, 3, tt, F_PAD), lambda n, t: (n, 0, t, 0)),
            pl.BlockSpec((1, NUM_SPKS, tt, F_PAD), lambda n, t: (n, 0, t, 0)),
        ),
        compiler_params=pltpu.CompilerParams(
            dimension_semantics=("parallel", "parallel"),
            vmem_limit_bytes=VMEM_LIMIT),
    )(ri4, mean_f, inv_std, yrm, yim, inv_h, cd, sd)

    # -- channel-0 phase only (atan2 has no guaranteed Mosaic lowering) --
    r0 = ri4[:, 0, :nt, :NUM_BINS]
    i0 = ri4[:, 0, :nt, F_PAD:F_PAD + NUM_BINS]
    pha0 = jnp.arctan2(i0, r0).transpose(0, 2, 1)                     # (N,F,T)
    mag0 = mag_k[:, :nt, :NUM_BINS].transpose(0, 2, 1)                # (N,F,T)

    # -- final assembly (small slices/transposes + concat, pure glue) --
    f_t = f_k[:, :nt, :NUM_BINS].transpose(0, 2, 1)                   # (N,F,T)
    ipd_t = ipd_k[:, :, :nt, :NUM_BINS].transpose(0, 1, 3, 2)         # (N,3,F,T)
    ang_t = ang_k[:, :, :nt, :NUM_BINS].transpose(0, 1, 3, 2)         # (N,S,F,T)

    mask_rep = jnp.broadcast_to(mask[:, :, None, :], (nb, NUM_SPKS, NUM_BINS, nt))
    mag_mask = jnp.concatenate([f_t[:, None], mask_rep], axis=1).reshape(nb, -1, nt)
    spatial = jnp.concatenate(
        [ipd_t.reshape(nb, -1, nt), ang_t.reshape(nb, -1, nt)], axis=1)
    feature = jnp.concatenate([mag_mask, spatial], axis=1)
    return mag0, pha0, feature


# --------------------------- pure-JAX reference ------------------------------
def reference_forward(mix, doa, mask, k_fused):
    """Direct transcription of FeatureExtractor.forward (phase-based trig).
    Also returns per-channel magnitudes and the IPD mean-phasor norm so the
    test can skip entries whose value is numerically ill-defined."""
    nb, nc, ns = mix.shape
    nt = (ns - FRAME_LEN) // FRAME_HOP + 1
    idx = jnp.arange(nt)[:, None] * FRAME_HOP + jnp.arange(FRAME_LEN)[None, :]
    frames = mix.reshape(nb * nc, ns)[:, idx]                      # (NC, T, L)
    c = jnp.einsum('btl,lk->btk', frames, k_fused,
                   precision=lax.Precision.HIGHEST)
    c = c.reshape(nb, nc, nt, 2 * F_PAD)
    r = c[..., :NUM_BINS].transpose(0, 1, 3, 2)                    # (N, C, F, T)
    i = c[..., F_PAD:F_PAD + NUM_BINS].transpose(0, 1, 3, 2)
    mag = jnp.sqrt(r * r + i * i)
    pha = jnp.arctan2(i, r)
    f = jnp.log(jnp.maximum(mag[:, 0], EPSILON))
    mean = f.mean(-1, keepdims=True)
    std = jnp.sqrt(jnp.sum((f - mean) ** 2, -1, keepdims=True) / max(nt - 1, 1))
    f = (f - mean) / (std + EPSILON)
    pd = pha[:, 1:4] - pha[:, 4:7]
    yr, yi = jnp.cos(pd), jnp.sin(pd)
    yrm = yr.mean(-1, keepdims=True)
    yim = yi.mean(-1, keepdims=True)
    pdm = jnp.arctan2(yim, yrm)
    ipd = jnp.cos(pd - pdm)
    omega = jnp.pi * 16000.0 * jnp.arange(NUM_BINS, dtype=jnp.float32) / (NUM_BINS - 1)
    ipd_ang = pha[:, 1:7] - pha[:, 0:1]
    angs = []
    for d in doa:
        zero = jnp.zeros_like(d)
        tau = 0.0425 * jnp.stack(
            [zero, -jnp.cos(d), -jnp.cos(jnp.pi / 3 - d), -jnp.cos(2 * jnp.pi / 3 - d),
             jnp.cos(d), jnp.cos(jnp.pi / 3 - d), jnp.cos(2 * jnp.pi / 3 - d)],
            axis=-1) / 340.0
        phi = tau[:, :, None] * (-omega)[None, None, :]
        dif = phi[:, AF_IDX_L] - phi[:, AF_IDX_R]
        angs.append(jnp.mean(jnp.cos(ipd_ang - dif[..., None]), axis=1))
    ang = jnp.stack(angs, axis=1)
    mask_rep = jnp.broadcast_to(mask[:, :, None, :], (nb, NUM_SPKS, NUM_BINS, nt))
    mag_mask = jnp.concatenate([f[:, None], mask_rep], axis=1).reshape(nb, -1, nt)
    spatial = jnp.concatenate(
        [ipd.reshape(nb, -1, nt), ang.reshape(nb, -1, nt)], axis=1)
    feature = jnp.concatenate([mag_mask, spatial], axis=1)
    ipd_norm = jnp.sqrt(yrm * yrm + yim * yim)[..., 0]             # (N, 3, F)
    return mag[:, 0], pha[:, 0], feature, mag, ipd_norm


# ---------------------------------- main -------------------------------------
if __name__ == "__main__":
    key = jax.random.PRNGKey(0)
    k1, k2, k3, k4 = jax.random.split(key, 4)

    NB, C = 2, NUM_MICS                # 7-mic princeton array
    T_FRAMES = 8
    S = FRAME_HOP * (T_FRAMES + 1)     # -> exactly T_FRAMES STFT frames

    mix = jax.random.normal(k1, (NB, C, S), dtype=jnp.float32)
    doa = [
        jax.random.uniform(k2, (NB,), dtype=jnp.float32, minval=0.0, maxval=2 * math.pi),
        jax.random.uniform(k3, (NB,), dtype=jnp.float32, minval=0.0, maxval=2 * math.pi),
    ]
    mask = jax.random.uniform(k4, (NB, NUM_SPKS, T_FRAMES), dtype=jnp.float32)

    k_fused = make_stft_weights()

    fwd = jax.jit(feature_extractor_forward)
    mag0, pha0, feature = fwd(mix, doa, mask, k_fused)
    jax.block_until_ready((mag0, pha0, feature))

    expected_dim = (1 + NUM_SPKS) * NUM_BINS + 3 * NUM_BINS + NUM_SPKS * NUM_BINS
    assert mag0.shape == (NB, NUM_BINS, T_FRAMES)
    assert pha0.shape == (NB, NUM_BINS, T_FRAMES)
    assert feature.shape == (NB, expected_dim, T_FRAMES)
    assert bool(jnp.all(jnp.isfinite(mag0)))
    assert bool(jnp.all(jnp.isfinite(pha0)))
    assert bool(jnp.all(jnp.isfinite(feature)))

    # Reference check.  Phase-derived features are compared everywhere the
    # reference itself is well-conditioned; entries that are mathematically
    # ill-defined (|mean IPD phasor| ~ 0, e.g. at the DC bin where the STFT
    # imaginary part is exactly zero, or near-zero STFT magnitudes) are
    # excluded, since there any fp-rounding difference flips the value by O(1)
    # (the PyTorch module is equally ill-defined at those points).
    mag_r, pha_r, feat_r, mag_all_r, ipd_norm_r = jax.jit(reference_forward)(
        mix, doa, mask, k_fused)

    mag_p = np.asarray(mag0)
    pha_p = np.asarray(pha0)
    feat_p = np.asarray(feature)
    mag_rn = np.asarray(mag_r)
    pha_rn = np.asarray(pha_r)
    feat_rn = np.asarray(feat_r)
    mag_all = np.asarray(mag_all_r)        # (N, C, F, T)
    ipd_norm = np.asarray(ipd_norm_r)      # (N, 3, F)

    TOL = 5e-2
    np.testing.assert_allclose(mag_p, mag_rn, atol=TOL, rtol=0)

    # phase compared via cos/sin (avoids +/-pi wraparound), only where defined
    pha_ok = mag_all[:, 0] > 1e-3
    assert np.all((np.abs(np.cos(pha_p) - np.cos(pha_rn)) <= TOL) | ~pha_ok)
    assert np.all((np.abs(np.sin(pha_p) - np.sin(pha_rn)) <= TOL) | ~pha_ok)

    d0 = NUM_BINS                           # end of log-mag rows
    d1 = (1 + NUM_SPKS) * NUM_BINS          # start of IPD rows
    d2 = d1 + 3 * NUM_BINS                  # start of angle rows
    d3 = d2 + NUM_SPKS * NUM_BINS
    allowed = np.zeros(feat_rn.shape, dtype=bool)
    allowed[:, :d0, :] = mag_all[:, 0] < 1e-4
    pair_mag = np.minimum(mag_all[:, 1:4], mag_all[:, 4:7])          # (N,3,F,T)
    ipd_allowed = (ipd_norm[..., None] < 1e-2) | (pair_mag < 1e-3)
    allowed[:, d1:d2, :] = ipd_allowed.reshape(NB, 3 * NUM_BINS, T_FRAMES)
    ang_allowed = np.broadcast_to(
        (mag_all.min(axis=1) < 1e-3)[:, None],
        (NB, NUM_SPKS, NUM_BINS, T_FRAMES))
    allowed[:, d2:d3, :] = ang_allowed.reshape(NB, NUM_SPKS * NUM_BINS, T_FRAMES)

    frac_allowed = float(allowed.mean())
    assert frac_allowed < 0.02, f"too many ill-conditioned entries masked: {frac_allowed}"
    bad = (np.abs(feat_p - feat_rn) > TOL) & ~allowed
    assert not bad.any(), (int(bad.sum()), np.argwhere(bad)[:5].tolist())

    print("KERNEL_OK")
</pallas_src>

<mosaic_0001>
module attributes {stable_mosaic.version = 11 : i64} {
  func.func @stft_kernel(%arg0: i32, %arg1: memref<16x512xf32, #tpu.memory_space<vmem>>, %arg2: memref<512x768xf32, #tpu.memory_space<vmem>>, %arg3: memref<16x768xf32, #tpu.memory_space<vmem>>) attributes {dimension_semantics = [#tpu.dimension_semantics<parallel>], iteration_bounds = array<i64: 7>, scalar_prefetch = 0 : i64, scratch_operands = 0 : i64, tpu.core_type = #tpu.core_type<tc>, window_params = [{transform_indices = @transform_0, window_bounds = array<i64: 16, 512>}, {pipeline_mode = #tpu.pipeline_mode<synchronous>, transform_indices = @transform_1, window_bounds = array<i64: 512, 768>}, {transform_indices = @transform_2, window_bounds = array<i64: 16, 768>}]} {
    %c0 = arith.constant 0 : index
    %c0_0 = arith.constant 0 : index
    %0 = vector.load %arg1[%c0, %c0_0] : memref<16x512xf32, #tpu.memory_space<vmem>>, vector<16x512xf32>
    %c0_1 = arith.constant 0 : index
    %c0_2 = arith.constant 0 : index
    %1 = vector.load %arg2[%c0_1, %c0_2] : memref<512x768xf32, #tpu.memory_space<vmem>>, vector<512x768xf32>
    %cst = arith.constant dense<0.000000e+00> : vector<16x768xf32>
    %2 = tpu.matmul %0, %1, %cst {dimension_numbers = #tpu.dot_dimension_numbers<[1], [0], [0], [1], [0, 0, 1, 1], [], []>} : vector<16x512xf32>, vector<512x768xf32>, vector<16x768xf32> -> vector<16x768xf32>
    %c0_3 = arith.constant 0 : index
    %c0_4 = arith.constant 0 : index
    %3 = vector.load %arg3[%c0_3, %c0_4] : memref<16x768xf32, #tpu.memory_space<vmem>>, vector<16x768xf32>
    tpu.vector_store %arg3[%c0_3, %c0_4], %2 {strides = array<i32>} : memref<16x768xf32, #tpu.memory_space<vmem>>, vector<16x768xf32>,
    return
  }
  func.func @transform_0(%arg0: i32) -> (i32, i32) {
    %c0_i32 = arith.constant 0 : i32
    %c0_i32_0 = arith.constant 0 : i32
    return %arg0, %c0_i32 : i32, i32
  }
  func.func @transform_1(%arg0: i32) -> (i32, i32) {
    %c0_i32 = arith.constant 0 : i32
    %c0_i32_0 = arith.constant 0 : i32
    %c0_i32_1 = arith.constant 0 : i32
    return %c0_i32, %c0_i32_0 : i32, i32
  }
  func.func @transform_2(%arg0: i32) -> (i32, i32) {
    %c0_i32 = arith.constant 0 : i32
    %c0_i32_0 = arith.constant 0 : i32
    return %arg0, %c0_i32 : i32, i32
  }
}

module attributes {stable_mosaic.version = 11 : i64} {
  func.func @stats_kernel(%arg0: i32, %arg1: i32, %arg2: memref<1x7x8x768xf32, #tpu.memory_space<vmem>>, %arg3: memref<1x1x1x384xf32, #tpu.memory_space<vmem>>, %arg4: memref<1x1x1x384xf32, #tpu.memory_space<vmem>>, %arg5: memref<1x1x3x384xf32, #tpu.memory_space<vmem>>, %arg6: memref<1x1x3x384xf32, #tpu.memory_space<vmem>>) attributes {dimension_semantics = [#tpu.dimension_semantics<parallel>, #tpu.dimension_semantics<parallel>], iteration_bounds = array<i64: 2, 1>, scalar_prefetch = 0 : i64, scratch_operands = 0 : i64, tpu.core_type = #tpu.core_type<tc>, window_params = [{transform_indices = @transform_0, window_bounds = array<i64: 1, 7, 8, 768>}, {transform_indices = @transform_1, window_bounds = array<i64: 1, 1, 1, 384>}, {transform_indices = @transform_2, window_bounds = array<i64: 1, 1, 1, 384>}, {transform_indices = @transform_3, window_bounds = array<i64: 1, 1, 3, 384>}, {transform_indices = @transform_4, window_bounds = array<i64: 1, 1, 3, 384>}]} {
    %c0 = arith.constant 0 : index
    %c0_0 = arith.constant 0 : index
    %c0_1 = arith.constant 0 : index
    %c0_2 = arith.constant 0 : index
    %0 = vector.load %arg2[%c0, %c0_0, %c0_1, %c0_2] : memref<1x7x8x768xf32, #tpu.memory_space<vmem>>, vector<1x7x8x768xf32>
    %1 = vector.shape_cast %0 : vector<1x7x8x768xf32> to vector<7x8x768xf32>
    %2 = vector.extract_strided_slice %1 {offsets = [0, 0, 0], sizes = [7, 8, 384], strides = [1, 1, 1]} : vector<7x8x768xf32> to vector<7x8x384xf32>
    %3 = vector.extract_strided_slice %1 {offsets = [0, 0, 384], sizes = [7, 8, 384], strides = [1, 1, 1]} : vector<7x8x768xf32> to vector<7x8x384xf32>
    %4 = vector.extract_strided_slice %2 {offsets = [0, 0, 0], sizes = [1, 8, 384], strides = [1, 1, 1]} : vector<7x8x384xf32> to vector<1x8x384xf32>
    %5 = vector.shape_cast %4 : vector<1x8x384xf32> to vector<8x384xf32>
    %6 = vector.extract_strided_slice %3 {offsets = [0, 0, 0], sizes = [1, 8, 384], strides = [1, 1, 1]} : vector<7x8x384xf32> to vector<1x8x384xf32>
    %7 = vector.shape_cast %6 : vector<1x8x384xf32> to vector<8x384xf32>
    %8 = arith.mulf %5, %5 : vector<8x384xf32>
    %9 = arith.mulf %7, %7 : vector<8x384xf32>
    %10 = arith.addf %8, %9 : vector<8x384xf32>
    %11 = math.sqrt %10 : vector<8x384xf32>
    %cst = arith.constant 1.1920929E-7 : f32
    %12 = vector.broadcast %cst : f32 to vector<8x384xf32>
    %13 = arith.maximumf %11, %12 : vector<8x384xf32>
    %14 = math.log %13 : vector<8x384xf32>
    %c8_i32 = arith.constant 8 : i32
    %15 = arith.muli %arg1, %c8_i32 : i32
    %16 = tpu.iota {dimensions = array<i32: 0>} : vector<8x384xi32>
    %17 = vector.broadcast %15 : i32 to vector<8x384xi32>
    %18 = arith.addi %16, %17 : vector<8x384xi32>
    %c8_i32_3 = arith.constant 8 : i32
    %19 = vector.broadcast %c8_i32_3 : i32 to vector<8x384xi32>
    %20 = arith.cmpi slt, %18, %19 : vector<8x384xi32>
    %cst_4 = arith.constant 0.000000e+00 : f32
    %21 = vector.broadcast %cst_4 : f32 to vector<8x384xf32>
    %22 = arith.select %20, %14, %21 : vector<8x384xi1>, vector<8x384xf32>
    %cst_5 = arith.constant dense<0.000000e+00> : vector<384xf32>
    %23 = vector.multi_reduction <add>, %22, %cst_5 [0] : vector<8x384xf32> to vector<384xf32>
    %24 = vector.shape_cast %23 : vector<384xf32> to vector<1x1x1x384xf32>
    %c0_6 = arith.constant 0 : index
    %c0_7 = arith.constant 0 : index
    %c0_8 = arith.constant 0 : index
    %c0_9 = arith.constant 0 : index
    %25 = vector.load %arg3[%c0_6, %c0_7, %c0_8, %c0_9] : memref<1x1x1x384xf32, #tpu.memory_space<vmem>>, vector<1x1x1x384xf32>
    tpu.vector_store %arg3[%c0_6, %c0_7, %c0_8, %c0_9], %24 {strides = array<i32>} : memref<1x1x1x384xf32, #tpu.memory_space<vmem>>, vector<1x1x1x384xf32>,
    %26 = arith.mulf %22, %22 : vector<8x384xf32>
    %cst_10 = arith.constant dense<0.000000e+00> : vector<384xf32>
    %27 = vector.multi_reduction <add>, %26, %cst_10 [0] : vector<8x384xf32> to vector<384xf32>
    %28 = vector.shape_cast %27 : vector<384xf32> to vector<1x1x1x384xf32>
    %c0_11 = arith.constant 0 : index
    %c0_12 = arith.constant 0 : index
    %c0_13 = arith.constant 0 : index
    %c0_14 = arith.constant 0 : index
    %29 = vector.load %arg4[%c0_11, %c0_12, %c0_13, %c0_14] : memref<1x1x1x384xf32, #tpu.memory_space<vmem>>, vector<1x1x1x384xf32>
    tpu.vector_store %arg4[%c0_11, %c0_12, %c0_13, %c0_14], %28 {strides = array<i32>} : memref<1x1x1x384xf32, #tpu.memory_space<vmem>>, vector<1x1x1x384xf32>,
    %30 = vector.extract_strided_slice %2 {offsets = [1, 0, 0], sizes = [3, 8, 384], strides = [1, 1, 1]} : vector<7x8x384xf32> to vector<3x8x384xf32>
    %31 = vector.extract_strided_slice %3 {offsets = [1, 0, 0], sizes = [3, 8, 384], strides = [1, 1, 1]} : vector<7x8x384xf32> to vector<3x8x384xf32>
    %32 = vector.extract_strided_slice %2 {offsets = [4, 0, 0], sizes = [3, 8, 384], strides = [1, 1, 1]} : vector<7x8x384xf32> to vector<3x8x384xf32>
    %33 = vector.extract_strided_slice %3 {offsets = [4, 0, 0], sizes = [3, 8, 384], strides = [1, 1, 1]} : vector<7x8x384xf32> to vector<3x8x384xf32>
    %34 = arith.mulf %30, %30 : vector<3x8x384xf32>
    %35 = arith.mulf %31, %31 : vector<3x8x384xf32>
    %36 = arith.addf %34, %35 : vector<3x8x384xf32>
    %37 = arith.mulf %32, %32 : vector<3x8x384xf32>
    %38 = arith.mulf %33, %33 : vector<3x8x384xf32>
    %39 = arith.addf %37, %38 : vector<3x8x384xf32>
    %40 = arith.mulf %36, %39 : vector<3x8x384xf32>
    %cst_15 = arith.constant 1.42108547E-14 : f32
    %41 = vector.broadcast %cst_15 : f32 to vector<3x8x384xf32>
    %42 = arith.addf %40, %41 : vector<3x8x384xf32>
    %43 = math.rsqrt %42 : vector<3x8x384xf32>
    %44 = arith.mulf %30, %32 : vector<3x8x384xf32>
    %45 = arith.mulf %31, %33 : vector<3x8x384xf32>
    %46 = arith.addf %44, %45 : vector<3x8x384xf32>
    %47 = arith.mulf %46, %43 : vector<3x8x384xf32>
    %48 = arith.mulf %31, %32 : vector<3x8x384xf32>
    %49 = arith.mulf %30, %33 : vector<3x8x384xf32>
    %50 = arith.subf %48, %49 : vector<3x8x384xf32>
    %51 = arith.mulf %50, %43 : vector<3x8x384xf32>
    %cst_16 = arith.constant dense<0.000000e+00> : vector<3x384xf32>
    %52 = vector.multi_reduction <add>, %47, %cst_16 [1] : vector<3x8x384xf32> to vector<3x384xf32>
    %53 = vector.shape_cast %52 : vector<3x384xf32> to vector<1x1x3x384xf32>
    %c0_17 = arith.constant 0 : index
    %c0_18 = arith.constant 0 : index
    %c0_19 = arith.constant 0 : index
    %c0_20 = arith.constant 0 : index
    %54 = vector.load %arg5[%c0_17, %c0_18, %c0_19, %c0_20] : memref<1x1x3x384xf32, #tpu.memory_space<vmem>>, vector<1x1x3x384xf32>
    tpu.vector_store %arg5[%c0_17, %c0_18, %c0_19, %c0_20], %53 {strides = array<i32>} : memref<1x1x3x384xf32, #tpu.memory_space<vmem>>, vector<1x1x3x384xf32>,
    %cst_21 = arith.constant dense<0.000000e+00> : vector<3x384xf32>
    %55 = vector.multi_reduction <add>, %51, %cst_21 [1] : vector<3x8x384xf32> to vector<3x384xf32>
    %56 = vector.shape_cast %55 : vector<3x384xf32> to vector<1x1x3x384xf32>
    %c0_22 = arith.constant 0 : index
    %c0_23 = arith.constant 0 : index
    %c0_24 = arith.constant 0 : index
    %c0_25 = arith.constant 0 : index
    %57 = vector.load %arg6[%c0_22, %c0_23, %c0_24, %c0_25] : memref<1x1x3x384xf32, #tpu.memory_space<vmem>>, vector<1x1x3x384xf32>
    tpu.vector_store %arg6[%c0_22, %c0_23, %c0_24, %c0_25], %56 {strides = array<i32>} : memref<1x1x3x384xf32, #tpu.memory_space<vmem>>, vector<1x1x3x384xf32>,
    return
  }
  func.func @transform_0(%arg0: i32, %arg1: i32) -> (i32, i32, i32, i32) {
    %c0_i32 = arith.constant 0 : i32
    %c0_i32_0 = arith.constant 0 : i32
    %c0_i32_1 = arith.constant 0 : i32
    return %arg0, %c0_i32, %arg1, %c0_i32_0 : i32, i32, i32, i32
  }
  func.func @transform_1(%arg0: i32, %arg1: i32) -> (i32, i32, i32, i32) {
    %c0_i32 = arith.constant 0 : i32
    %c0_i32_0 = arith.constant 0 : i32
    %c0_i32_1 = arith.constant 0 : i32
    return %arg0, %arg1, %c0_i32, %c0_i32_0 : i32, i32, i32, i32
  }
  func.func @transform_2(%arg0: i32, %arg1: i32) -> (i32, i32, i32, i32) {
    %c0_i32 = arith.constant 0 : i32
    %c0_i32_0 = arith.constant 0 : i32
    %c0_i32_1 = arith.constant 0 : i32
    return %arg0, %arg1, %c0_i32, %c0_i32_0 : i32, i32, i32, i32
  }
  func.func @transform_3(%arg0: i32, %arg1: i32) -> (i32, i32, i32, i32) {
    %c0_i32 = arith.constant 0 : i32
    %c0_i32_0 = arith.constant 0 : i32
    %c0_i32_1 = arith.constant 0 : i32
    return %arg0, %arg1, %c0_i32, %c0_i32_0 : i32, i32, i32, i32
  }
  func.func @transform_4(%arg0: i32, %arg1: i32) -> (i32, i32, i32, i32) {
    %c0_i32 = arith.constant 0 : i32
    %c0_i32_0 = arith.constant 0 : i32
    %c0_i32_1 = arith.constant 0 : i32
    return %arg0, %arg1, %c0_i32, %c0_i32_0 : i32, i32, i32, i32
  }
}

module attributes {stable_mosaic.version = 11 : i64} {
  func.func @feature_kernel(%arg0: i32, %arg1: i32, %arg2: memref<1x7x8x768xf32, #tpu.memory_space<vmem>>, %arg3: memref<1x1x384xf32, #tpu.memory_space<vmem>>, %arg4: memref<1x1x384xf32, #tpu.memory_space<vmem>>, %arg5: memref<1x3x384xf32, #tpu.memory_space<vmem>>, %arg6: memref<1x3x384xf32, #tpu.memory_space<vmem>>, %arg7: memref<1x3x384xf32, #tpu.memory_space<vmem>>, %arg8: memref<1x2x6x384xf32, #tpu.memory_space<vmem>>, %arg9: memref<1x2x6x384xf32, #tpu.memory_space<vmem>>, %arg10: memref<1x8x384xf32, #tpu.memory_space<vmem>>, %arg11: memref<1x8x384xf32, #tpu.memory_space<vmem>>, %arg12: memref<1x3x8x384xf32, #tpu.memory_space<vmem>>, %arg13: memref<1x2x8x384xf32, #tpu.memory_space<vmem>>) attributes {dimension_semantics = [#tpu.dimension_semantics<parallel>, #tpu.dimension_semantics<parallel>], iteration_bounds = array<i64: 2, 1>, scalar_prefetch = 0 : i64, scratch_operands = 0 : i64, tpu.core_type = #tpu.core_type<tc>, window_params = [{transform_indices = @transform_0, window_bounds = array<i64: 1, 7, 8, 768>}, {transform_indices = @transform_1, window_bounds = array<i64: 1, 1, 384>}, {transform_indices = @transform_2, window_bounds = array<i64: 1, 1, 384>}, {transform_indices = @transform_3, window_bounds = array<i64: 1, 3, 384>}, {transform_indices = @transform_4, window_bounds = array<i64: 1, 3, 384>}, {transform_indices = @transform_5, window_bounds = array<i64: 1, 3, 384>}, {transform_indices = @transform_6, window_bounds = array<i64: 1, 2, 6, 384>}, {transform_indices = @transform_7, window_bounds = array<i64: 1, 2, 6, 384>}, {transform_indices = @transform_8, window_bounds = array<i64: 1, 8, 384>}, {transform_indices = @transform_9, window_bounds = array<i64: 1, 8, 384>}, {transform_indices = @transform_10, window_bounds = array<i64: 1, 3, 8, 384>}, {transform_indices = @transform_11, window_bounds = array<i64: 1, 2, 8, 384>}]} {
    %c0 = arith.constant 0 : index
    %c0_0 = arith.constant 0 : index
    %c0_1 = arith.constant 0 : index
    %c0_2 = arith.constant 0 : index
    %0 = vector.load %arg2[%c0, %c0_0, %c0_1, %c0_2] : memref<1x7x8x768xf32, #tpu.memory_space<vmem>>, vector<1x7x8x768xf32>
    %1 = vector.shape_cast %0 : vector<1x7x8x768xf32> to vector<7x8x768xf32>
    %2 = vector.extract_strided_slice %1 {offsets = [0, 0, 0], sizes = [7, 8, 384], strides = [1, 1, 1]} : vector<7x8x768xf32> to vector<7x8x384xf32>
    %3 = vector.extract_strided_slice %1 {offsets = [0, 0, 384], sizes = [7, 8, 384], strides = [1, 1, 1]} : vector<7x8x768xf32> to vector<7x8x384xf32>
    %4 = vector.extract_strided_slice %2 {offsets = [0, 0, 0], sizes = [1, 8, 384], strides = [1, 1, 1]} : vector<7x8x384xf32> to vector<1x8x384xf32>
    %5 = vector.shape_cast %4 : vector<1x8x384xf32> to vector<8x384xf32>
    %6 = vector.extract_strided_slice %3 {offsets = [0, 0, 0], sizes = [1, 8, 384], strides = [1, 1, 1]} : vector<7x8x384xf32> to vector<1x8x384xf32>
    %7 = vector.shape_cast %6 : vector<1x8x384xf32> to vector<8x384xf32>
    %8 = arith.mulf %5, %5 : vector<8x384xf32>
    %9 = arith.mulf %7, %7 : vector<8x384xf32>
    %10 = arith.addf %8, %9 : vector<8x384xf32>
    %11 = math.sqrt %10 : vector<8x384xf32>
    %c0_3 = arith.constant 0 : index
    %c0_4 = arith.constant 0 : index
    %c0_5 = arith.constant 0 : index
    %12 = vector.load %arg10[%c0_3, %c0_4, %c0_5] : memref<1x8x384xf32, #tpu.memory_space<vmem>>, vector<1x8x384xf32>
    %13 = vector.shape_cast %12 : vector<1x8x384xf32> to vector<8x384xf32>
    %14 = vector.shape_cast %11 : vector<8x384xf32> to vector<1x8x384xf32>
    tpu.vector_store %arg10[%c0_3, %c0_4, %c0_5], %14 {strides = array<i32>} : memref<1x8x384xf32, #tpu.memory_space<vmem>>, vector<1x8x384xf32>,
    %cst = arith.constant 1.1920929E-7 : f32
    %15 = vector.broadcast %cst : f32 to vector<8x384xf32>
    %16 = arith.maximumf %11, %15 : vector<8x384xf32>
    %17 = math.log %16 : vector<8x384xf32>
    %c0_6 = arith.constant 0 : index
    %c0_7 = arith.constant 0 : index
    %c0_8 = arith.constant 0 : index
    %18 = vector.load %arg3[%c0_6, %c0_7, %c0_8] : memref<1x1x384xf32, #tpu.memory_space<vmem>>, vector<1x1x384xf32>
    %19 = vector.shape_cast %18 : vector<1x1x384xf32> to vector<384xf32>
    %20 = vector.shape_cast %19 : vector<384xf32> to vector<1x384xf32>
    %21 = vector.broadcast %20 : vector<1x384xf32> to vector<8x384xf32>
    %22 = arith.subf %17, %21 : vector<8x384xf32>
    %c0_9 = arith.constant 0 : index
    %c0_10 = arith.constant 0 : index
    %c0_11 = arith.constant 0 : index
    %23 = vector.load %arg4[%c0_9, %c0_10, %c0_11] : memref<1x1x384xf32, #tpu.memory_space<vmem>>, vector<1x1x384xf32>
    %24 = vector.shape_cast %23 : vector<1x1x384xf32> to vector<384xf32>
    %25 = vector.shape_cast %24 : vector<384xf32> to vector<1x384xf32>
    %26 = vector.broadcast %25 : vector<1x384xf32> to vector<8x384xf32>
    %27 = arith.mulf %22, %26 : vector<8x384xf32>
    %c0_12 = arith.constant 0 : index
    %c0_13 = arith.constant 0 : index
    %c0_14 = arith.constant 0 : index
    %28 = vector.load %arg11[%c0_12, %c0_13, %c0_14] : memref<1x8x384xf32, #tpu.memory_space<vmem>>, vector<1x8x384xf32>
    %29 = vector.shape_cast %28 : vector<1x8x384xf32> to vector<8x384xf32>
    %30 = vector.shape_cast %27 : vector<8x384xf32> to vector<1x8x384xf32>
    tpu.vector_store %arg11[%c0_12, %c0_13, %c0_14], %30 {strides = array<i32>} : memref<1x8x384xf32, #tpu.memory_space<vmem>>, vector<1x8x384xf32>,
    %31 = vector.extract_strided_slice %2 {offsets = [1, 0, 0], sizes = [3, 8, 384], strides = [1, 1, 1]} : vector<7x8x384xf32> to vector<3x8x384xf32>
    %32 = vector.extract_strided_slice %3 {offsets = [1, 0, 0], sizes = [3, 8, 384], strides = [1, 1, 1]} : vector<7x8x384xf32> to vector<3x8x384xf32>
    %33 = vector.extract_strided_slice %2 {offsets = [4, 0, 0], sizes = [3, 8, 384], strides = [1, 1, 1]} : vector<7x8x384xf32> to vector<3x8x384xf32>
    %34 = vector.extract_strided_slice %3 {offsets = [4, 0, 0], sizes = [3, 8, 384], strides = [1, 1, 1]} : vector<7x8x384xf32> to vector<3x8x384xf32>
    %35 = arith.mulf %31, %31 : vector<3x8x384xf32>
    %36 = arith.mulf %32, %32 : vector<3x8x384xf32>
    %37 = arith.addf %35, %36 : vector<3x8x384xf32>
    %38 = arith.mulf %33, %33 : vector<3x8x384xf32>
    %39 = arith.mulf %34, %34 : vector<3x8x384xf32>
    %40 = arith.addf %38, %39 : vector<3x8x384xf32>
    %41 = arith.mulf %37, %40 : vector<3x8x384xf32>
    %cst_15 = arith.constant 1.42108547E-14 : f32
    %42 = vector.broadcast %cst_15 : f32 to vector<3x8x384xf32>
    %43 = arith.addf %41, %42 : vector<3x8x384xf32>
    %44 = math.rsqrt %43 : vector<3x8x384xf32>
    %45 = arith.mulf %31, %33 : vector<3x8x384xf32>
    %46 = arith.mulf %32, %34 : vector<3x8x384xf32>
    %47 = arith.addf %45, %46 : vector<3x8x384xf32>
    %48 = arith.mulf %47, %44 : vector<3x8x384xf32>
    %49 = arith.mulf %32, %33 : vector<3x8x384xf32>
    %50 = arith.mulf %31, %34 : vector<3x8x384xf32>
    %51 = arith.subf %49, %50 : vector<3x8x384xf32>
    %52 = arith.mulf %51, %44 : vector<3x8x384xf32>
    %c0_16 = arith.constant 0 : index
    %c0_17 = arith.constant 0 : index
    %c0_18 = arith.constant 0 : index
    %53 = vector.load %arg5[%c0_16, %c0_17, %c0_18] : memref<1x3x384xf32, #tpu.memory_space<vmem>>, vector<1x3x384xf32>
    %54 = vector.shape_cast %53 : vector<1x3x384xf32> to vector<3x384xf32>
    %55 = vector.shape_cast %54 : vector<3x384xf32> to vector<3x1x384xf32>
    %c0_19 = arith.constant 0 : index
    %c0_20 = arith.constant 0 : index
    %c0_21 = arith.constant 0 : index
    %56 = vector.load %arg6[%c0_19, %c0_20, %c0_21] : memref<1x3x384xf32, #tpu.memory_space<vmem>>, vector<1x3x384xf32>
    %57 = vector.shape_cast %56 : vector<1x3x384xf32> to vector<3x384xf32>
    %58 = vector.shape_cast %57 : vector<3x384xf32> to vector<3x1x384xf32>
    %59 = vector.broadcast %55 : vector<3x1x384xf32> to vector<3x8x384xf32>
    %60 = arith.mulf %48, %59 : vector<3x8x384xf32>
    %61 = vector.broadcast %58 : vector<3x1x384xf32> to vector<3x8x384xf32>
    %62 = arith.mulf %52, %61 : vector<3x8x384xf32>
    %63 = arith.addf %60, %62 : vector<3x8x384xf32>
    %c0_22 = arith.constant 0 : index
    %c0_23 = arith.constant 0 : index
    %c0_24 = arith.constant 0 : index
    %64 = vector.load %arg7[%c0_22, %c0_23, %c0_24] : memref<1x3x384xf32, #tpu.memory_space<vmem>>, vector<1x3x384xf32>
    %65 = vector.shape_cast %64 : vector<1x3x384xf32> to vector<3x384xf32>
    %66 = vector.shape_cast %65 : vector<3x384xf32> to vector<3x1x384xf32>
    %67 = vector.broadcast %66 : vector<3x1x384xf32> to vector<3x8x384xf32>
    %68 = arith.mulf %63, %67 : vector<3x8x384xf32>
    %c0_25 = arith.constant 0 : index
    %c0_26 = arith.constant 0 : index
    %c0_27 = arith.constant 0 : index
    %c0_28 = arith.constant 0 : index
    %69 = vector.load %arg12[%c0_25, %c0_26, %c0_27, %c0_28] : memref<1x3x8x384xf32, #tpu.memory_space<vmem>>, vector<1x3x8x384xf32>
    %70 = vector.shape_cast %69 : vector<1x3x8x384xf32> to vector<3x8x384xf32>
    %71 = vector.shape_cast %68 : vector<3x8x384xf32> to vector<1x3x8x384xf32>
    tpu.vector_store %arg12[%c0_25, %c0_26, %c0_27, %c0_28], %71 {strides = array<i32>} : memref<1x3x8x384xf32, #tpu.memory_space<vmem>>, vector<1x3x8x384xf32>,
    %c0_29 = arith.constant 0 : index
    %c0_30 = arith.constant 0 : index
    %c0_31 = arith.constant 0 : index
    %c0_32 = arith.constant 0 : index
    %72 = vector.load %arg8[%c0_29, %c0_30, %c0_31, %c0_32] : memref<1x2x6x384xf32, #tpu.memory_space<vmem>>, vector<1x2x6x384xf32>
    %73 = vector.shape_cast %72 : vector<1x2x6x384xf32> to vector<2x6x384xf32>
    %c0_33 = arith.constant 0 : index
    %c0_34 = arith.constant 0 : index
    %c0_35 = arith.constant 0 : index
    %c0_36 = arith.constant 0 : index
    %74 = vector.load %arg9[%c0_33, %c0_34, %c0_35, %c0_36] : memref<1x2x6x384xf32, #tpu.memory_space<vmem>>, vector<1x2x6x384xf32>
    %75 = vector.shape_cast %74 : vector<1x2x6x384xf32> to vector<2x6x384xf32>
    %cst_37 = arith.constant 0.000000e+00 : f32
    %76 = vector.broadcast %cst_37 : f32 to vector<8x384xf32>
    %cst_38 = arith.constant 0.000000e+00 : f32
    %77 = vector.broadcast %cst_38 : f32 to vector<8x384xf32>
    %78 = vector.extract_strided_slice %2 {offsets = [1, 0, 0], sizes = [1, 8, 384], strides = [1, 1, 1]} : vector<7x8x384xf32> to vector<1x8x384xf32>
    %79 = vector.shape_cast %78 : vector<1x8x384xf32> to vector<8x384xf32>
    %80 = vector.extract_strided_slice %3 {offsets = [1, 0, 0], sizes = [1, 8, 384], strides = [1, 1, 1]} : vector<7x8x384xf32> to vector<1x8x384xf32>
    %81 = vector.shape_cast %80 : vector<1x8x384xf32> to vector<8x384xf32>
    %82 = arith.mulf %79, %79 : vector<8x384xf32>
    %83 = arith.mulf %81, %81 : vector<8x384xf32>
    %84 = arith.addf %82, %83 : vector<8x384xf32>
    %85 = arith.mulf %84, %10 : vector<8x384xf32>
    %cst_39 = arith.constant 1.42108547E-14 : f32
    %86 = vector.broadcast %cst_39 : f32 to vector<8x384xf32>
    %87 = arith.addf %85, %86 : vector<8x384xf32>
    %88 = math.rsqrt %87 : vector<8x384xf32>
    %89 = arith.mulf %79, %5 : vector<8x384xf32>
    %90 = arith.mulf %81, %7 : vector<8x384xf32>
    %91 = arith.addf %89, %90 : vector<8x384xf32>
    %92 = arith.mulf %81, %5 : vector<8x384xf32>
    %93 = arith.mulf %79, %7 : vector<8x384xf32>
    %94 = arith.subf %92, %93 : vector<8x384xf32>
    %95 = vector.extract_strided_slice %73 {offsets = [0, 0, 0], sizes = [1, 1, 384], strides = [1, 1, 1]} : vector<2x6x384xf32> to vector<1x1x384xf32>
    %96 = vector.shape_cast %95 : vector<1x1x384xf32> to vector<384xf32>
    %97 = vector.shape_cast %96 : vector<384xf32> to vector<1x384xf32>
    %98 = vector.broadcast %97 : vector<1x384xf32> to vector<8x384xf32>
    %99 = arith.mulf %91, %98 : vector<8x384xf32>
    %100 = vector.extract_strided_slice %75 {offsets = [0, 0, 0], sizes = [1, 1, 384], strides = [1, 1, 1]} : vector<2x6x384xf32> to vector<1x1x384xf32>
    %101 = vector.shape_cast %100 : vector<1x1x384xf32> to vector<384xf32>
    %102 = vector.shape_cast %101 : vector<384xf32> to vector<1x384xf32>
    %103 = vector.broadcast %102 : vector<1x384xf32> to vector<8x384xf32>
    %104 = arith.mulf %94, %103 : vector<8x384xf32>
    %105 = arith.addf %99, %104 : vector<8x384xf32>
    %106 = arith.mulf %105, %88 : vector<8x384xf32>
    %107 = arith.addf %76, %106 : vector<8x384xf32>
    %108 = vector.extract_strided_slice %73 {offsets = [1, 0, 0], sizes = [1, 1, 384], strides = [1, 1, 1]} : vector<2x6x384xf32> to vector<1x1x384xf32>
    %109 = vector.shape_cast %108 : vector<1x1x384xf32> to vector<384xf32>
    %110 = vector.shape_cast %109 : vector<384xf32> to vector<1x384xf32>
    %111 = vector.broadcast %110 : vector<1x384xf32> to vector<8x384xf32>
    %112 = arith.mulf %91, %111 : vector<8x384xf32>
    %113 = vector.extract_strided_slice %75 {offsets = [1, 0, 0], sizes = [1, 1, 384], strides = [1, 1, 1]} : vector<2x6x384xf32> to vector<1x1x384xf32>
    %114 = vector.shape_cast %113 : vector<1x1x384xf32> to vector<384xf32>
    %115 = vector.shape_cast %114 : vector<384xf32> to vector<1x384xf32>
    %116 = vector.broadcast %115 : vector<1x384xf32> to vector<8x384xf32>
    %117 = arith.mulf %94, %116 : vector<8x384xf32>
    %118 = arith.addf %112, %117 : vector<8x384xf32>
    %119 = arith.mulf %118, %88 : vector<8x384xf32>
    %120 = arith.addf %77, %119 : vector<8x384xf32>
    %121 = vector.extract_strided_slice %2 {offsets = [2, 0, 0], sizes = [1, 8, 384], strides = [1, 1, 1]} : vector<7x8x384xf32> to vector<1x8x384xf32>
    %122 = vector.shape_cast %121 : vector<1x8x384xf32> to vector<8x384xf32>
    %123 = vector.extract_strided_slice %3 {offsets = [2, 0, 0], sizes = [1, 8, 384], strides = [1, 1, 1]} : vector<7x8x384xf32> to vector<1x8x384xf32>
    %124 = vector.shape_cast %123 : vector<1x8x384xf32> to vector<8x384xf32>
    %125 = arith.mulf %122, %122 : vector<8x384xf32>
    %126 = arith.mulf %124, %124 : vector<8x384xf32>
    %127 = arith.addf %125, %126 : vector<8x384xf32>
    %128 = arith.mulf %127, %10 : vector<8x384xf32>
    %cst_40 = arith.constant 1.42108547E-14 : f32
    %129 = vector.broadcast %cst_40 : f32 to vector<8x384xf32>
    %130 = arith.addf %128, %129 : vector<8x384xf32>
    %131 = math.rsqrt %130 : vector<8x384xf32>
    %132 = arith.mulf %122, %5 : vector<8x384xf32>
    %133 = arith.mulf %124, %7 : vector<8x384xf32>
    %134 = arith.addf %132, %133 : vector<8x384xf32>
    %135 = arith.mulf %124, %5 : vector<8x384xf32>
    %136 = arith.mulf %122, %7 : vector<8x384xf32>
    %137 = arith.subf %135, %136 : vector<8x384xf32>
    %138 = vector.extract_strided_slice %73 {offsets = [0, 1, 0], sizes = [1, 1, 384], strides = [1, 1, 1]} : vector<2x6x384xf32> to vector<1x1x384xf32>
    %139 = vector.shape_cast %138 : vector<1x1x384xf32> to vector<384xf32>
    %140 = vector.shape_cast %139 : vector<384xf32> to vector<1x384xf32>
    %141 = vector.broadcast %140 : vector<1x384xf32> to vector<8x384xf32>
    %142 = arith.mulf %134, %141 : vector<8x384xf32>
    %143 = vector.extract_strided_slice %75 {offsets = [0, 1, 0], sizes = [1, 1, 384], strides = [1, 1, 1]} : vector<2x6x384xf32> to vector<1x1x384xf32>
    %144 = vector.shape_cast %143 : vector<1x1x384xf32> to vector<384xf32>
    %145 = vector.shape_cast %144 : vector<384xf32> to vector<1x384xf32>
    %146 = vector.broadcast %145 : vector<1x384xf32> to vector<8x384xf32>
    %147 = arith.mulf %137, %146 : vector<8x384xf32>
    %148 = arith.addf %142, %147 : vector<8x384xf32>
    %149 = arith.mulf %148, %131 : vector<8x384xf32>
    %150 = arith.addf %107, %149 : vector<8x384xf32>
    %151 = vector.extract_strided_slice %73 {offsets = [1, 1, 0], sizes = [1, 1, 384], strides = [1, 1, 1]} : vector<2x6x384xf32> to vector<1x1x384xf32>
    %152 = vector.shape_cast %151 : vector<1x1x384xf32> to vector<384xf32>
    %153 = vector.shape_cast %152 : vector<384xf32> to vector<1x384xf32>
    %154 = vector.broadcast %153 : vector<1x384xf32> to vector<8x384xf32>
    %155 = arith.mulf %134, %154 : vector<8x384xf32>
    %156 = vector.extract_strided_slice %75 {offsets = [1, 1, 0], sizes = [1, 1, 384], strides = [1, 1, 1]} : vector<2x6x384xf32> to vector<1x1x384xf32>
    %157 = vector.shape_cast %156 : vector<1x1x384xf32> to vector<384xf32>
    %158 = vector.shape_cast %157 : vector<384xf32> to vector<1x384xf32>
    %159 = vector.broadcast %158 : vector<1x384xf32> to vector<8x384xf32>
    %160 = arith.mulf %137, %159 : vector<8x384xf32>
    %161 = arith.addf %155, %160 : vector<8x384xf32>
    %162 = arith.mulf %161, %131 : vector<8x384xf32>
    %163 = arith.addf %120, %162 : vector<8x384xf32>
    %164 = vector.extract_strided_slice %2 {offsets = [3, 0, 0], sizes = [1, 8, 384], strides = [1, 1, 1]} : vector<7x8x384xf32> to vector<1x8x384xf32>
    %165 = vector.shape_cast %164 : vector<1x8x384xf32> to vector<8x384xf32>
    %166 = vector.extract_strided_slice %3 {offsets = [3, 0, 0], sizes = [1, 8, 384], strides = [1, 1, 1]} : vector<7x8x384xf32> to vector<1x8x384xf32>
    %167 = vector.shape_cast %166 : vector<1x8x384xf32> to vector<8x384xf32>
    %168 = arith.mulf %165, %165 : vector<8x384xf32>
    %169 = arith.mulf %167, %167 : vector<8x384xf32>
    %170 = arith.addf %168, %169 : vector<8x384xf32>
    %171 = arith.mulf %170, %10 : vector<8x384xf32>
    %cst_41 = arith.constant 1.42108547E-14 : f32
    %172 = vector.broadcast %cst_41 : f32 to vector<8x384xf32>
    %173 = arith.addf %171, %172 : vector<8x384xf32>
    %174 = math.rsqrt %173 : vector<8x384xf32>
    %175 = arith.mulf %165, %5 : vector<8x384xf32>
    %176 = arith.mulf %167, %7 : vector<8x384xf32>
    %177 = arith.addf %175, %176 : vector<8x384xf32>
    %178 = arith.mulf %167, %5 : vector<8x384xf32>
    %179 = arith.mulf %165, %7 : vector<8x384xf32>
    %180 = arith.subf %178, %179 : vector<8x384xf32>
    %181 = vector.extract_strided_slice %73 {offsets = [0, 2, 0], sizes = [1, 1, 384], strides = [1, 1, 1]} : vector<2x6x384xf32> to vector<1x1x384xf32>
    %182 = vector.shape_cast %181 : vector<1x1x384xf32> to vector<384xf32>
    %183 = vector.shape_cast %182 : vector<384xf32> to vector<1x384xf32>
    %184 = vector.broadcast %183 : vector<1x384xf32> to vector<8x384xf32>
    %185 = arith.mulf %177, %184 : vector<8x384xf32>
    %186 = vector.extract_strided_slice %75 {offsets = [0, 2, 0], sizes = [1, 1, 384], strides = [1, 1, 1]} : vector<2x6x384xf32> to vector<1x1x384xf32>
    %187 = vector.shape_cast %186 : vector<1x1x384xf32> to vector<384xf32>
    %188 = vector.shape_cast %187 : vector<384xf32> to vector<1x384xf32>
    %189 = vector.broadcast %188 : vector<1x384xf32> to vector<8x384xf32>
    %190 = arith.mulf %180, %189 : vector<8x384xf32>
    %191 = arith.addf %185, %190 : vector<8x384xf32>
    %192 = arith.mulf %191, %174 : vector<8x384xf32>
    %193 = arith.addf %150, %192 : vector<8x384xf32>
    %194 = vector.extract_strided_slice %73 {offsets = [1, 2, 0], sizes = [1, 1, 384], strides = [1, 1, 1]} : vector<2x6x384xf32> to vector<1x1x384xf32>
    %195 = vector.shape_cast %194 : vector<1x1x384xf32> to vector<384xf32>
    %196 = vector.shape_cast %195 : vector<384xf32> to vector<1x384xf32>
    %197 = vector.broadcast %196 : vector<1x384xf32> to vector<8x384xf32>
    %198 = arith.mulf %177, %197 : vector<8x384xf32>
    %199 = vector.extract_strided_slice %75 {offsets = [1, 2, 0], sizes = [1, 1, 384], strides = [1, 1, 1]} : vector<2x6x384xf32> to vector<1x1x384xf32>
    %200 = vector.shape_cast %199 : vector<1x1x384xf32> to vector<384xf32>
    %201 = vector.shape_cast %200 : vector<384xf32> to vector<1x384xf32>
    %202 = vector.broadcast %201 : vector<1x384xf32> to vector<8x384xf32>
    %203 = arith.mulf %180, %202 : vector<8x384xf32>
    %204 = arith.addf %198, %203 : vector<8x384xf32>
    %205 = arith.mulf %204, %174 : vector<8x384xf32>
    %206 = arith.addf %163, %205 : vector<8x384xf32>
    %207 = vector.extract_strided_slice %2 {offsets = [4, 0, 0], sizes = [1, 8, 384], strides = [1, 1, 1]} : vector<7x8x384xf32> to vector<1x8x384xf32>
    %208 = vector.shape_cast %207 : vector<1x8x384xf32> to vector<8x384xf32>
    %209 = vector.extract_strided_slice %3 {offsets = [4, 0, 0], sizes = [1, 8, 384], strides = [1, 1, 1]} : vector<7x8x384xf32> to vector<1x8x384xf32>
    %210 = vector.shape_cast %209 : vector<1x8x384xf32> to vector<8x384xf32>
    %211 = arith.mulf %208, %208 : vector<8x384xf32>
    %212 = arith.mulf %210, %210 : vector<8x384xf32>
    %213 = arith.addf %211, %212 : vector<8x384xf32>
    %214 = arith.mulf %213, %10 : vector<8x384xf32>
    %cst_42 = arith.constant 1.42108547E-14 : f32
    %215 = vector.broadcast %cst_42 : f32 to vector<8x384xf32>
    %216 = arith.addf %214, %215 : vector<8x384xf32>
    %217 = math.rsqrt %216 : vector<8x384xf32>
    %218 = arith.mulf %208, %5 : vector<8x384xf32>
    %219 = arith.mulf %210, %7 : vector<8x384xf32>
    %220 = arith.addf %218, %219 : vector<8x384xf32>
    %221 = arith.mulf %210, %5 : vector<8x384xf32>
    %222 = arith.mulf %208, %7 : vector<8x384xf32>
    %223 = arith.subf %221, %222 : vector<8x384xf32>
    %224 = vector.extract_strided_slice %73 {offsets = [0, 3, 0], sizes = [1, 1, 384], strides = [1, 1, 1]} : vector<2x6x384xf32> to vector<1x1x384xf32>
    %225 = vector.shape_cast %224 : vector<1x1x384xf32> to vector<384xf32>
    %226 = vector.shape_cast %225 : vector<384xf32> to vector<1x384xf32>
    %227 = vector.broadcast %226 : vector<1x384xf32> to vector<8x384xf32>
    %228 = arith.mulf %220, %227 : vector<8x384xf32>
    %229 = vector.extract_strided_slice %75 {offsets = [0, 3, 0], sizes = [1, 1, 384], strides = [1, 1, 1]} : vector<2x6x384xf32> to vector<1x1x384xf32>
    %230 = vector.shape_cast %229 : vector<1x1x384xf32> to vector<384xf32>
    %231 = vector.shape_cast %230 : vector<384xf32> to vector<1x384xf32>
    %232 = vector.broadcast %231 : vector<1x384xf32> to vector<8x384xf32>
    %233 = arith.mulf %223, %232 : vector<8x384xf32>
    %234 = arith.addf %228, %233 : vector<8x384xf32>
    %235 = arith.mulf %234, %217 : vector<8x384xf32>
    %236 = arith.addf %193, %235 : vector<8x384xf32>
    %237 = vector.extract_strided_slice %73 {offsets = [1, 3, 0], sizes = [1, 1, 384], strides = [1, 1, 1]} : vector<2x6x384xf32> to vector<1x1x384xf32>
    %238 = vector.shape_cast %237 : vector<1x1x384xf32> to vector<384xf32>
    %239 = vector.shape_cast %238 : vector<384xf32> to vector<1x384xf32>
    %240 = vector.broadcast %239 : vector<1x384xf32> to vector<8x384xf32>
    %241 = arith.mulf %220, %240 : vector<8x384xf32>
    %242 = vector.extract_strided_slice %75 {offsets = [1, 3, 0], sizes = [1, 1, 384], strides = [1, 1, 1]} : vector<2x6x384xf32> to vector<1x1x384xf32>
    %243 = vector.shape_cast %242 : vector<1x1x384xf32> to vector<384xf32>
    %244 = vector.shape_cast %243 : vector<384xf32> to vector<1x384xf32>
    %245 = vector.broadcast %244 : vector<1x384xf32> to vector<8x384xf32>
    %246 = arith.mulf %223, %245 : vector<8x384xf32>
    %247 = arith.addf %241, %246 : vector<8x384xf32>
    %248 = arith.mulf %247, %217 : vector<8x384xf32>
    %249 = arith.addf %206, %248 : vector<8x384xf32>
    %250 = vector.extract_strided_slice %2 {offsets = [5, 0, 0], sizes = [1, 8, 384], strides = [1, 1, 1]} : vector<7x8x384xf32> to vector<1x8x384xf32>
    %251 = vector.shape_cast %250 : vector<1x8x384xf32> to vector<8x384xf32>
    %252 = vector.extract_strided_slice %3 {offsets = [5, 0, 0], sizes = [1, 8, 384], strides = [1, 1, 1]} : vector<7x8x384xf32> to vector<1x8x384xf32>
    %253 = vector.shape_cast %252 : vector<1x8x384xf32> to vector<8x384xf32>
    %254 = arith.mulf %251, %251 : vector<8x384xf32>
    %255 = arith.mulf %253, %253 : vector<8x384xf32>
    %256 = arith.addf %254, %255 : vector<8x384xf32>
    %257 = arith.mulf %256, %10 : vector<8x384xf32>
    %cst_43 = arith.constant 1.42108547E-14 : f32
    %258 = vector.broadcast %cst_43 : f32 to vector<8x384xf32>
    %259 = arith.addf %257, %258 : vector<8x384xf32>
    %260 = math.rsqrt %259 : vector<8x384xf32>
    %261 = arith.mulf %251, %5 : vector<8x384xf32>
    %262 = arith.mulf %253, %7 : vector<8x384xf32>
    %263 = arith.addf %261, %262 : vector<8x384xf32>
    %264 = arith.mulf %253, %5 : vector<8x384xf32>
    %265 = arith.mulf %251, %7 : vector<8x384xf32>
    %266 = arith.subf %264, %265 : vector<8x384xf32>
    %267 = vector.extract_strided_slice %73 {offsets = [0, 4, 0], sizes = [1, 1, 384], strides = [1, 1, 1]} : vector<2x6x384xf32> to vector<1x1x384xf32>
    %268 = vector.shape_cast %267 : vector<1x1x384xf32> to vector<384xf32>
    %269 = vector.shape_cast %268 : vector<384xf32> to vector<1x384xf32>
    %270 = vector.broadcast %269 : vector<1x384xf32> to vector<8x384xf32>
    %271 = arith.mulf %263, %270 : vector<8x384xf32>
    %272 = vector.extract_strided_slice %75 {offsets = [0, 4, 0], sizes = [1, 1, 384], strides = [1, 1, 1]} : vector<2x6x384xf32> to vector<1x1x384xf32>
    %273 = vector.shape_cast %272 : vector<1x1x384xf32> to vector<384xf32>
    %274 = vector.shape_cast %273 : vector<384xf32> to vector<1x384xf32>
    %275 = vector.broadcast %274 : vector<1x384xf32> to vector<8x384xf32>
    %276 = arith.mulf %266, %275 : vector<8x384xf32>
    %277 = arith.addf %271, %276 : vector<8x384xf32>
    %278 = arith.mulf %277, %260 : vector<8x384xf32>
    %279 = arith.addf %236, %278 : vector<8x384xf32>
    %280 = vector.extract_strided_slice %73 {offsets = [1, 4, 0], sizes = [1, 1, 384], strides = [1, 1, 1]} : vector<2x6x384xf32> to vector<1x1x384xf32>
    %281 = vector.shape_cast %280 : vector<1x1x384xf32> to vector<384xf32>
    %282 = vector.shape_cast %281 : vector<384xf32> to vector<1x384xf32>
    %283 = vector.broadcast %282 : vector<1x384xf32> to vector<8x384xf32>
    %284 = arith.mulf %263, %283 : vector<8x384xf32>
    %285 = vector.extract_strided_slice %75 {offsets = [1, 4, 0], sizes = [1, 1, 384], strides = [1, 1, 1]} : vector<2x6x384xf32> to vector<1x1x384xf32>
    %286 = vector.shape_cast %285 : vector<1x1x384xf32> to vector<384xf32>
    %287 = vector.shape_cast %286 : vector<384xf32> to vector<1x384xf32>
    %288 = vector.broadcast %287 : vector<1x384xf32> to vector<8x384xf32>
    %289 = arith.mulf %266, %288 : vector<8x384xf32>
    %290 = arith.addf %284, %289 : vector<8x384xf32>
    %291 = arith.mulf %290, %260 : vector<8x384xf32>
    %292 = arith.addf %249, %291 : vector<8x384xf32>
    %293 = vector.extract_strided_slice %2 {offsets = [6, 0, 0], sizes = [1, 8, 384], strides = [1, 1, 1]} : vector<7x8x384xf32> to vector<1x8x384xf32>
    %294 = vector.shape_cast %293 : vector<1x8x384xf32> to vector<8x384xf32>
    %295 = vector.extract_strided_slice %3 {offsets = [6, 0, 0], sizes = [1, 8, 384], strides = [1, 1, 1]} : vector<7x8x384xf32> to vector<1x8x384xf32>
    %296 = vector.shape_cast %295 : vector<1x8x384xf32> to vector<8x384xf32>
    %297 = arith.mulf %294, %294 : vector<8x384xf32>
    %298 = arith.mulf %296, %296 : vector<8x384xf32>
    %299 = arith.addf %297, %298 : vector<8x384xf32>
    %300 = arith.mulf %299, %10 : vector<8x384xf32>
    %cst_44 = arith.constant 1.42108547E-14 : f32
    %301 = vector.broadcast %cst_44 : f32 to vector<8x384xf32>
    %302 = arith.addf %300, %301 : vector<8x384xf32>
    %303 = math.rsqrt %302 : vector<8x384xf32>
    %304 = arith.mulf %294, %5 : vector<8x384xf32>
    %305 = arith.mulf %296, %7 : vector<8x384xf32>
    %306 = arith.addf %304, %305 : vector<8x384xf32>
    %307 = arith.mulf %296, %5 : vector<8x384xf32>
    %308 = arith.mulf %294, %7 : vector<8x384xf32>
    %309 = arith.subf %307, %308 : vector<8x384xf32>
    %310 = vector.extract_strided_slice %73 {offsets = [0, 5, 0], sizes = [1, 1, 384], strides = [1, 1, 1]} : vector<2x6x384xf32> to vector<1x1x384xf32>
    %311 = vector.shape_cast %310 : vector<1x1x384xf32> to vector<384xf32>
    %312 = vector.shape_cast %311 : vector<384xf32> to vector<1x384xf32>
    %313 = vector.broadcast %312 : vector<1x384xf32> to vector<8x384xf32>
    %314 = arith.mulf %306, %313 : vector<8x384xf32>
    %315 = vector.extract_strided_slice %75 {offsets = [0, 5, 0], sizes = [1, 1, 384], strides = [1, 1, 1]} : vector<2x6x384xf32> to vector<1x1x384xf32>
    %316 = vector.shape_cast %315 : vector<1x1x384xf32> to vector<384xf32>
    %317 = vector.shape_cast %316 : vector<384xf32> to vector<1x384xf32>
    %318 = vector.broadcast %317 : vector<1x384xf32> to vector<8x384xf32>
    %319 = arith.mulf %309, %318 : vector<8x384xf32>
    %320 = arith.addf %314, %319 : vector<8x384xf32>
    %321 = arith.mulf %320, %303 : vector<8x384xf32>
    %322 = arith.addf %279, %321 : vector<8x384xf32>
    %323 = vector.extract_strided_slice %73 {offsets = [1, 5, 0], sizes = [1, 1, 384], strides = [1, 1, 1]} : vector<2x6x384xf32> to vector<1x1x384xf32>
    %324 = vector.shape_cast %323 : vector<1x1x384xf32> to vector<384xf32>
    %325 = vector.shape_cast %324 : vector<384xf32> to vector<1x384xf32>
    %326 = vector.broadcast %325 : vector<1x384xf32> to vector<8x384xf32>
    %327 = arith.mulf %306, %326 : vector<8x384xf32>
    %328 = vector.extract_strided_slice %75 {offsets = [1, 5, 0], sizes = [1, 1, 384], strides = [1, 1, 1]} : vector<2x6x384xf32> to vector<1x1x384xf32>
    %329 = vector.shape_cast %328 : vector<1x1x384xf32> to vector<384xf32>
    %330 = vector.shape_cast %329 : vector<384xf32> to vector<1x384xf32>
    %331 = vector.broadcast %330 : vector<1x384xf32> to vector<8x384xf32>
    %332 = arith.mulf %309, %331 : vector<8x384xf32>
    %333 = arith.addf %327, %332 : vector<8x384xf32>
    %334 = arith.mulf %333, %303 : vector<8x384xf32>
    %335 = arith.addf %292, %334 : vector<8x384xf32>
    %cst_45 = arith.constant 0.166666672 : f32
    %336 = vector.broadcast %cst_45 : f32 to vector<8x384xf32>
    %337 = arith.mulf %322, %336 : vector<8x384xf32>
    %c0_46 = arith.constant 0 : index
    %c0_47 = arith.constant 0 : index
    %c0_48 = arith.constant 0 : index
    %c0_49 = arith.constant 0 : index
    %338 = vector.load %arg13[%c0_46, %c0_47, %c0_48, %c0_49] : memref<1x2x8x384xf32, #tpu.memory_space<vmem>>, vector<1x1x8x384xf32>
    %339 = vector.shape_cast %338 : vector<1x1x8x384xf32> to vector<8x384xf32>
    %340 = vector.shape_cast %337 : vector<8x384xf32> to vector<1x1x8x384xf32>
    tpu.vector_store %arg13[%c0_46, %c0_47, %c0_48, %c0_49], %340 {strides = array<i32>} : memref<1x2x8x384xf32, #tpu.memory_space<vmem>>, vector<1x1x8x384xf32>,
    %cst_50 = arith.constant 0.166666672 : f32
    %341 = vector.broadcast %cst_50 : f32 to vector<8x384xf32>
    %342 = arith.mulf %335, %341 : vector<8x384xf32>
    %c0_51 = arith.constant 0 : index
    %c1 = arith.constant 1 : index
    %c0_52 = arith.constant 0 : index
    %c0_53 = arith.constant 0 : index
    %343 = vector.load %arg13[%c0_51, %c1, %c0_52, %c0_53] : memref<1x2x8x384xf32, #tpu.memory_space<vmem>>, vector<1x1x8x384xf32>
    %344 = vector.shape_cast %343 : vector<1x1x8x384xf32> to vector<8x384xf32>
    %345 = vector.shape_cast %342 : vector<8x384xf32> to vector<1x1x8x384xf32>
    tpu.vector_store %arg13[%c0_51, %c1, %c0_52, %c0_53], %345 {strides = array<i32>} : memref<1x2x8x384xf32, #tpu.memory_space<vmem>>, vector<1x1x8x384xf32>,
    return
  }
  func.func @transform_0(%arg0: i32, %arg1: i32) -> (i32, i32, i32, i32) {
    %c0_i32 = arith.constant 0 : i32
    %c0_i32_0 = arith.constant 0 : i32
    %c0_i32_1 = arith.constant 0 : i32
    return %arg0, %c0_i32, %arg1, %c0_i32_0 : i32, i32, i32, i32
  }
  func.func @transform_1(%arg0: i32, %arg1: i32) -> (i32, i32, i32) {
    %c0_i32 = arith.constant 0 : i32
    %c0_i32_0 = arith.constant 0 : i32
    %c0_i32_1 = arith.constant 0 : i32
    return %arg0, %c0_i32, %c0_i32_0 : i32, i32, i32
  }
  func.func @transform_2(%arg0: i32, %arg1: i32) -> (i32, i32, i32) {
    %c0_i32 = arith.constant 0 : i32
    %c0_i32_0 = arith.constant 0 : i32
    %c0_i32_1 = arith.constant 0 : i32
    return %arg0, %c0_i32, %c0_i32_0 : i32, i32, i32
  }
  func.func @transform_3(%arg0: i32, %arg1: i32) -> (i32, i32, i32) {
    %c0_i32 = arith.constant 0 : i32
    %c0_i32_0 = arith.constant 0 : i32
    %c0_i32_1 = arith.constant 0 : i32
    return %arg0, %c0_i32, %c0_i32_0 : i32, i32, i32
  }
  func.func @transform_4(%arg0: i32, %arg1: i32) -> (i32, i32, i32) {
    %c0_i32 = arith.constant 0 : i32
    %c0_i32_0 = arith.constant 0 : i32
    %c0_i32_1 = arith.constant 0 : i32
    return %arg0, %c0_i32, %c0_i32_0 : i32, i32, i32
  }
  func.func @transform_5(%arg0: i32, %arg1: i32) -> (i32, i32, i32) {
    %c0_i32 = arith.constant 0 : i32
    %c0_i32_0 = arith.constant 0 : i32
    %c0_i32_1 = arith.constant 0 : i32
    return %arg0, %c0_i32, %c0_i32_0 : i32, i32, i32
  }
  func.func @transform_6(%arg0: i32, %arg1: i32) -> (i32, i32, i32, i32) {
    %c0_i32 = arith.constant 0 : i32
    %c0_i32_0 = arith.constant 0 : i32
    %c0_i32_1 = arith.constant 0 : i32
    %c0_i32_2 = arith.constant 0 : i32
    return %arg0, %c0_i32, %c0_i32_0, %c0_i32_1 : i32, i32, i32, i32
  }
  func.func @transform_7(%arg0: i32, %arg1: i32) -> (i32, i32, i32, i32) {
    %c0_i32 = arith.constant 0 : i32
    %c0_i32_0 = arith.constant 0 : i32
    %c0_i32_1 = arith.constant 0 : i32
    %c0_i32_2 = arith.constant 0 : i32
    return %arg0, %c0_i32, %c0_i32_0, %c0_i32_1 : i32, i32, i32, i32
  }
  func.func @transform_8(%arg0: i32, %arg1: i32) -> (i32, i32, i32) {
    %c0_i32 = arith.constant 0 : i32
    %c0_i32_0 = arith.constant 0 : i32
    return %arg0, %arg1, %c0_i32 : i32, i32, i32
  }
  func.func @transform_9(%arg0: i32, %arg1: i32) -> (i32, i32, i32) {
    %c0_i32 = arith.constant 0 : i32
    %c0_i32_0 = arith.constant 0 : i32
    return %arg0, %arg1, %c0_i32 : i32, i32, i32
  }
  func.func @transform_10(%arg0: i32, %arg1: i32) -> (i32, i32, i32, i32) {
    %c0_i32 = arith.constant 0 : i32
    %c0_i32_0 = arith.constant 0 : i32
    %c0_i32_1 = arith.constant 0 : i32
    return %arg0, %c0_i32, %arg1, %c0_i32_0 : i32, i32, i32, i32
  }
  func.func @transform_11(%arg0: i32, %arg1: i32) -> (i32, i32, i32, i32) {
    %c0_i32 = arith.constant 0 : i32
    %c0_i32_0 = arith.constant 0 : i32
    %c0_i32_1 = arith.constant 0 : i32
    return %arg0, %c0_i32, %arg1, %c0_i32_0 : i32, i32, i32, i32
  }
}

</mosaic_0001>

<llo_original>
// kernel: feature_extractor_forward.4
$region0: #{feature_extractor_forward.4}
  #allocation0 [shape = 'u32[]', space=smem, size = 0x4, offset = 0x4, fixed_abs, tag = 'smem constant byte address 0x4 - core index']
  #allocation1 [shape = 'u32[144,128]{1,0:T(1,128)}', space=vmem, size = 0x12000, scoped, tag = 'internal scratch']
  %s0 = inlined_call_operand.vmem [shape: f32[2,7,8,768], index: 0, kind: input, shape index: {}]
  %s1 = inlined_call_operand.vmem [shape: f32[2,1,1,384], index: 1, kind: output, shape index: {0}]
  %s2 = inlined_call_operand.vmem [shape: f32[2,1,1,384], index: 2, kind: output, shape index: {1}]
  %s3 = inlined_call_operand.vmem [shape: f32[2,1,3,384], index: 3, kind: output, shape index: {2}]
  %s4 = inlined_call_operand.vmem [shape: f32[2,1,3,384], index: 4, kind: output, shape index: {3}]
  %5 = xla_tuple %s1, %s2, %s3, %s4
  %s6 = sld [smem:[#allocation0]]
  $region61: #{feature_extractor_forward.4} parent=0
    _
  %s8 = ssub.s32 1, %s6
  %s9 = scalar_select 0, %s8, %s6
  loop: start=0, step=1, limit=4
  $region2: #{feature_extractor_forward.4} parent=0 // loop_pre_header
    _
  $region3: #{feature_extractor_forward.4} parent=0 // loop_header
    %s11 = sphi 0, %s15
    %p12 = scmp.ge.s32.totalorder %s11, 4
    %s18 = sphi 0, %s30
    %s19 = sphi 0, %s26
    %s20 = sphi 0, %s18
    %s21 = sphi 0, %s19
    %s22 = sphi 0, %s20
    %s23 = sphi 0, %s21
    %s35 = sphi 0, %s37
    %s38 = sphi 0, %s35
    %s39 = sphi 0, %s38
    %s55 = sphi 0, %s39
    %s63 = sphi 0, %s65
    %s66 = sphi 0, %s63
    %s67 = sphi 0, %s66
    %s83 = sphi 0, %s67
    %s91 = sphi 0, %s93
    %s94 = sphi 0, %s91
    %s95 = sphi 0, %s94
    %s111 = sphi 0, %s95
    %s119 = sphi 0, %s121
    %s122 = sphi 0, %s119
    %s123 = sphi 0, %s122
    %s139 = sphi 0, %s123
    %s147 = sphi 0, %s149
    %s150 = sphi 0, %s147
    %s151 = sphi 0, %s150
    %s167 = sphi 0, %s151
  $region4: #{feature_extractor_forward.4} parent=0 // loop_header_branch
    %14 = sbr.rel (%p12) target = $region8
  $region5: #{feature_extractor_forward.4} parent=0 // loop_body
    %s16 = ssub.s32 %s11, 1
    %s17 = ssub.s32 %s11, 2
    %s24 = sadd.s32 1, %s19
    %p25 = scmp.ge.s32.totalorder %s24, 1
    %s26 = scalar_select %p25, 0, %s24
    %s27 = sadd.s32 1, %s18
    %s28 = scalar_select %p25, %s27, %s18
    %p29 = scmp.ge.s32.totalorder %s28, 2
    %s30 = scalar_select %p29, 0, %s28
    %s31 = ssub.s32 %s18, %s30
    %s32 = ssub.s32 %s19, %s26
    %s33 = sor.u32 %s31, %s32
    %p34 = scmp.eq.s32.totalorder %s33, 0
    %s36 = sadd.s32 %s35, 1
    %s37 = scalar_select %p34, %s35, %s36
    %p40 = pneg %p34
    %p41 = scmp.eq.s32.totalorder %s11, 1
    %p42 = por %p40, %p41
    %p43 = scmp.ne.s32.totalorder %s35, %s38
    %p44 = scmp.eq.s32.totalorder %s11, 0
    %p45 = por %p43, %p44
    %p46 = scmp.ne.s32.totalorder %s35, %s38
    %p47 = scmp.eq.s32.totalorder %s16, 1
    %p48 = por %p46, %p47
    %p49 = scmp.ne.s32.totalorder %s38, %s39
    %p50 = scmp.eq.s32.totalorder %s16, 0
    %p51 = por %p49, %p50
    %p52 = scmp.ne.s32.totalorder %s38, %s39
    %p53 = scmp.eq.s32.totalorder %s17, 1
    %p54 = por %p52, %p53
    %p56 = scmp.ne.s32.totalorder %s39, %s55
    %p57 = scmp.eq.s32.totalorder %s17, 0
    %p58 = por %p56, %p57
    %s59 = ssub.s32 %s18, %s30
    %s60 = ssub.s32 %s19, %s26
    %s61 = sor.u32 %s59, %s60
    %p62 = scmp.eq.s32.totalorder %s61, 0
    %s64 = sadd.s32 %s63, 1
    %s65 = scalar_select %p62, %s63, %s64
    %p68 = pneg %p62
    %p69 = scmp.eq.s32.totalorder %s11, 1
    %p70 = por %p68, %p69
    %p71 = scmp.ne.s32.totalorder %s63, %s66
    %p72 = scmp.eq.s32.totalorder %s11, 0
    %p73 = por %p71, %p72
    %p74 = scmp.ne.s32.totalorder %s63, %s66
    %p75 = scmp.eq.s32.totalorder %s16, 1
    %p76 = por %p74, %p75
    %p77 = scmp.ne.s32.totalorder %s66, %s67
    %p78 = scmp.eq.s32.totalorder %s16, 0
    %p79 = por %p77, %p78
    %p80 = scmp.ne.s32.totalorder %s66, %s67
    %p81 = scmp.eq.s32.totalorder %s17, 1
    %p82 = por %p80, %p81
    %p84 = scmp.ne.s32.totalorder %s67, %s83
    %p85 = scmp.eq.s32.totalorder %s17, 0
    %p86 = por %p84, %p85
    %s87 = ssub.s32 %s18, %s30
    %s88 = ssub.s32 %s19, %s26
    %s89 = sor.u32 %s87, %s88
    %p90 = scmp.eq.s32.totalorder %s89, 0
    %s92 = sadd.s32 %s91, 1
    %s93 = scalar_select %p90, %s91, %s92
    %p96 = pneg %p90
    %p97 = scmp.eq.s32.totalorder %s11, 1
    %p98 = por %p96, %p97
    %p99 = scmp.ne.s32.totalorder %s91, %s94
    %p100 = scmp.eq.s32.totalorder %s11, 0
    %p101 = por %p99, %p100
    %p102 = scmp.ne.s32.totalorder %s91, %s94
    %p103 = scmp.eq.s32.totalorder %s16, 1
    %p104 = por %p102, %p103
    %p105 = scmp.ne.s32.totalorder %s94, %s95
    %p106 = scmp.eq.s32.totalorder %s16, 0
    %p107 = por %p105, %p106
    %p108 = scmp.ne.s32.totalorder %s94, %s95
    %p109 = scmp.eq.s32.totalorder %s17, 1
    %p110 = por %p108, %p109
    %p112 = scmp.ne.s32.totalorder %s95, %s111
    %p113 = scmp.eq.s32.totalorder %s17, 0
    %p114 = por %p112, %p113
    %s115 = ssub.s32 %s18, %s30
    %s116 = ssub.s32 %s19, %s26
    %s117 = sor.u32 %s115, %s116
    %p118 = scmp.eq.s32.totalorder %s117, 0
    %s120 = sadd.s32 %s119, 1
    %s121 = scalar_select %p118, %s119, %s120
    %p124 = pneg %p118
    %p125 = scmp.eq.s32.totalorder %s11, 1
    %p126 = por %p124, %p125
    %p127 = scmp.ne.s32.totalorder %s119, %s122
    %p128 = scmp.eq.s32.totalorder %s11, 0
    %p129 = por %p127, %p128
    %p130 = scmp.ne.s32.totalorder %s119, %s122
    %p131 = scmp.eq.s32.totalorder %s16, 1
    %p132 = por %p130, %p131
    %p133 = scmp.ne.s32.totalorder %s122, %s123
    %p134 = scmp.eq.s32.totalorder %s16, 0
    %p135 = por %p133, %p134
    %p136 = scmp.ne.s32.totalorder %s122, %s123
    %p137 = scmp.eq.s32.totalorder %s17, 1
    %p138 = por %p136, %p137
    %p140 = scmp.ne.s32.totalorder %s123, %s139
    %p141 = scmp.eq.s32.totalorder %s17, 0
    %p142 = por %p140, %p141
    %s143 = ssub.s32 %s18, %s30
    %s144 = ssub.s32 %s19, %s26
    %s145 = sor.u32 %s143, %s144
    %p146 = scmp.eq.s32.totalorder %s145, 0
    %s148 = sadd.s32 %s147, 1
    %s149 = scalar_select %p146, %s147, %s148
    %p152 = pneg %p146
    %p153 = scmp.eq.s32.totalorder %s11, 1
    %p154 = por %p152, %p153
    %p155 = scmp.ne.s32.totalorder %s147, %s150
    %p156 = scmp.eq.s32.totalorder %s11, 0
    %p157 = por %p155, %p156
    %p158 = scmp.ne.s32.totalorder %s147, %s150
    %p159 = scmp.eq.s32.totalorder %s16, 1
    %p160 = por %p158, %p159
    %p161 = scmp.ne.s32.totalorder %s150, %s151
    %p162 = scmp.eq.s32.totalorder %s16, 0
    %p163 = por %p161, %p162
    %p164 = scmp.ne.s32.totalorder %s150, %s151
    %p165 = scmp.eq.s32.totalorder %s17, 1
    %p166 = por %p164, %p165
    %p168 = scmp.ne.s32.totalorder %s151, %s167
    %p169 = scmp.eq.s32.totalorder %s17, 0
    %p170 = por %p168, %p169
    %p171 = scmp.le.s32.totalorder 1, %s11
    %p172 = scmp.lt.s32.totalorder %s11, 3
    %p173 = pnand %p171, %p172
    %p174 = pneg %p173
    // Predicated region
    $region9: #{feature_extractor_forward.4} parent=5 // pred_check
      _
    $region10: #{feature_extractor_forward.4} parent=5 // pred_check_branch
      %176 = sbr.rel (%p173) target = $region12
    $region11: #{feature_extractor_forward.4} parent=5 // pred_region
      %s177 = ssub.s32 %s11, 1
    $region12: #{feature_extractor_forward.4} parent=5 // pred_fallthru
      _
    %p178 = scmp.lt.s32.totalorder %s11, 2
    // Predicated region
    $region13: #{feature_extractor_forward.4} parent=5 // pred_check
      %p179 = pneg %p178
    $region14: #{feature_extractor_forward.4} parent=5 // pred_check_branch
      %181 = sbr.rel (%p179) target = $region16
    $region15: #{feature_extractor_forward.4} parent=5 // pred_region
      // Predicated region
      $region17: #{feature_extractor_forward.4} parent=15 // pred_check
        %p182 = pneg %p45
      $region18: #{feature_extractor_forward.4} parent=15 // pred_check_branch
        %184 = sbr.rel (%p182) target = $region20
      $region19: #{feature_extractor_forward.4} parent=15 // pred_region
        %p185 = scmp.lt.s32.totalorder %s18, 1
        %s186 = scalar_select %p185, %s18, 1
        %p187 = scmp.lt.s32.totalorder %s19, 0
        %s188 = scalar_select %p187, %s19, 0
        %s189 = smul.addr %s188, 6
        %s190 = smul.addr %s186, 42
        %s191 = sadd.s32 %s189, %s190
        %s192 = smul.addr %s191, 8
        %s193 = scalar_lea.vmem %s0, %s192
      $region20: #{feature_extractor_forward.4} parent=15 // pred_fallthru
        _
    $region16: #{feature_extractor_forward.4} parent=5 // pred_fallthru
      _
    %p194 = scmp.le.s32.totalorder 1, %s11
    %p195 = scmp.lt.s32.totalorder %s11, 3
    %p196 = pnand %p194, %p195
    %p197 = pneg %p196
    // Predicated region
    $region21: #{feature_extractor_forward.4} parent=5 // pred_check
      _
    $region22: #{feature_extractor_forward.4} parent=5 // pred_check_branch
      %199 = sbr.rel (%p196) target = $region24
    $region23: #{feature_extractor_forward.4} parent=5 // pred_region
      %s200 = ssub.s32 %s11, 1
      %p201 = scmp.lt.s32.totalorder %s20, 1
      %s202 = scalar_select %p201, %s20, 1
      %p203 = scmp.lt.s32.totalorder %s21, 0
      %s204 = scalar_select %p203, %s21, 0
      %s205 = smul.addr %s204, 6
      %s206 = smul.addr %s202, 42
      %s207 = sadd.s32 %s205, %s206
      %s208 = smul.addr %s207, 8
      %s209 = scalar_lea.vmem %s0, %s208
      %p210 = pneg %p51
      %p211 = pneg %p48
      %p212 = pneg %p79
      %p213 = pneg %p76
      %p214 = scmp.lt.s32.totalorder %s20, 1
      %s215 = scalar_select %p214, %s20, 1
      %p216 = scmp.lt.s32.totalorder %s21, 0
      %s217 = scalar_select %p216, %s21, 0
      %s218 = smul.addr %s217, 3
      %s219 = smul.addr %s215, 3
      %s220 = sadd.s32 %s218, %s219
      %s221 = scalar_lea.vmem %s1, %s220
      %p222 = pneg %p107
      %p223 = pneg %p104
      %p224 = scmp.lt.s32.totalorder %s20, 1
      %s225 = scalar_select %p224, %s20, 1
      %p226 = scmp.lt.s32.totalorder %s21, 0
      %s227 = scalar_select %p226, %s21, 0
      %s228 = smul.addr %s227, 3
      %s229 = smul.addr %s225, 3
      %s230 = sadd.s32 %s228, %s229
      %s231 = scalar_lea.vmem %s2, %s230
      %p232 = pneg %p135
      %p233 = pneg %p132
      %p234 = scmp.lt.s32.totalorder %s20, 1
      %s235 = scalar_select %p234, %s20, 1
      %p236 = scmp.lt.s32.totalorder %s21, 0
      %s237 = scalar_select %p236, %s21, 0
      %s238 = smul.addr %s237, 3
      %s239 = smul.addr %s235, 3
      %s240 = sadd.s32 %s238, %s239
      %s241 = smul.addr %s240, 4
      %s242 = scalar_lea.vmem %s3, %s241
      %p243 = pneg %p163
      %p244 = pneg %p160
      %p245 = scmp.lt.s32.totalorder %s20, 1
      %s246 = scalar_select %p245, %s20, 1
      %p247 = scmp.lt.s32.totalorder %s21, 0
      %s248 = scalar_select %p247, %s21, 0
      %s249 = smul.addr %s248, 3
      %s250 = smul.addr %s246, 3
      %s251 = sadd.s32 %s249, %s250
      %s252 = smul.addr %s251, 4
      %s253 = scalar_lea.vmem %s4, %s252
      %p254 = scmp.lt.s32.totalorder %s20, 1
      %s255 = scalar_select %p254, %s20, 1
      %p256 = scmp.lt.s32.totalorder %s21, 0
      %s257 = scalar_select %p256, %s21, 0
      %s258 = smul.addr %s257, 6
      %s259 = smul.addr %s255, 42
      %s260 = sadd.s32 %s258, %s259
      %s261 = smul.addr %s260, 8
      %s262 = scalar_lea.vmem %s0, %s261
      %p263 = scmp.lt.s32.totalorder %s20, 1
      %s264 = scalar_select %p263, %s20, 1
      %p265 = scmp.lt.s32.totalorder %s21, 0
      %s266 = scalar_select %p265, %s21, 0
      %s267 = smul.addr %s266, 3
      %s268 = smul.addr %s264, 3
      %s269 = sadd.s32 %s267, %s268
      %s270 = scalar_lea.vmem %s1, %s269
      %p271 = scmp.lt.s32.totalorder %s20, 1
      %s272 = scalar_select %p271, %s20, 1
      %p273 = scmp.lt.s32.totalorder %s21, 0
      %s274 = scalar_select %p273, %s21, 0
      %s275 = smul.addr %s274, 3
      %s276 = smul.addr %s272, 3
      %s277 = sadd.s32 %s275, %s276
      %s278 = scalar_lea.vmem %s2, %s277
      %p279 = scmp.lt.s32.totalorder %s20, 1
      %s280 = scalar_select %p279, %s20, 1
      %p281 = scmp.lt.s32.totalorder %s21, 0
      %s282 = scalar_select %p281, %s21, 0
      %s283 = smul.addr %s282, 3
      %s284 = smul.addr %s280, 3
      %s285 = sadd.s32 %s283, %s284
      %s286 = smul.addr %s285, 4
      %s287 = scalar_lea.vmem %s3, %s286
      %p288 = scmp.lt.s32.totalorder %s20, 1
      %s289 = scalar_select %p288, %s20, 1
      %p290 = scmp.lt.s32.totalorder %s21, 0
      %s291 = scalar_select %p290, %s21, 0
      %s292 = smul.addr %s291, 3
      %s293 = smul.addr %s289, 3
      %s294 = sadd.s32 %s292, %s293
      %s295 = smul.addr %s294, 4
      %s296 = scalar_lea.vmem %s4, %s295
      %v297 = vld [vmem:[%s262] sm:$0xff]
      %v298 = vld [vmem:[%s262 + $0x8] sm:$0xff]
      %v299 = vld [vmem:[%s262 + $0x10] sm:$0xff]
      %v300 = vld [vmem:[%s262 + $0x18] sm:$0xff]
      %v301 = vld [vmem:[%s262 + $0x20] sm:$0xff]
      %v302 = vld [vmem:[%s262 + $0x28] sm:$0xff]
      %v303 = vld [vmem:[%s262 + $0x30] sm:$0xff]
      %v304 = vld [vmem:[%s262 + $0x38] sm:$0xff]
      %v305 = vld [vmem:[%s262 + $0x40] sm:$0xff]
      %v306 = vld [vmem:[%s262 + $0x48] sm:$0xff]
      %v307 = vld [vmem:[%s262 + $0x50] sm:$0xff]
      %v308 = vld [vmem:[%s262 + $0x58] sm:$0xff]
      %v309 = vld [vmem:[%s262 + $0x60] sm:$0xff]
      %v310 = vld [vmem:[%s262 + $0x68] sm:$0xff]
      %v311 = vld [vmem:[%s262 + $0x70] sm:$0xff]
      %v312 = vld [vmem:[%s262 + $0x78] sm:$0xff]
      %v313 = vld [vmem:[%s262 + $0x80] sm:$0xff]
      %v314 = vld [vmem:[%s262 + $0x88] sm:$0xff]
      %v315 = vld [vmem:[%s262 + $0x90] sm:$0xff]
      %v316 = vld [vmem:[%s262 + $0x98] sm:$0xff]
      %v317 = vld [vmem:[%s262 + $0xa0] sm:$0xff]
      %v318 = vld [vmem:[%s262 + $0xa8] sm:$0xff]
      %v319 = vld [vmem:[%s262 + $0xb0] sm:$0xff]
      %v320 = vld [vmem:[%s262 + $0xb8] sm:$0xff]
      %v321 = vld [vmem:[%s262 + $0xc0] sm:$0xff]
      %v322 = vld [vmem:[%s262 + $0xc8] sm:$0xff]
      %v323 = vld [vmem:[%s262 + $0xd0] sm:$0xff]
      %v324 = vld [vmem:[%s262 + $0xd8] sm:$0xff]
      %v325 = vld [vmem:[%s262 + $0xe0] sm:$0xff]
      %v326 = vld [vmem:[%s262 + $0xe8] sm:$0xff]
      %v327 = vld [vmem:[%s262 + $0xf0] sm:$0xff]
      %v328 = vld [vmem:[%s262 + $0xf8] sm:$0xff]
      %v329 = vld [vmem:[%s262 + $0x100] sm:$0xff]
      %v330 = vld [vmem:[%s262 + $0x108] sm:$0xff]
      %v331 = vld [vmem:[%s262 + $0x110] sm:$0xff]
      %v332 = vld [vmem:[%s262 + $0x118] sm:$0xff]
      %v333 = vld [vmem:[%s262 + $0x120] sm:$0xff]
      %v334 = vld [vmem:[%s262 + $0x128] sm:$0xff]
      %v335 = vld [vmem:[%s262 + $0x130] sm:$0xff]
      %v336 = vld [vmem:[%s262 + $0x138] sm:$0xff]
      %v337 = vld [vmem:[%s262 + $0x140] sm:$0xff]
      %v338 = vld [vmem:[%s262 + $0x148] sm:$0xff]
      %v339 = vmul.f32 %v297, %v297
      %v340 = vmul.f32 %v298, %v298
      %v341 = vmul.f32 %v299, %v299
      %v342 = vmul.f32 %v300, %v300
      %v343 = vmul.f32 %v301, %v301
      %v344 = vmul.f32 %v302, %v302
      %v345 = vadd.f32 %v339, %v342
      %v346 = vadd.f32 %v340, %v343
      %v347 = vadd.f32 %v341, %v344
      %v348 = vrsqrt.pop %v345
      %v349 = vmul.f32 %v345, %v348
      %vm350 = vcmp.eq.f32.partialorder %v345, inf
      %v351 = vsel %vm350, %v345, %v349
      %vm352 = vcmp.eq.f32.partialorder %v345, 0.0
      %v353 = vand.u32 %v345, 2147483648
      %v354 = vsel %vm352, %v353, %v351
      %v355 = vrsqrt.pop %v346
      %v356 = vmul.f32 %v346, %v355
      %vm357 = vcmp.eq.f32.partialorder %v346, inf
      %v358 = vsel %vm357, %v346, %v356
      %vm359 = vcmp.eq.f32.partialorder %v346, 0.0
      %v360 = vand.u32 %v346, 2147483648
      %v361 = vsel %vm359, %v360, %v358
      %v362 = vrsqrt.pop %v347
      %v363 = vmul.f32 %v347, %v362
      %vm364 = vcmp.eq.f32.partialorder %v347, inf
      %v365 = vsel %vm364, %v347, %v363
      %vm366 = vcmp.eq.f32.partialorder %v347, 0.0
      %v367 = vand.u32 %v347, 2147483648
      %v368 = vsel %vm366, %v367, %v365
      %v369 = vmax.f32 %v354, 1.1920929e-07
      %v370 = vmax.f32 %v361, 1.1920929e-07
      %v371 = vmax.f32 %v368, 1.1920929e-07
      %v372 = vlog2.pop %v369
      %v373 = vmul.f32 %v372, 0.6931472
      %v374 = vlog2.pop %v370
      %v375 = vmul.f32 %v374, 0.6931472
      %v376 = vlog2.pop %v371
      %v377 = vmul.f32 %v376, 0.6931472
      %s378 = smul.u32 %s21, 8
      %v379 = vlaneseq
      %v380 = vshrl.u32 %v379, 7
      %v381 = vstv %s378
      %v382 = vadd.s32 %v380, %v381
      %vm383 = vcmp.lt.s32.totalorder %v382, 8
      %v384 = vsel %vm383, %v373, 0.0
      %v385 = vsel %vm383, %v375, 0.0
      %v386 = vsel %vm383, %v377, 0.0
      %v387 = vrot.slane %v384, 4
      %v388 = vadd.f32 %v384, %v387
      %v389 = vrot.slane %v388, 2
      %v390 = vadd.f32 %v388, %v389
      %v391 = vrot.slane %v390, 1
      %v392 = vadd.f32 %v390, %v391
      %v393 = vrot.slane %v385, 4
      %v394 = vadd.f32 %v385, %v393
      %v395 = vrot.slane %v394, 2
      %v396 = vadd.f32 %v394, %v395
      %v397 = vrot.slane %v396, 1
      %v398 = vadd.f32 %v396, %v397
      %v399 = vrot.slane %v386, 4
      %v400 = vadd.f32 %v386, %v399
      %v401 = vrot.slane %v400, 2
      %v402 = vadd.f32 %v400, %v401
      %v403 = vrot.slane %v402, 1
      %v404 = vadd.f32 %v402, %v403
      %v408 = vcombine.low %v392, %v398
      %v410 = vunpack.c.l.s4 1966171168
      %v411 = vunpack.c.0.s8 %v410
      %v412 = vlaneseq
      %v413 = vshrl.u32 %v412, 7
      %v414 = vsub.s32 %v411, %v413
      %v415 = vrot.slane %v408, %v414
      %v417 = vunpack.c.l.s4 1966171168
      %v418 = vunpack.c.0.s8 %v417
      %v419 = vlaneseq
      %v420 = vshrl.u32 %v419, 7
      %v421 = vsub.s32 %v418, %v420
      %v422 = vrot.slane %v404, %v421
      %v423 = vcombine.low %v415, %v422
      %v425 = vunpack.c.l.s4 1966171168
      %v426 = vunpack.c.0.s8 %v425
      %v427 = vlaneseq
      %v428 = vshrl.u32 %v427, 7
      %v429 = vsub.s32 %v426, %v428
      %v430 = vrot.slane %v423, %v429
      %v432 = vlaneseq
      %vm433 = vcmp.ge.s32.totalorder %v432, 0
      %vm434 = vcmp.lt.s32.totalorder %v432, 384
      %vm435 = vmand %vm433, %vm434
      %436 = vst.msk [vmem:[%s270] sm:$0x7] %vm435, %v430
      %v437 = vmul.f32 %v384, %v384
      %v438 = vmul.f32 %v385, %v385
      %v439 = vmul.f32 %v386, %v386
      %v440 = vrot.slane %v437, 4
      %v441 = vadd.f32 %v437, %v440
      %v442 = vrot.slane %v441, 2
      %v443 = vadd.f32 %v441, %v442
      %v444 = vrot.slane %v443, 1
      %v445 = vadd.f32 %v443, %v444
      %v446 = vrot.slane %v438, 4
      %v447 = vadd.f32 %v438, %v446
      %v448 = vrot.slane %v447, 2
      %v449 = vadd.f32 %v447, %v448
      %v450 = vrot.slane %v449, 1
      %v451 = vadd.f32 %v449, %v450
      %v452 = vrot.slane %v439, 4
      %v453 = vadd.f32 %v439, %v452
      %v454 = vrot.slane %v453, 2
      %v455 = vadd.f32 %v453, %v454
      %v456 = vrot.slane %v455, 1
      %v457 = vadd.f32 %v455, %v456
      %v461 = vcombine.low %v445, %v451
      %v463 = vunpack.c.l.s4 1966171168
      %v464 = vunpack.c.0.s8 %v463
      %v465 = vlaneseq
      %v466 = vshrl.u32 %v465, 7
      %v467 = vsub.s32 %v464, %v466
      %v468 = vrot.slane %v461, %v467
      %v470 = vunpack.c.l.s4 1966171168
      %v471 = vunpack.c.0.s8 %v470
      %v472 = vlaneseq
      %v473 = vshrl.u32 %v472, 7
      %v474 = vsub.s32 %v471, %v473
      %v475 = vrot.slane %v457, %v474
      %v476 = vcombine.low %v468, %v475
      %v478 = vunpack.c.l.s4 1966171168
      %v479 = vunpack.c.0.s8 %v478
      %v480 = vlaneseq
      %v481 = vshrl.u32 %v480, 7
      %v482 = vsub.s32 %v479, %v481
      %v483 = vrot.slane %v476, %v482
      %485 = vst.msk [vmem:[%s278] sm:$0x7] %vm435, %v483
      %v486 = vmul.f32 %v303, %v303
      %v487 = vmul.f32 %v304, %v304
      %v488 = vmul.f32 %v305, %v305
      %v489 = vmul.f32 %v309, %v309
      %v490 = vmul.f32 %v310, %v310
      %v491 = vmul.f32 %v311, %v311
      %v492 = vmul.f32 %v315, %v315
      %v493 = vmul.f32 %v316, %v316
      %v494 = vmul.f32 %v317, %v317
      %v495 = vmul.f32 %v306, %v306
      %v496 = vmul.f32 %v307, %v307
      %v497 = vmul.f32 %v308, %v308
      %v498 = vmul.f32 %v312, %v312
      %v499 = vmul.f32 %v313, %v313
      %v500 = vmul.f32 %v314, %v314
      %v501 = vmul.f32 %v318, %v318
      %v502 = vmul.f32 %v319, %v319
      %v503 = vmul.f32 %v320, %v320
      %v504 = vadd.f32 %v486, %v495
      %v505 = vadd.f32 %v487, %v496
      %v506 = vadd.f32 %v488, %v497
      %v507 = vadd.f32 %v489, %v498
      %v508 = vadd.f32 %v490, %v499
      %v509 = vadd.f32 %v491, %v500
      %v510 = vadd.f32 %v492, %v501
      %v511 = vadd.f32 %v493, %v502
      %v512 = vadd.f32 %v494, %v503
      %v513 = vmul.f32 %v321, %v321
      %v514 = vmul.f32 %v322, %v322
      %v515 = vmul.f32 %v323, %v323
      %v516 = vmul.f32 %v327, %v327
      %v517 = vmul.f32 %v328, %v328
      %v518 = vmul.f32 %v329, %v329
      %v519 = vmul.f32 %v333, %v333
      %v520 = vmul.f32 %v334, %v334
      %v521 = vmul.f32 %v335, %v335
      %v522 = vmul.f32 %v324, %v324
      %v523 = vmul.f32 %v325, %v325
      %v524 = vmul.f32 %v326, %v326
      %v525 = vmul.f32 %v330, %v330
      %v526 = vmul.f32 %v331, %v331
      %v527 = vmul.f32 %v332, %v332
      %v528 = vmul.f32 %v336, %v336
      %v529 = vmul.f32 %v337, %v337
      %v530 = vmul.f32 %v338, %v338
      %v531 = vadd.f32 %v513, %v522
      %v532 = vadd.f32 %v514, %v523
      %v533 = vadd.f32 %v515, %v524
      %v534 = vadd.f32 %v516, %v525
      %v535 = vadd.f32 %v517, %v526
      %v536 = vadd.f32 %v518, %v527
      %v537 = vadd.f32 %v519, %v528
      %v538 = vadd.f32 %v520, %v529
      %v539 = vadd.f32 %v521, %v530
      %v540 = vmul.f32 %v504, %v531
      %v541 = vmul.f32 %v505, %v532
      %v542 = vmul.f32 %v506, %v533
      %v543 = vmul.f32 %v507, %v534
      %v544 = vmul.f32 %v508, %v535
      %v545 = vmul.f32 %v509, %v536
      %v546 = vmul.f32 %v510, %v537
      %v547 = vmul.f32 %v511, %v538
      %v548 = vmul.f32 %v512, %v539
      %v549 = vadd.f32 %v540, 1.4210855e-14
      %v550 = vadd.f32 %v541, 1.4210855e-14
      %v551 = vadd.f32 %v542, 1.4210855e-14
      %v552 = vadd.f32 %v543, 1.4210855e-14
      %v553 = vadd.f32 %v544, 1.4210855e-14
      %v554 = vadd.f32 %v545, 1.4210855e-14
      %v555 = vadd.f32 %v546, 1.4210855e-14
      %v556 = vadd.f32 %v547, 1.4210855e-14
      %v557 = vadd.f32 %v548, 1.4210855e-14
      %v558 = vrsqrt.pop %v549
      %v559 = vrsqrt.pop %v550
      %v560 = vrsqrt.pop %v551
      %v561 = vrsqrt.pop %v552
      %v562 = vrsqrt.pop %v553
      %v563 = vrsqrt.pop %v554
      %v564 = vrsqrt.pop %v555
      %v565 = vrsqrt.pop %v556
      %v566 = vrsqrt.pop %v557
      %v567 = vmul.f32 %v303, %v321
      %v568 = vmul.f32 %v304, %v322
      %v569 = vmul.f32 %v305, %v323
      %v570 = vmul.f32 %v309, %v327
      %v571 = vmul.f32 %v310, %v328
      %v572 = vmul.f32 %v311, %v329
      %v573 = vmul.f32 %v315, %v333
      %v574 = vmul.f32 %v316, %v334
      %v575 = vmul.f32 %v317, %v335
      %v576 = vmul.f32 %v306, %v324
      %v577 = vmul.f32 %v307, %v325
      %v578 = vmul.f32 %v308, %v326
      %v579 = vmul.f32 %v312, %v330
      %v580 = vmul.f32 %v313, %v331
      %v581 = vmul.f32 %v314, %v332
      %v582 = vmul.f32 %v318, %v336
      %v583 = vmul.f32 %v319, %v337
      %v584 = vmul.f32 %v320, %v338
      %v585 = vadd.f32 %v567, %v576
      %v586 = vadd.f32 %v568, %v577
      %v587 = vadd.f32 %v569, %v578
      %v588 = vadd.f32 %v570, %v579
      %v589 = vadd.f32 %v571, %v580
      %v590 = vadd.f32 %v572, %v581
      %v591 = vadd.f32 %v573, %v582
      %v592 = vadd.f32 %v574, %v583
      %v593 = vadd.f32 %v575, %v584
      %v594 = vmul.f32 %v585, %v558
      %v595 = vmul.f32 %v586, %v559
      %v596 = vmul.f32 %v587, %v560
      %v597 = vmul.f32 %v588, %v561
      %v598 = vmul.f32 %v589, %v562
      %v599 = vmul.f32 %v590, %v563
      %v600 = vmul.f32 %v591, %v564
      %v601 = vmul.f32 %v592, %v565
      %v602 = vmul.f32 %v593, %v566
      %v603 = vmul.f32 %v306, %v321
      %v604 = vmul.f32 %v307, %v322
      %v605 = vmul.f32 %v308, %v323
      %v606 = vmul.f32 %v312, %v327
      %v607 = vmul.f32 %v313, %v328
      %v608 = vmul.f32 %v314, %v329
      %v609 = vmul.f32 %v318, %v333
      %v610 = vmul.f32 %v319, %v334
      %v611 = vmul.f32 %v320, %v335
      %v612 = vmul.f32 %v303, %v324
      %v613 = vmul.f32 %v304, %v325
      %v614 = vmul.f32 %v305, %v326
      %v615 = vmul.f32 %v309, %v330
      %v616 = vmul.f32 %v310, %v331
      %v617 = vmul.f32 %v311, %v332
      %v618 = vmul.f32 %v315, %v336
      %v619 = vmul.f32 %v316, %v337
      %v620 = vmul.f32 %v317, %v338
      %v621 = vsub.f32 %v603, %v612
      %v622 = vsub.f32 %v604, %v613
      %v623 = vsub.f32 %v605, %v614
      %v624 = vsub.f32 %v606, %v615
      %v625 = vsub.f32 %v607, %v616
      %v626 = vsub.f32 %v608, %v617
      %v627 = vsub.f32 %v609, %v618
      %v628 = vsub.f32 %v610, %v619
      %v629 = vsub.f32 %v611, %v620
      %v630 = vmul.f32 %v621, %v558
      %v631 = vmul.f32 %v622, %v559
      %v632 = vmul.f32 %v623, %v560
      %v633 = vmul.f32 %v624, %v561
      %v634 = vmul.f32 %v625, %v562
      %v635 = vmul.f32 %v626, %v563
      %v636 = vmul.f32 %v627, %v564
      %v637 = vmul.f32 %v628, %v565
      %v638 = vmul.f32 %v629, %v566
      %v639 = vrot.slane %v594, 4
      %v640 = vadd.f32 %v594, %v639
      %v641 = vrot.slane %v640, 2
      %v642 = vadd.f32 %v640, %v641
      %v643 = vrot.slane %v642, 1
      %v644 = vadd.f32 %v642, %v643
      %v645 = vrot.slane %v595, 4
      %v646 = vadd.f32 %v595, %v645
      %v647 = vrot.slane %v646, 2
      %v648 = vadd.f32 %v646, %v647
      %v649 = vrot.slane %v648, 1
      %v650 = vadd.f32 %v648, %v649
      %v651 = vrot.slane %v596, 4
      %v652 = vadd.f32 %v596, %v651
      %v653 = vrot.slane %v652, 2
      %v654 = vadd.f32 %v652, %v653
      %v655 = vrot.slane %v654, 1
      %v656 = vadd.f32 %v654, %v655
      %v657 = vrot.slane %v597, 4
      %v658 = vadd.f32 %v597, %v657
      %v659 = vrot.slane %v658, 2
      %v660 = vadd.f32 %v658, %v659
      %v661 = vrot.slane %v660, 1
      %v662 = vadd.f32 %v660, %v661
      %v663 = vrot.slane %v598, 4
      %v664 = vadd.f32 %v598, %v663
      %v665 = vrot.slane %v664, 2
      %v666 = vadd.f32 %v664, %v665
      %v667 = vrot.slane %v666, 1
      %v668 = vadd.f32 %v666, %v667
      %v669 = vrot.slane %v599, 4
      %v670 = vadd.f32 %v599, %v669
      %v671 = vrot.slane %v670, 2
      %v672 = vadd.f32 %v670, %v671
      %v673 = vrot.slane %v672, 1
      %v674 = vadd.f32 %v672, %v673
      %v675 = vrot.slane %v600, 4
      %v676 = vadd.f32 %v600, %v675
      %v677 = vrot.slane %v676, 2
      %v678 = vadd.f32 %v676, %v677
      %v679 = vrot.slane %v678, 1
      %v680 = vadd.f32 %v678, %v679
      %v681 = vrot.slane %v601, 4
      %v682 = vadd.f32 %v601, %v681
      %v683 = vrot.slane %v682, 2
      %v684 = vadd.f32 %v682, %v683
      %v685 = vrot.slane %v684, 1
      %v686 = vadd.f32 %v684, %v685
      %v687 = vrot.slane %v602, 4
      %v688 = vadd.f32 %v602, %v687
      %v689 = vrot.slane %v688, 2
      %v690 = vadd.f32 %v688, %v689
      %v691 = vrot.slane %v690, 1
      %v692 = vadd.f32 %v690, %v691
      %v702 = vcombine.low %v644, %v650
      %v703 = vcombine.low %v662, %v668
      %v704 = vcombine.low %v680, %v686
      %v705 = vrot.slane %v703, 7
      %vm706 = vcmask 1041409
      %v707 = vsel %vm706, %v705, %v702
      %vm708 = vcmask 1045509
      %v709 = vsel %vm708, %v705, %v707
      %v710 = vrot.slane %v704, 6
      %vm711 = vcmask 1042434
      %v712 = vsel %vm711, %v710, %v709
      %vm713 = vcmask 1046534
      %v714 = vsel %vm713, %v710, %v712
      %v715 = vrot.slane %v674, 7
      %v716 = vsel %vm706, %v715, %v656
      %v717 = vsel %vm708, %v715, %v716
      %v718 = vrot.slane %v692, 6
      %v719 = vsel %vm711, %v718, %v717
      %v720 = vsel %vm713, %v718, %v719
      %723 = vst [vmem:[%s287] sm:$0x77] %v714
      %724 = vst [vmem:[%s287 + $0x8] sm:$0x7] %v720
      %v725 = vrot.slane %v630, 4
      %v726 = vadd.f32 %v630, %v725
      %v727 = vrot.slane %v726, 2
      %v728 = vadd.f32 %v726, %v727
      %v729 = vrot.slane %v728, 1
      %v730 = vadd.f32 %v728, %v729
      %v731 = vrot.slane %v631, 4
      %v732 = vadd.f32 %v631, %v731
      %v733 = vrot.slane %v732, 2
      %v734 = vadd.f32 %v732, %v733
      %v735 = vrot.slane %v734, 1
      %v736 = vadd.f32 %v734, %v735
      %v737 = vrot.slane %v632, 4
      %v738 = vadd.f32 %v632, %v737
      %v739 = vrot.slane %v738, 2
      %v740 = vadd.f32 %v738, %v739
      %v741 = vrot.slane %v740, 1
      %v742 = vadd.f32 %v740, %v741
      %v743 = vrot.slane %v633, 4
      %v744 = vadd.f32 %v633, %v743
      %v745 = vrot.slane %v744, 2
      %v746 = vadd.f32 %v744, %v745
      %v747 = vrot.slane %v746, 1
      %v748 = vadd.f32 %v746, %v747
      %v749 = vrot.slane %v634, 4
      %v750 = vadd.f32 %v634, %v749
      %v751 = vrot.slane %v750, 2
      %v752 = vadd.f32 %v750, %v751
      %v753 = vrot.slane %v752, 1
      %v754 = vadd.f32 %v752, %v753
      %v755 = vrot.slane %v635, 4
      %v756 = vadd.f32 %v635, %v755
      %v757 = vrot.slane %v756, 2
      %v758 = vadd.f32 %v756, %v757
      %v759 = vrot.slane %v758, 1
      %v760 = vadd.f32 %v758, %v759
      %v761 = vrot.slane %v636, 4
      %v762 = vadd.f32 %v636, %v761
      %v763 = vrot.slane %v762, 2
      %v764 = vadd.f32 %v762, %v763
      %v765 = vrot.slane %v764, 1
      %v766 = vadd.f32 %v764, %v765
      %v767 = vrot.slane %v637, 4
      %v768 = vadd.f32 %v637, %v767
      %v769 = vrot.slane %v768, 2
      %v770 = vadd.f32 %v768, %v769
      %v771 = vrot.slane %v770, 1
      %v772 = vadd.f32 %v770, %v771
      %v773 = vrot.slane %v638, 4
      %v774 = vadd.f32 %v638, %v773
      %v775 = vrot.slane %v774, 2
      %v776 = vadd.f32 %v774, %v775
      %v777 = vrot.slane %v776, 1
      %v778 = vadd.f32 %v776, %v777
      %v788 = vcombine.low %v730, %v736
      %v789 = vcombine.low %v748, %v754
      %v790 = vcombine.low %v766, %v772
      %v791 = vrot.slane %v789, 7
      %v792 = vsel %vm706, %v791, %v788
      %v793 = vsel %vm708, %v791, %v792
      %v794 = vrot.slane %v790, 6
      %v795 = vsel %vm711, %v794, %v793
      %v796 = vsel %vm713, %v794, %v795
      %v797 = vrot.slane %v760, 7
      %v798 = vsel %vm706, %v797, %v742
      %v799 = vsel %vm708, %v797, %v798
      %v800 = vrot.slane %v778, 6
      %v801 = vsel %vm711, %v800, %v799
      %v802 = vsel %vm713, %v800, %v801
      %805 = vst [vmem:[%s296] sm:$0x77] %v796
      %806 = vst [vmem:[%s296 + $0x8] sm:$0x7] %v802
      %p807 = scmp.lt.s32.totalorder %s20, 1
      %s808 = scalar_select %p807, %s20, 1
      %p809 = scmp.lt.s32.totalorder %s21, 0
      %s810 = scalar_select %p809, %s21, 0
      %s811 = smul.addr %s810, 3
      %s812 = smul.addr %s808, 3
      %s813 = sadd.s32 %s811, %s812
      %s814 = scalar_lea.vmem %s1, %s813
      %p815 = scmp.lt.s32.totalorder %s20, 1
      %s816 = scalar_select %p815, %s20, 1
      %p817 = scmp.lt.s32.totalorder %s21, 0
      %s818 = scalar_select %p817, %s21, 0
      %s819 = smul.addr %s818, 3
      %s820 = smul.addr %s816, 3
      %s821 = sadd.s32 %s819, %s820
      %s822 = scalar_lea.vmem %s2, %s821
      %p823 = scmp.lt.s32.totalorder %s20, 1
      %s824 = scalar_select %p823, %s20, 1
      %p825 = scmp.lt.s32.totalorder %s21, 0
      %s826 = scalar_select %p825, %s21, 0
      %s827 = smul.addr %s826, 3
      %s828 = smul.addr %s824, 3
      %s829 = sadd.s32 %s827, %s828
      %s830 = smul.addr %s829, 4
      %s831 = scalar_lea.vmem %s3, %s830
      %p832 = scmp.lt.s32.totalorder %s20, 1
      %s833 = scalar_select %p832, %s20, 1
      %p834 = scmp.lt.s32.totalorder %s21, 0
      %s835 = scalar_select %p834, %s21, 0
      %s836 = smul.addr %s835, 3
      %s837 = smul.addr %s833, 3
      %s838 = sadd.s32 %s836, %s837
      %s839 = smul.addr %s838, 4
      %s840 = scalar_lea.vmem %s4, %s839
      // Predicated region
      $region25: #{feature_extractor_forward.4} parent=23 // pred_check
        %p841 = pneg %p76
      $region26: #{feature_extractor_forward.4} parent=23 // pred_check_branch
        %843 = sbr.rel (%p841) target = $region28
      $region27: #{feature_extractor_forward.4} parent=23 // pred_region
        _
      $region28: #{feature_extractor_forward.4} parent=23 // pred_fallthru
        _
      // Predicated region
      $region29: #{feature_extractor_forward.4} parent=23 // pred_check
        %p844 = pneg %p104
      $region30: #{feature_extractor_forward.4} parent=23 // pred_check_branch
        %846 = sbr.rel (%p844) target = $region32
      $region31: #{feature_extractor_forward.4} parent=23 // pred_region
        _
      $region32: #{feature_extractor_forward.4} parent=23 // pred_fallthru
        _
      // Predicated region
      $region33: #{feature_extractor_forward.4} parent=23 // pred_check
        %p847 = pneg %p132
      $region34: #{feature_extractor_forward.4} parent=23 // pred_check_branch
        %849 = sbr.rel (%p847) target = $region36
      $region35: #{feature_extractor_forward.4} parent=23 // pred_region
        _
      $region36: #{feature_extractor_forward.4} parent=23 // pred_fallthru
        _
      // Predicated region
      $region37: #{feature_extractor_forward.4} parent=23 // pred_check
        %p850 = pneg %p160
      $region38: #{feature_extractor_forward.4} parent=23 // pred_check_branch
        %852 = sbr.rel (%p850) target = $region40
      $region39: #{feature_extractor_forward.4} parent=23 // pred_region
        _
      $region40: #{feature_extractor_forward.4} parent=23 // pred_fallthru
        _
    $region24: #{feature_extractor_forward.4} parent=5 // pred_fallthru
      _
    %p853 = scmp.le.s32.totalorder 2, %s11
    // Predicated region
    $region41: #{feature_extractor_forward.4} parent=5 // pred_check
      %p854 = pneg %p853
    $region42: #{feature_extractor_forward.4} parent=5 // pred_check_branch
      %856 = sbr.rel (%p854) target = $region44
    $region43: #{feature_extractor_forward.4} parent=5 // pred_region
      %s857 = ssub.s32 %s11, 2
      // Predicated region
      $region45: #{feature_extractor_forward.4} parent=43 // pred_check
        %p858 = pneg %p82
      $region46: #{feature_extractor_forward.4} parent=43 // pred_check_branch
        %860 = sbr.rel (%p858) target = $region48
      $region47: #{feature_extractor_forward.4} parent=43 // pred_region
        %p861 = scmp.lt.s32.totalorder %s22, 1
        %s862 = scalar_select %p861, %s22, 1
        %p863 = scmp.lt.s32.totalorder %s23, 0
        %s864 = scalar_select %p863, %s23, 0
        %s865 = smul.addr %s864, 3
        %s866 = smul.addr %s862, 3
        %s867 = sadd.s32 %s865, %s866
        %s868 = scalar_lea.vmem %s1, %s867
      $region48: #{feature_extractor_forward.4} parent=43 // pred_fallthru
        _
      // Predicated region
      $region49: #{feature_extractor_forward.4} parent=43 // pred_check
        %p869 = pneg %p110
      $region50: #{feature_extractor_forward.4} parent=43 // pred_check_branch
        %871 = sbr.rel (%p869) target = $region52
      $region51: #{feature_extractor_forward.4} parent=43 // pred_region
        %p872 = scmp.lt.s32.totalorder %s22, 1
        %s873 = scalar_select %p872, %s22, 1
        %p874 = scmp.lt.s32.totalorder %s23, 0
        %s875 = scalar_select %p874, %s23, 0
        %s876 = smul.addr %s875, 3
        %s877 = smul.addr %s873, 3
        %s878 = sadd.s32 %s876, %s877
        %s879 = scalar_lea.vmem %s2, %s878
      $region52: #{feature_extractor_forward.4} parent=43 // pred_fallthru
        _
      // Predicated region
      $region53: #{feature_extractor_forward.4} parent=43 // pred_check
        %p880 = pneg %p138
      $region54: #{feature_extractor_forward.4} parent=43 // pred_check_branch
        %882 = sbr.rel (%p880) target = $region56
      $region55: #{feature_extractor_forward.4} parent=43 // pred_region
        %p883 = scmp.lt.s32.totalorder %s22, 1
        %s884 = scalar_select %p883, %s22, 1
        %p885 = scmp.lt.s32.totalorder %s23, 0
        %s886 = scalar_select %p885, %s23, 0
        %s887 = smul.addr %s886, 3
        %s888 = smul.addr %s884, 3
        %s889 = sadd.s32 %s887, %s888
        %s890 = smul.addr %s889, 4
        %s891 = scalar_lea.vmem %s3, %s890
      $region56: #{feature_extractor_forward.4} parent=43 // pred_fallthru
        _
      // Predicated region
      $region57: #{feature_extractor_forward.4} parent=43 // pred_check
        %p892 = pneg %p166
      $region58: #{feature_extractor_forward.4} parent=43 // pred_check_branch
        %894 = sbr.rel (%p892) target = $region60
      $region59: #{feature_extractor_forward.4} parent=43 // pred_region
        %p895 = scmp.lt.s32.totalorder %s22, 1
        %s896 = scalar_select %p895, %s22, 1
        %p897 = scmp.lt.s32.totalorder %s23, 0
        %s898 = scalar_select %p897, %s23, 0
        %s899 = smul.addr %s898, 3
        %s900 = smul.addr %s896, 3
        %s901 = sadd.s32 %s899, %s900
        %s902 = smul.addr %s901, 4
        %s903 = scalar_lea.vmem %s4, %s902
      $region60: #{feature_extractor_forward.4} parent=43 // pred_fallthru
        _
    $region44: #{feature_extractor_forward.4} parent=5 // pred_fallthru
      _
  $region6: #{feature_extractor_forward.4} parent=0 // loop_footer
    %s15 = sadd.s32 1, %s11
  $region7: #{feature_extractor_forward.4} parent=0 // loop_footer_branch
    %10 = sbr.rel target = $region3
  $region8: #{feature_extractor_forward.4} parent=0 // loop_exit
    _

// kernel: feature_extractor_forward.3
$region0: #{feature_extractor_forward.3}
  #allocation0 [shape = 'u32[]', space=smem, size = 0x4, offset = 0x4, fixed_abs, tag = 'smem constant byte address 0x4 - core index']
  #allocation1 [shape = 'u32[144,128]{1,0:T(1,128)}', space=vmem, size = 0x12000, scoped, tag = 'internal scratch']
  %s0 = inlined_call_operand.vmem [shape: f32[112,512], index: 0, kind: input, shape index: {}]
  %s1 = inlined_call_operand.vmem [shape: f32[512,768], index: 1, kind: input, shape index: {}]
  %s2 = inlined_call_operand.vmem [shape: f32[112,768], index: 2, kind: output, shape index: {}]
  %s3 = sld [smem:[#allocation0]]
  $region41: #{feature_extractor_forward.3} parent=0
    _
  %s5 = ssub.s32 1, %s3
  %s6 = scalar_select 0, %s5, %s3
  loop: start=0, step=1, limit=9
  $region2: #{feature_extractor_forward.3} parent=0 // loop_pre_header
    _
  $region3: #{feature_extractor_forward.3} parent=0 // loop_header
    %s8 = sphi 0, %s12
    %p9 = scmp.ge.s32.totalorder %s8, 9
    %s18 = sphi 0, %s20
    %s21 = sphi 0, %s18
    %s22 = sphi 0, %s21
    %s38 = sphi 0, %s22
    %s42 = sphi 0, %s42
    %s44 = sphi 0, %s42
    %s45 = sphi 0, %s44
    %s59 = sphi 0, %s45
    %s65 = sphi 0, %s67
    %s68 = sphi 0, %s65
    %s69 = sphi 0, %s68
    %s85 = sphi 0, %s69
  $region4: #{feature_extractor_forward.3} parent=0 // loop_header_branch
    %11 = sbr.rel (%p9) target = $region8
  $region5: #{feature_extractor_forward.3} parent=0 // loop_body
    %s13 = ssub.s32 %s8, 1
    %s14 = ssub.s32 %s8, 2
    %s15 = sadd.s32 %s8, 1
    %s16 = ssub.s32 %s8, %s15
    %p17 = scmp.eq.s32.totalorder %s16, 0
    %s19 = sadd.s32 %s18, 1
    %s20 = scalar_select %p17, %s18, %s19
    %p23 = pneg %p17
    %p24 = scmp.eq.s32.totalorder %s8, 6
    %p25 = por %p23, %p24
    %p26 = scmp.ne.s32.totalorder %s18, %s21
    %p27 = scmp.eq.s32.totalorder %s8, 0
    %p28 = por %p26, %p27
    %p29 = scmp.ne.s32.totalorder %s18, %s21
    %p30 = scmp.eq.s32.totalorder %s13, 6
    %p31 = por %p29, %p30
    %p32 = scmp.ne.s32.totalorder %s21, %s22
    %p33 = scmp.eq.s32.totalorder %s13, 0
    %p34 = por %p32, %p33
    %p35 = scmp.ne.s32.totalorder %s21, %s22
    %p36 = scmp.eq.s32.totalorder %s14, 6
    %p37 = por %p35, %p36
    %p39 = scmp.ne.s32.totalorder %s22, %s38
    %p40 = scmp.eq.s32.totalorder %s14, 0
    %p41 = por %p39, %p40
    %s43 = sadd.s32 %s42, 1
    %p46 = scmp.eq.s32.totalorder %s8, 6
    %p47 = scmp.ne.s32.totalorder %s42, %s44
    %p48 = scmp.eq.s32.totalorder %s8, 0
    %p49 = por %p47, %p48
    %p50 = scmp.ne.s32.totalorder %s42, %s44
    %p51 = scmp.eq.s32.totalorder %s13, 6
    %p52 = por %p50, %p51
    %p53 = scmp.ne.s32.totalorder %s44, %s45
    %p54 = scmp.eq.s32.totalorder %s13, 0
    %p55 = por %p53, %p54
    %p56 = scmp.ne.s32.totalorder %s44, %s45
    %p57 = scmp.eq.s32.totalorder %s14, 6
    %p58 = por %p56, %p57
    %p60 = scmp.ne.s32.totalorder %s45, %s59
    %p61 = scmp.eq.s32.totalorder %s14, 0
    %p62 = por %p60, %p61
    %s63 = ssub.s32 %s8, %s15
    %p64 = scmp.eq.s32.totalorder %s63, 0
    %s66 = sadd.s32 %s65, 1
    %s67 = scalar_select %p64, %s65, %s66
    %p70 = pneg %p64
    %p71 = scmp.eq.s32.totalorder %s8, 6
    %p72 = por %p70, %p71
    %p73 = scmp.ne.s32.totalorder %s65, %s68
    %p74 = scmp.eq.s32.totalorder %s8, 0
    %p75 = por %p73, %p74
    %p76 = scmp.ne.s32.totalorder %s65, %s68
    %p77 = scmp.eq.s32.totalorder %s13, 6
    %p78 = por %p76, %p77
    %p79 = scmp.ne.s32.totalorder %s68, %s69
    %p80 = scmp.eq.s32.totalorder %s13, 0
    %p81 = por %p79, %p80
    %p82 = scmp.ne.s32.totalorder %s68, %s69
    %p83 = scmp.eq.s32.totalorder %s14, 6
    %p84 = por %p82, %p83
    %p86 = scmp.ne.s32.totalorder %s69, %s85
    %p87 = scmp.eq.s32.totalorder %s14, 0
    %p88 = por %p86, %p87
    %p89 = scmp.le.s32.totalorder 1, %s8
    %p90 = scmp.lt.s32.totalorder %s8, 8
    %p91 = pnand %p89, %p90
    %p92 = pneg %p91
    // Predicated region
    $region9: #{feature_extractor_forward.3} parent=5 // pred_check
      _
    $region10: #{feature_extractor_forward.3} parent=5 // pred_check_branch
      %94 = sbr.rel (%p91) target = $region12
    $region11: #{feature_extractor_forward.3} parent=5 // pred_region
      %s95 = ssub.s32 %s8, 1
      // Predicated region
      $region13: #{feature_extractor_forward.3} parent=11 // pred_check
        %p96 = pneg %p55
      $region14: #{feature_extractor_forward.3} parent=11 // pred_check_branch
        %98 = sbr.rel (%p96) target = $region16
      $region15: #{feature_extractor_forward.3} parent=11 // pred_region
        _
      $region16: #{feature_extractor_forward.3} parent=11 // pred_fallthru
        _
    $region12: #{feature_extractor_forward.3} parent=5 // pred_fallthru
      _
    %p99 = scmp.lt.s32.totalorder %s8, 7
    // Predicated region
    $region17: #{feature_extractor_forward.3} parent=5 // pred_check
      %p100 = pneg %p99
    $region18: #{feature_extractor_forward.3} parent=5 // pred_check_branch
      %102 = sbr.rel (%p100) target = $region20
    $region19: #{feature_extractor_forward.3} parent=5 // pred_region
      // Predicated region
      $region21: #{feature_extractor_forward.3} parent=19 // pred_check
        %p103 = pneg %p28
      $region22: #{feature_extractor_forward.3} parent=19 // pred_check_branch
        %105 = sbr.rel (%p103) target = $region24
      $region23: #{feature_extractor_forward.3} parent=19 // pred_region
        %s106 = smul.u32 2, %s8
        %p107 = scmp.lt.s32.totalorder %s106, 13
        %s108 = scalar_select %p107, %s106, 13
        %s109 = smul.addr %s108, 4
        %s110 = smul.addr %s109, 8
        %s111 = scalar_lea.vmem %s0, %s110
        %s112 = smul.u32 2, %s8
      $region24: #{feature_extractor_forward.3} parent=19 // pred_fallthru
        _
    $region20: #{feature_extractor_forward.3} parent=5 // pred_fallthru
      _
    %p113 = scmp.le.s32.totalorder 1, %s8
    %p114 = scmp.lt.s32.totalorder %s8, 8
    %p115 = pnand %p113, %p114
    %p116 = pneg %p115
    // Predicated region
    $region25: #{feature_extractor_forward.3} parent=5 // pred_check
      _
    $region26: #{feature_extractor_forward.3} parent=5 // pred_check_branch
      %118 = sbr.rel (%p115) target = $region28
    $region27: #{feature_extractor_forward.3} parent=5 // pred_region
      %s119 = ssub.s32 %s8, 1
      %s120 = smul.u32 2, %s13
      %p121 = scmp.lt.s32.totalorder %s120, 13
      %s122 = scalar_select %p121, %s120, 13
      %s123 = smul.addr %s122, 4
      %s124 = smul.addr %s123, 8
      %s125 = scalar_lea.vmem %s0, %s124
      %p126 = pneg %p34
      %p127 = pneg %p31
      %p128 = pneg %p55
      %p129 = pneg %p52
      %p130 = pneg %p81
      %p131 = pneg %p78
      %s132 = smul.u32 2, %s13
      %p133 = scmp.lt.s32.totalorder %s132, 13
      %s134 = scalar_select %p133, %s132, 13
      %s135 = smul.addr %s134, 6
      %s136 = smul.addr %s135, 8
      %s137 = scalar_lea.vmem %s2, %s136
      %s138 = smul.u32 2, %s13
      %p139 = scmp.lt.s32.totalorder %s138, 13
      %s140 = scalar_select %p139, %s138, 13
      %s141 = smul.addr %s140, 4
      %s142 = smul.addr %s141, 8
      %s143 = scalar_lea.vmem %s0, %s142
      %s144 = smul.u32 2, %s13
      %s145 = smul.u32 2, %s13
      %p146 = scmp.lt.s32.totalorder %s145, 13
      %s147 = scalar_select %p146, %s145, 13
      %s148 = smul.addr %s147, 6
      %s149 = smul.addr %s148, 8
      %s150 = scalar_lea.vmem %s2, %s149
      %s151 = smul.u32 2, %s13
      %v152 = vld [vmem:[%s143] sm:$0xff]
      %v153 = vld [vmem:[%s143 + $0x8] sm:$0xff]
      %v154 = vld [vmem:[%s143 + $0x10] sm:$0xff]
      %v155 = vld [vmem:[%s143 + $0x18] sm:$0xff]
      %v156 = vld [vmem:[%s143 + $0x20] sm:$0xff]
      %v157 = vld [vmem:[%s143 + $0x28] sm:$0xff]
      %v158 = vld [vmem:[%s143 + $0x30] sm:$0xff]
      %v159 = vld [vmem:[%s143 + $0x38] sm:$0xff]
      %v160 = vld [vmem:[%s1] sm:$0xff]
      %v161 = vld [vmem:[%s1 + $0x8] sm:$0xff]
      %v162 = vld [vmem:[%s1 + $0x10] sm:$0xff]
      %v163 = vld [vmem:[%s1 + $0x18] sm:$0xff]
      %v164 = vld [vmem:[%s1 + $0x20] sm:$0xff]
      %v165 = vld [vmem:[%s1 + $0x28] sm:$0xff]
      %v166 = vld [vmem:[%s1 + $0x30] sm:$0xff]
      %v167 = vld [vmem:[%s1 + $0x38] sm:$0xff]
      %v168 = vld [vmem:[%s1 + $0x40] sm:$0xff]
      %v169 = vld [vmem:[%s1 + $0x48] sm:$0xff]
      %v170 = vld [vmem:[%s1 + $0x50] sm:$0xff]
      %v171 = vld [vmem:[%s1 + $0x58] sm:$0xff]
      %v172 = vld [vmem:[%s1 + $0x60] sm:$0xff]
      %v173 = vld [vmem:[%s1 + $0x68] sm:$0xff]
      %v174 = vld [vmem:[%s1 + $0x70] sm:$0xff]
      %v175 = vld [vmem:[%s1 + $0x78] sm:$0xff]
      %v176 = vld [vmem:[%s1 + $0x80] sm:$0xff]
      %v177 = vld [vmem:[%s1 + $0x88] sm:$0xff]
      %v178 = vld [vmem:[%s1 + $0x90] sm:$0xff]
      %v179 = vld [vmem:[%s1 + $0x98] sm:$0xff]
      %v180 = vld [vmem:[%s1 + $0xa0] sm:$0xff]
      %v181 = vld [vmem:[%s1 + $0xa8] sm:$0xff]
      %v182 = vld [vmem:[%s1 + $0xb0] sm:$0xff]
      %v183 = vld [vmem:[%s1 + $0xb8] sm:$0xff]
      %v184 = vld [vmem:[%s1 + $0xc0] sm:$0xff]
      %v185 = vld [vmem:[%s1 + $0xc8] sm:$0xff]
      %v186 = vld [vmem:[%s1 + $0xd0] sm:$0xff]
      %v187 = vld [vmem:[%s1 + $0xd8] sm:$0xff]
      %v188 = vld [vmem:[%s1 + $0xe0] sm:$0xff]
      %v189 = vld [vmem:[%s1 + $0xe8] sm:$0xff]
      %v190 = vld [vmem:[%s1 + $0xf0] sm:$0xff]
      %v191 = vld [vmem:[%s1 + $0xf8] sm:$0xff]
      %v192 = vld [vmem:[%s1 + $0x100] sm:$0xff]
      %v193 = vld [vmem:[%s1 + $0x108] sm:$0xff]
      %v194 = vld [vmem:[%s1 + $0x110] sm:$0xff]
      %v195 = vld [vmem:[%s1 + $0x118] sm:$0xff]
      %v196 = vld [vmem:[%s1 + $0x120] sm:$0xff]
      %v197 = vld [vmem:[%s1 + $0x128] sm:$0xff]
      %v198 = vld [vmem:[%s1 + $0x130] sm:$0xff]
      %v199 = vld [vmem:[%s1 + $0x138] sm:$0xff]
      %v200 = vld [vmem:[%s1 + $0x140] sm:$0xff]
      %v201 = vld [vmem:[%s1 + $0x148] sm:$0xff]
      %v202 = vld [vmem:[%s1 + $0x150] sm:$0xff]
      %v203 = vld [vmem:[%s1 + $0x158] sm:$0xff]
      %v204 = vld [vmem:[%s1 + $0x160] sm:$0xff]
      %v205 = vld [vmem:[%s1 + $0x168] sm:$0xff]
      %v206 = vld [vmem:[%s1 + $0x170] sm:$0xff]
      %v207 = vld [vmem:[%s1 + $0x178] sm:$0xff]
      %v208 = vld [vmem:[%s1 + $0x180] sm:$0xff]
      %v209 = vld [vmem:[%s1 + $0x188] sm:$0xff]
      %v210 = vld [vmem:[%s1 + $0x190] sm:$0xff]
      %v211 = vld [vmem:[%s1 + $0x198] sm:$0xff]
      %v212 = vld [vmem:[%s1 + $0x1a0] sm:$0xff]
      %v213 = vld [vmem:[%s1 + $0x1a8] sm:$0xff]
      %v214 = vld [vmem:[%s1 + $0x1b0] sm:$0xff]
      %v215 = vld [vmem:[%s1 + $0x1b8] sm:$0xff]
      %v216 = vld [vmem:[%s1 + $0x1c0] sm:$0xff]
      %v217 = vld [vmem:[%s1 + $0x1c8] sm:$0xff]
      %v218 = vld [vmem:[%s1 + $0x1d0] sm:$0xff]
      %v219 = vld [vmem:[%s1 + $0x1d8] sm:$0xff]
      %v220 = vld [vmem:[%s1 + $0x1e0] sm:$0xff]
      %v221 = vld [vmem:[%s1 + $0x1e8] sm:$0xff]
      %v222 = vld [vmem:[%s1 + $0x1f0] sm:$0xff]
      %v223 = vld [vmem:[%s1 + $0x1f8] sm:$0xff]
      %v224 = vld [vmem:[%s1 + $0x200] sm:$0xff]
      %v225 = vld [vmem:[%s1 + $0x208] sm:$0xff]
      %v226 = vld [vmem:[%s1 + $0x210] sm:$0xff]
      %v227 = vld [vmem:[%s1 + $0x218] sm:$0xff]
      %v228 = vld [vmem:[%s1 + $0x220] sm:$0xff]
      %v229 = vld [vmem:[%s1 + $0x228] sm:$0xff]
      %v230 = vld [vmem:[%s1 + $0x230] sm:$0xff]
      %v231 = vld [vmem:[%s1 + $0x238] sm:$0xff]
      %v232 = vld [vmem:[%s1 + $0x240] sm:$0xff]
      %v233 = vld [vmem:[%s1 + $0x248] sm:$0xff]
      %v234 = vld [vmem:[%s1 + $0x250] sm:$0xff]
      %v235 = vld [vmem:[%s1 + $0x258] sm:$0xff]
      %v236 = vld [vmem:[%s1 + $0x260] sm:$0xff]
      %v237 = vld [vmem:[%s1 + $0x268] sm:$0xff]
      %v238 = vld [vmem:[%s1 + $0x270] sm:$0xff]
      %v239 = vld [vmem:[%s1 + $0x278] sm:$0xff]
      %v240 = vld [vmem:[%s1 + $0x280] sm:$0xff]
      %v241 = vld [vmem:[%s1 + $0x288] sm:$0xff]
      %v242 = vld [vmem:[%s1 + $0x290] sm:$0xff]
      %v243 = vld [vmem:[%s1 + $0x298] sm:$0xff]
      %v244 = vld [vmem:[%s1 + $0x2a0] sm:$0xff]
      %v245 = vld [vmem:[%s1 + $0x2a8] sm:$0xff]
      %v246 = vld [vmem:[%s1 + $0x2b0] sm:$0xff]
      %v247 = vld [vmem:[%s1 + $0x2b8] sm:$0xff]
      %v248 = vld [vmem:[%s1 + $0x2c0] sm:$0xff]
      %v249 = vld [vmem:[%s1 + $0x2c8] sm:$0xff]
      %v250 = vld [vmem:[%s1 + $0x2d0] sm:$0xff]
      %v251 = vld [vmem:[%s1 + $0x2d8] sm:$0xff]
      %v252 = vld [vmem:[%s1 + $0x2e0] sm:$0xff]
      %v253 = vld [vmem:[%s1 + $0x2e8] sm:$0xff]
      %v254 = vld [vmem:[%s1 + $0x2f0] sm:$0xff]
      %v255 = vld [vmem:[%s1 + $0x2f8] sm:$0xff]
      %v256 = vld [vmem:[%s1 + $0x300] sm:$0xff]
      %v257 = vld [vmem:[%s1 + $0x308] sm:$0xff]
      %v258 = vld [vmem:[%s1 + $0x310] sm:$0xff]
      %v259 = vld [vmem:[%s1 + $0x318] sm:$0xff]
      %v260 = vld [vmem:[%s1 + $0x320] sm:$0xff]
      %v261 = vld [vmem:[%s1 + $0x328] sm:$0xff]
      %v262 = vld [vmem:[%s1 + $0x330] sm:$0xff]
      %v263 = vld [vmem:[%s1 + $0x338] sm:$0xff]
      %v264 = vld [vmem:[%s1 + $0x340] sm:$0xff]
      %v265 = vld [vmem:[%s1 + $0x348] sm:$0xff]
      %v266 = vld [vmem:[%s1 + $0x350] sm:$0xff]
      %v267 = vld [vmem:[%s1 + $0x358] sm:$0xff]
      %v268 = vld [vmem:[%s1 + $0x360] sm:$0xff]
      %v269 = vld [vmem:[%s1 + $0x368] sm:$0xff]
      %v270 = vld [vmem:[%s1 + $0x370] sm:$0xff]
      %v271 = vld [vmem:[%s1 + $0x378] sm:$0xff]
      %v272 = vld [vmem:[%s1 + $0x380] sm:$0xff]
      %v273 = vld [vmem:[%s1 + $0x388] sm:$0xff]
      %v274 = vld [vmem:[%s1 + $0x390] sm:$0xff]
      %v275 = vld [vmem:[%s1 + $0x398] sm:$0xff]
      %v276 = vld [vmem:[%s1 + $0x3a0] sm:$0xff]
      %v277 = vld [vmem:[%s1 + $0x3a8] sm:$0xff]
      %v278 = vld [vmem:[%s1 + $0x3b0] sm:$0xff]
      %v279 = vld [vmem:[%s1 + $0x3b8] sm:$0xff]
      %v280 = vld [vmem:[%s1 + $0x3c0] sm:$0xff]
      %v281 = vld [vmem:[%s1 + $0x3c8] sm:$0xff]
      %v282 = vld [vmem:[%s1 + $0x3d0] sm:$0xff]
      %v283 = vld [vmem:[%s1 + $0x3d8] sm:$0xff]
      %v284 = vld [vmem:[%s1 + $0x3e0] sm:$0xff]
      %v285 = vld [vmem:[%s1 + $0x3e8] sm:$0xff]
      %v286 = vld [vmem:[%s1 + $0x3f0] sm:$0xff]
      %v287 = vld [vmem:[%s1 + $0x3f8] sm:$0xff]
      %v288 = vld [vmem:[%s1 + $0x400] sm:$0xff]
      %v289 = vld [vmem:[%s1 + $0x408] sm:$0xff]
      %v290 = vld [vmem:[%s1 + $0x410] sm:$0xff]
      %v291 = vld [vmem:[%s1 + $0x418] sm:$0xff]
      %v292 = vld [vmem:[%s1 + $0x420] sm:$0xff]
      %v293 = vld [vmem:[%s1 + $0x428] sm:$0xff]
      %v294 = vld [vmem:[%s1 + $0x430] sm:$0xff]
      %v295 = vld [vmem:[%s1 + $0x438] sm:$0xff]
      %v296 = vld [vmem:[%s1 + $0x440] sm:$0xff]
      %v297 = vld [vmem:[%s1 + $0x448] sm:$0xff]
      %v298 = vld [vmem:[%s1 + $0x450] sm:$0xff]
      %v299 = vld [vmem:[%s1 + $0x458] sm:$0xff]
      %v300 = vld [vmem:[%s1 + $0x460] sm:$0xff]
      %v301 = vld [vmem:[%s1 + $0x468] sm:$0xff]
      %v302 = vld [vmem:[%s1 + $0x470] sm:$0xff]
      %v303 = vld [vmem:[%s1 + $0x478] sm:$0xff]
      %v304 = vld [vmem:[%s1 + $0x480] sm:$0xff]
      %v305 = vld [vmem:[%s1 + $0x488] sm:$0xff]
      %v306 = vld [vmem:[%s1 + $0x490] sm:$0xff]
      %v307 = vld [vmem:[%s1 + $0x498] sm:$0xff]
      %v308 = vld [vmem:[%s1 + $0x4a0] sm:$0xff]
      %v309 = vld [vmem:[%s1 + $0x4a8] sm:$0xff]
      %v310 = vld [vmem:[%s1 + $0x4b0] sm:$0xff]
      %v311 = vld [vmem:[%s1 + $0x4b8] sm:$0xff]
      %v312 = vld [vmem:[%s1 + $0x4c0] sm:$0xff]
      %v313 = vld [vmem:[%s1 + $0x4c8] sm:$0xff]
      %v314 = vld [vmem:[%s1 + $0x4d0] sm:$0xff]
      %v315 = vld [vmem:[%s1 + $0x4d8] sm:$0xff]
      %v316 = vld [vmem:[%s1 + $0x4e0] sm:$0xff]
      %v317 = vld [vmem:[%s1 + $0x4e8] sm:$0xff]
      %v318 = vld [vmem:[%s1 + $0x4f0] sm:$0xff]
      %v319 = vld [vmem:[%s1 + $0x4f8] sm:$0xff]
      %v320 = vld [vmem:[%s1 + $0x500] sm:$0xff]
      %v321 = vld [vmem:[%s1 + $0x508] sm:$0xff]
      %v322 = vld [vmem:[%s1 + $0x510] sm:$0xff]
      %v323 = vld [vmem:[%s1 + $0x518] sm:$0xff]
      %v324 = vld [vmem:[%s1 + $0x520] sm:$0xff]
      %v325 = vld [vmem:[%s1 + $0x528] sm:$0xff]
      %v326 = vld [vmem:[%s1 + $0x530] sm:$0xff]
      %v327 = vld [vmem:[%s1 + $0x538] sm:$0xff]
      %v328 = vld [vmem:[%s1 + $0x540] sm:$0xff]
      %v329 = vld [vmem:[%s1 + $0x548] sm:$0xff]
      %v330 = vld [vmem:[%s1 + $0x550] sm:$0xff]
      %v331 = vld [vmem:[%s1 + $0x558] sm:$0xff]
      %v332 = vld [vmem:[%s1 + $0x560] sm:$0xff]
      %v333 = vld [vmem:[%s1 + $0x568] sm:$0xff]
      %v334 = vld [vmem:[%s1 + $0x570] sm:$0xff]
      %v335 = vld [vmem:[%s1 + $0x578] sm:$0xff]
      %v336 = vld [vmem:[%s1 + $0x580] sm:$0xff]
      %v337 = vld [vmem:[%s1 + $0x588] sm:$0xff]
      %v338 = vld [vmem:[%s1 + $0x590] sm:$0xff]
      %v339 = vld [vmem:[%s1 + $0x598] sm:$0xff]
      %v340 = vld [vmem:[%s1 + $0x5a0] sm:$0xff]
      %v341 = vld [vmem:[%s1 + $0x5a8] sm:$0xff]
      %v342 = vld [vmem:[%s1 + $0x5b0] sm:$0xff]
      %v343 = vld [vmem:[%s1 + $0x5b8] sm:$0xff]
      %v344 = vld [vmem:[%s1 + $0x5c0] sm:$0xff]
      %v345 = vld [vmem:[%s1 + $0x5c8] sm:$0xff]
      %v346 = vld [vmem:[%s1 + $0x5d0] sm:$0xff]
      %v347 = vld [vmem:[%s1 + $0x5d8] sm:$0xff]
      %v348 = vld [vmem:[%s1 + $0x5e0] sm:$0xff]
      %v349 = vld [vmem:[%s1 + $0x5e8] sm:$0xff]
      %v350 = vld [vmem:[%s1 + $0x5f0] sm:$0xff]
      %v351 = vld [vmem:[%s1 + $0x5f8] sm:$0xff]
      %v352 = vld [vmem:[%s1 + $0x600] sm:$0xff]
      %v353 = vld [vmem:[%s1 + $0x608] sm:$0xff]
      %v354 = vld [vmem:[%s1 + $0x610] sm:$0xff]
      %v355 = vld [vmem:[%s1 + $0x618] sm:$0xff]
      %v356 = vld [vmem:[%s1 + $0x620] sm:$0xff]
      %v357 = vld [vmem:[%s1 + $0x628] sm:$0xff]
      %v358 = vld [vmem:[%s1 + $0x630] sm:$0xff]
      %v359 = vld [vmem:[%s1 + $0x638] sm:$0xff]
      %v360 = vld [vmem:[%s1 + $0x640] sm:$0xff]
      %v361 = vld [vmem:[%s1 + $0x648] sm:$0xff]
      %v362 = vld [vmem:[%s1 + $0x650] sm:$0xff]
      %v363 = vld [vmem:[%s1 + $0x658] sm:$0xff]
      %v364 = vld [vmem:[%s1 + $0x660] sm:$0xff]
      %v365 = vld [vmem:[%s1 + $0x668] sm:$0xff]
      %v366 = vld [vmem:[%s1 + $0x670] sm:$0xff]
      %v367 = vld [vmem:[%s1 + $0x678] sm:$0xff]
      %v368 = vld [vmem:[%s1 + $0x680] sm:$0xff]
      %v369 = vld [vmem:[%s1 + $0x688] sm:$0xff]
      %v370 = vld [vmem:[%s1 + $0x690] sm:$0xff]
      %v371 = vld [vmem:[%s1 + $0x698] sm:$0xff]
      %v372 = vld [vmem:[%s1 + $0x6a0] sm:$0xff]
      %v373 = vld [vmem:[%s1 + $0x6a8] sm:$0xff]
      %v374 = vld [vmem:[%s1 + $0x6b0] sm:$0xff]
      %v375 = vld [vmem:[%s1 + $0x6b8] sm:$0xff]
      %v376 = vld [vmem:[%s1 + $0x6c0] sm:$0xff]
      %v377 = vld [vmem:[%s1 + $0x6c8] sm:$0xff]
      %v378 = vld [vmem:[%s1 + $0x6d0] sm:$0xff]
      %v379 = vld [vmem:[%s1 + $0x6d8] sm:$0xff]
      %v380 = vld [vmem:[%s1 + $0x6e0] sm:$0xff]
      %v381 = vld [vmem:[%s1 + $0x6e8] sm:$0xff]
      %v382 = vld [vmem:[%s1 + $0x6f0] sm:$0xff]
      %v383 = vld [vmem:[%s1 + $0x6f8] sm:$0xff]
      %v384 = vld [vmem:[%s1 + $0x700] sm:$0xff]
      %v385 = vld [vmem:[%s1 + $0x708] sm:$0xff]
      %v386 = vld [vmem:[%s1 + $0x710] sm:$0xff]
      %v387 = vld [vmem:[%s1 + $0x718] sm:$0xff]
      %v388 = vld [vmem:[%s1 + $0x720] sm:$0xff]
      %v389 = vld [vmem:[%s1 + $0x728] sm:$0xff]
      %v390 = vld [vmem:[%s1 + $0x730] sm:$0xff]
      %v391 = vld [vmem:[%s1 + $0x738] sm:$0xff]
      %v392 = vld [vmem:[%s1 + $0x740] sm:$0xff]
      %v393 = vld [vmem:[%s1 + $0x748] sm:$0xff]
      %v394 = vld [vmem:[%s1 + $0x750] sm:$0xff]
      %v395 = vld [vmem:[%s1 + $0x758] sm:$0xff]
      %v396 = vld [vmem:[%s1 + $0x760] sm:$0xff]
      %v397 = vld [vmem:[%s1 + $0x768] sm:$0xff]
      %v398 = vld [vmem:[%s1 + $0x770] sm:$0xff]
      %v399 = vld [vmem:[%s1 + $0x778] sm:$0xff]
      %v400 = vld [vmem:[%s1 + $0x780] sm:$0xff]
      %v401 = vld [vmem:[%s1 + $0x788] sm:$0xff]
      %v402 = vld [vmem:[%s1 + $0x790] sm:$0xff]
      %v403 = vld [vmem:[%s1 + $0x798] sm:$0xff]
      %v404 = vld [vmem:[%s1 + $0x7a0] sm:$0xff]
      %v405 = vld [vmem:[%s1 + $0x7a8] sm:$0xff]
      %v406 = vld [vmem:[%s1 + $0x7b0] sm:$0xff]
      %v407 = vld [vmem:[%s1 + $0x7b8] sm:$0xff]
      %v408 = vld [vmem:[%s1 + $0x7c0] sm:$0xff]
      %v409 = vld [vmem:[%s1 + $0x7c8] sm:$0xff]
      %v410 = vld [vmem:[%s1 + $0x7d0] sm:$0xff]
      %v411 = vld [vmem:[%s1 + $0x7d8] sm:$0xff]
      %v412 = vld [vmem:[%s1 + $0x7e0] sm:$0xff]
      %v413 = vld [vmem:[%s1 + $0x7e8] sm:$0xff]
      %v414 = vld [vmem:[%s1 + $0x7f0] sm:$0xff]
      %v415 = vld [vmem:[%s1 + $0x7f8] sm:$0xff]
      %v416 = vld [vmem:[%s1 + $0x800] sm:$0xff]
      %v417 = vld [vmem:[%s1 + $0x808] sm:$0xff]
      %v418 = vld [vmem:[%s1 + $0x810] sm:$0xff]
      %v419 = vld [vmem:[%s1 + $0x818] sm:$0xff]
      %v420 = vld [vmem:[%s1 + $0x820] sm:$0xff]
      %v421 = vld [vmem:[%s1 + $0x828] sm:$0xff]
      %v422 = vld [vmem:[%s1 + $0x830] sm:$0xff]
      %v423 = vld [vmem:[%s1 + $0x838] sm:$0xff]
      %v424 = vld [vmem:[%s1 + $0x840] sm:$0xff]
      %v425 = vld [vmem:[%s1 + $0x848] sm:$0xff]
      %v426 = vld [vmem:[%s1 + $0x850] sm:$0xff]
      %v427 = vld [vmem:[%s1 + $0x858] sm:$0xff]
      %v428 = vld [vmem:[%s1 + $0x860] sm:$0xff]
      %v429 = vld [vmem:[%s1 + $0x868] sm:$0xff]
      %v430 = vld [vmem:[%s1 + $0x870] sm:$0xff]
      %v431 = vld [vmem:[%s1 + $0x878] sm:$0xff]
      %v432 = vld [vmem:[%s1 + $0x880] sm:$0xff]
      %v433 = vld [vmem:[%s1 + $0x888] sm:$0xff]
      %v434 = vld [vmem:[%s1 + $0x890] sm:$0xff]
      %v435 = vld [vmem:[%s1 + $0x898] sm:$0xff]
      %v436 = vld [vmem:[%s1 + $0x8a0] sm:$0xff]
      %v437 = vld [vmem:[%s1 + $0x8a8] sm:$0xff]
      %v438 = vld [vmem:[%s1 + $0x8b0] sm:$0xff]
      %v439 = vld [vmem:[%s1 + $0x8b8] sm:$0xff]
      %v440 = vld [vmem:[%s1 + $0x8c0] sm:$0xff]
      %v441 = vld [vmem:[%s1 + $0x8c8] sm:$0xff]
      %v442 = vld [vmem:[%s1 + $0x8d0] sm:$0xff]
      %v443 = vld [vmem:[%s1 + $0x8d8] sm:$0xff]
      %v444 = vld [vmem:[%s1 + $0x8e0] sm:$0xff]
      %v445 = vld [vmem:[%s1 + $0x8e8] sm:$0xff]
      %v446 = vld [vmem:[%s1 + $0x8f0] sm:$0xff]
      %v447 = vld [vmem:[%s1 + $0x8f8] sm:$0xff]
      %v448 = vld [vmem:[%s1 + $0x900] sm:$0xff]
      %v449 = vld [vmem:[%s1 + $0x908] sm:$0xff]
      %v450 = vld [vmem:[%s1 + $0x910] sm:$0xff]
      %v451 = vld [vmem:[%s1 + $0x918] sm:$0xff]
      %v452 = vld [vmem:[%s1 + $0x920] sm:$0xff]
      %v453 = vld [vmem:[%s1 + $0x928] sm:$0xff]
      %v454 = vld [vmem:[%s1 + $0x930] sm:$0xff]
      %v455 = vld [vmem:[%s1 + $0x938] sm:$0xff]
      %v456 = vld [vmem:[%s1 + $0x940] sm:$0xff]
      %v457 = vld [vmem:[%s1 + $0x948] sm:$0xff]
      %v458 = vld [vmem:[%s1 + $0x950] sm:$0xff]
      %v459 = vld [vmem:[%s1 + $0x958] sm:$0xff]
      %v460 = vld [vmem:[%s1 + $0x960] sm:$0xff]
      %v461 = vld [vmem:[%s1 + $0x968] sm:$0xff]
      %v462 = vld [vmem:[%s1 + $0x970] sm:$0xff]
      %v463 = vld [vmem:[%s1 + $0x978] sm:$0xff]
      %v464 = vld [vmem:[%s1 + $0x980] sm:$0xff]
      %v465 = vld [vmem:[%s1 + $0x988] sm:$0xff]
      %v466 = vld [vmem:[%s1 + $0x990] sm:$0xff]
      %v467 = vld [vmem:[%s1 + $0x998] sm:$0xff]
      %v468 = vld [vmem:[%s1 + $0x9a0] sm:$0xff]
      %v469 = vld [vmem:[%s1 + $0x9a8] sm:$0xff]
      %v470 = vld [vmem:[%s1 + $0x9b0] sm:$0xff]
      %v471 = vld [vmem:[%s1 + $0x9b8] sm:$0xff]
      %v472 = vld [vmem:[%s1 + $0x9c0] sm:$0xff]
      %v473 = vld [vmem:[%s1 + $0x9c8] sm:$0xff]
      %v474 = vld [vmem:[%s1 + $0x9d0] sm:$0xff]
      %v475 = vld [vmem:[%s1 + $0x9d8] sm:$0xff]
      %v476 = vld [vmem:[%s1 + $0x9e0] sm:$0xff]
      %v477 = vld [vmem:[%s1 + $0x9e8] sm:$0xff]
      %v478 = vld [vmem:[%s1 + $0x9f0] sm:$0xff]
      %v479 = vld [vmem:[%s1 + $0x9f8] sm:$0xff]
      %v480 = vld [vmem:[%s1 + $0xa00] sm:$0xff]
      %v481 = vld [vmem:[%s1 + $0xa08] sm:$0xff]
      %v482 = vld [vmem:[%s1 + $0xa10] sm:$0xff]
      %v483 = vld [vmem:[%s1 + $0xa18] sm:$0xff]
      %v484 = vld [vmem:[%s1 + $0xa20] sm:$0xff]
      %v485 = vld [vmem:[%s1 + $0xa28] sm:$0xff]
      %v486 = vld [vmem:[%s1 + $0xa30] sm:$0xff]
      %v487 = vld [vmem:[%s1 + $0xa38] sm:$0xff]
      %v488 = vld [vmem:[%s1 + $0xa40] sm:$0xff]
      %v489 = vld [vmem:[%s1 + $0xa48] sm:$0xff]
      %v490 = vld [vmem:[%s1 + $0xa50] sm:$0xff]
      %v491 = vld [vmem:[%s1 + $0xa58] sm:$0xff]
      %v492 = vld [vmem:[%s1 + $0xa60] sm:$0xff]
      %v493 = vld [vmem:[%s1 + $0xa68] sm:$0xff]
      %v494 = vld [vmem:[%s1 + $0xa70] sm:$0xff]
      %v495 = vld [vmem:[%s1 + $0xa78] sm:$0xff]
      %v496 = vld [vmem:[%s1 + $0xa80] sm:$0xff]
      %v497 = vld [vmem:[%s1 + $0xa88] sm:$0xff]
      %v498 = vld [vmem:[%s1 + $0xa90] sm:$0xff]
      %v499 = vld [vmem:[%s1 + $0xa98] sm:$0xff]
      %v500 = vld [vmem:[%s1 + $0xaa0] sm:$0xff]
      %v501 = vld [vmem:[%s1 + $0xaa8] sm:$0xff]
      %v502 = vld [vmem:[%s1 + $0xab0] sm:$0xff]
      %v503 = vld [vmem:[%s1 + $0xab8] sm:$0xff]
      %v504 = vld [vmem:[%s1 + $0xac0] sm:$0xff]
      %v505 = vld [vmem:[%s1 + $0xac8] sm:$0xff]
      %v506 = vld [vmem:[%s1 + $0xad0] sm:$0xff]
      %v507 = vld [vmem:[%s1 + $0xad8] sm:$0xff]
      %v508 = vld [vmem:[%s1 + $0xae0] sm:$0xff]
      %v509 = vld [vmem:[%s1 + $0xae8] sm:$0xff]
      %v510 = vld [vmem:[%s1 + $0xaf0] sm:$0xff]
      %v511 = vld [vmem:[%s1 + $0xaf8] sm:$0xff]
      %v512 = vld [vmem:[%s1 + $0xb00] sm:$0xff]
      %v513 = vld [vmem:[%s1 + $0xb08] sm:$0xff]
      %v514 = vld [vmem:[%s1 + $0xb10] sm:$0xff]
      %v515 = vld [vmem:[%s1 + $0xb18] sm:$0xff]
      %v516 = vld [vmem:[%s1 + $0xb20] sm:$0xff]
      %v517 = vld [vmem:[%s1 + $0xb28] sm:$0xff]
      %v518 = vld [vmem:[%s1 + $0xb30] sm:$0xff]
      %v519 = vld [vmem:[%s1 + $0xb38] sm:$0xff]
      %v520 = vld [vmem:[%s1 + $0xb40] sm:$0xff]
      %v521 = vld [vmem:[%s1 + $0xb48] sm:$0xff]
      %v522 = vld [vmem:[%s1 + $0xb50] sm:$0xff]
      %v523 = vld [vmem:[%s1 + $0xb58] sm:$0xff]
      %v524 = vld [vmem:[%s1 + $0xb60] sm:$0xff]
      %v525 = vld [vmem:[%s1 + $0xb68] sm:$0xff]
      %v526 = vld [vmem:[%s1 + $0xb70] sm:$0xff]
      %v527 = vld [vmem:[%s1 + $0xb78] sm:$0xff]
      %v528 = vld [vmem:[%s1 + $0xb80] sm:$0xff]
      %v529 = vld [vmem:[%s1 + $0xb88] sm:$0xff]
      %v530 = vld [vmem:[%s1 + $0xb90] sm:$0xff]
      %v531 = vld [vmem:[%s1 + $0xb98] sm:$0xff]
      %v532 = vld [vmem:[%s1 + $0xba0] sm:$0xff]
      %v533 = vld [vmem:[%s1 + $0xba8] sm:$0xff]
      %v534 = vld [vmem:[%s1 + $0xbb0] sm:$0xff]
      %v535 = vld [vmem:[%s1 + $0xbb8] sm:$0xff]
      %v536 = vld [vmem:[%s1 + $0xbc0] sm:$0xff]
      %v537 = vld [vmem:[%s1 + $0xbc8] sm:$0xff]
      %v538 = vld [vmem:[%s1 + $0xbd0] sm:$0xff]
      %v539 = vld [vmem:[%s1 + $0xbd8] sm:$0xff]
      %v540 = vld [vmem:[%s1 + $0xbe0] sm:$0xff]
      %v541 = vld [vmem:[%s1 + $0xbe8] sm:$0xff]
      %v542 = vld [vmem:[%s1 + $0xbf0] sm:$0xff]
      %v543 = vld [vmem:[%s1 + $0xbf8] sm:$0xff]
      %544 = vmatprep.subr.mxu0 %v161
      %545 = vmatpush1.msra.mxu0 %v160
      %546 = vmatprep.subr.mxu0 %v167
      %547 = vmatpush1.msra.mxu0 %v166
      %548 = vmatprep.subr.mxu0 %v173
      %549 = vmatpush1.msra.mxu0 %v172
      %550 = vmatprep.subr.mxu0 %v179
      %551 = vmatpush1.msra.mxu0 %v178
      %552 = vmatprep.subr.mxu0 %v185
      %553 = vmatpush1.msra.mxu0 %v184
      %554 = vmatprep.subr.mxu0 %v191
      %555 = vmatpush1.msra.mxu0 %v190
      %556 = vmatprep.subr.mxu0 %v197
      %557 = vmatpush1.msra.mxu0 %v196
      %558 = vmatprep.subr.mxu0 %v203
      %559 = vmatpush1.msra.mxu0 %v202
      %560 = vmatprep.subr.mxu0 %v209
      %561 = vmatpush1.msra.mxu0 %v208
      %562 = vmatprep.subr.mxu0 %v215
      %563 = vmatpush1.msra.mxu0 %v214
      %564 = vmatprep.subr.mxu0 %v221
      %565 = vmatpush1.msra.mxu0 %v220
      %566 = vmatprep.subr.mxu0 %v227
      %567 = vmatpush1.msra.mxu0 %v226
      %568 = vmatprep.subr.mxu0 %v233
      %569 = vmatpush1.msra.mxu0 %v232
      %570 = vmatprep.subr.mxu0 %v239
      %571 = vmatpush1.msra.mxu0 %v238
      %572 = vmatprep.subr.mxu0 %v245
      %573 = vmatpush1.msra.mxu0 %v244
      %574 = vmatprep.subr.mxu0 %v251
      %575 = vmatpush1.msra.mxu0 %v250
      %576 = vmatprep.subr.mxu0 %v257
      %577 = vmatpush1.msra.mxu0 %v256
      %578 = vmatprep.subr.mxu0 %v263
      %579 = vmatpush1.msra.mxu0 %v262
      %580 = vmatprep.subr.mxu0 %v269
      %581 = vmatpush1.msra.mxu0 %v268
      %582 = vmatprep.subr.mxu0 %v275
      %583 = vmatpush1.msra.mxu0 %v274
      %584 = vmatprep.subr.mxu0 %v281
      %585 = vmatpush1.msra.mxu0 %v280
      %586 = vmatprep.subr.mxu0 %v287
      %587 = vmatpush1.msra.mxu0 %v286
      %588 = vmatprep.subr.mxu0 %v293
      %589 = vmatpush1.msra.mxu0 %v292
      %590 = vmatprep.subr.mxu0 %v299
      %591 = vmatpush1.msra.mxu0 %v298
      %592 = vmatprep.subr.mxu0 %v305
      %593 = vmatpush1.msra.mxu0 %v304
      %594 = vmatprep.subr.mxu0 %v311
      %595 = vmatpush1.msra.mxu0 %v310
      %596 = vmatprep.subr.mxu0 %v317
      %597 = vmatpush1.msra.mxu0 %v316
      %598 = vmatprep.subr.mxu0 %v323
      %599 = vmatpush1.msra.mxu0 %v322
      %600 = vmatprep.subr.mxu0 %v329
      %601 = vmatpush1.msra.mxu0 %v328
      %602 = vmatprep.subr.mxu0 %v335
      %603 = vmatpush1.msra.mxu0 %v334
      %604 = vmatprep.subr.mxu0 %v341
      %605 = vmatpush1.msra.mxu0 %v340
      %606 = vmatprep.subr.mxu0 %v347
      %607 = vmatpush1.msra.mxu0 %v346
      %608 = vmatprep.mubr.f32.mxu0 %v153
      %609 = vmatmul.mubr.f32.gmra.mrb[0].mxu0 %v152
      %v610 = vpop.f32.mrb[0].mxu0
      %v611 = vadd.f32 0.0, %v610
      %v612 = vpop.f32.mrb[0].mxu0
      %v613 = vadd.f32 0.0, %v612
      %614 = vmatprep.mubr.f32.mxu0 %v157
      %615 = vmatmul.mubr.f32.gmra.mrb[0].mxu0 %v156
      %v616 = vpop.f32.mrb[0].mxu0
      %v617 = vadd.f32 0.0, %v616
      %v618 = vpop.f32.mrb[0].mxu0
      %v619 = vadd.f32 0.0, %v618
      %620 = vdwg.mxu0
      %621 = vmatprep.subr.mxu0 %v353
      %622 = vmatpush1.msra.mxu0 %v352
      %623 = vmatprep.subr.mxu0 %v359
      %624 = vmatpush1.msra.mxu0 %v358
      %625 = vmatprep.subr.mxu0 %v365
      %626 = vmatpush1.msra.mxu0 %v364
      %627 = vmatprep.subr.mxu0 %v371
      %628 = vmatpush1.msra.mxu0 %v370
      %629 = vmatprep.subr.mxu0 %v377
      %630 = vmatpush1.msra.mxu0 %v376
      %631 = vmatprep.subr.mxu0 %v383
      %632 = vmatpush1.msra.mxu0 %v382
      %633 = vmatprep.subr.mxu0 %v389
      %634 = vmatpush1.msra.mxu0 %v388
      %635 = vmatprep.subr.mxu0 %v395
      %636 = vmatpush1.msra.mxu0 %v394
      %637 = vmatprep.subr.mxu0 %v401
      %638 = vmatpush1.msra.mxu0 %v400
      %639 = vmatprep.subr.mxu0 %v407
      %640 = vmatpush1.msra.mxu0 %v406
      %641 = vmatprep.subr.mxu0 %v413
      %642 = vmatpush1.msra.mxu0 %v412
      %643 = vmatprep.subr.mxu0 %v419
      %644 = vmatpush1.msra.mxu0 %v418
      %645 = vmatprep.subr.mxu0 %v425
      %646 = vmatpush1.msra.mxu0 %v424
      %647 = vmatprep.subr.mxu0 %v431
      %648 = vmatpush1.msra.mxu0 %v430
      %649 = vmatprep.subr.mxu0 %v437
      %650 = vmatpush1.msra.mxu0 %v436
      %651 = vmatprep.subr.mxu0 %v443
      %652 = vmatpush1.msra.mxu0 %v442
      %653 = vmatprep.subr.mxu0 %v449
      %654 = vmatpush1.msra.mxu0 %v448
      %655 = vmatprep.subr.mxu0 %v455
      %656 = vmatpush1.msra.mxu0 %v454
      %657 = vmatprep.subr.mxu0 %v461
      %658 = vmatpush1.msra.mxu0 %v460
      %659 = vmatprep.subr.mxu0 %v467
      %660 = vmatpush1.msra.mxu0 %v466
      %661 = vmatprep.subr.mxu0 %v473
      %662 = vmatpush1.msra.mxu0 %v472
      %663 = vmatprep.subr.mxu0 %v479
      %664 = vmatpush1.msra.mxu0 %v478
      %665 = vmatprep.subr.mxu0 %v485
      %666 = vmatpush1.msra.mxu0 %v484
      %667 = vmatprep.subr.mxu0 %v491
      %668 = vmatpush1.msra.mxu0 %v490
      %669 = vmatprep.subr.mxu0 %v497
      %670 = vmatpush1.msra.mxu0 %v496
      %671 = vmatprep.subr.mxu0 %v503
      %672 = vmatpush1.msra.mxu0 %v502
      %673 = vmatprep.subr.mxu0 %v509
      %674 = vmatpush1.msra.mxu0 %v508
      %675 = vmatprep.subr.mxu0 %v515
      %676 = vmatpush1.msra.mxu0 %v514
      %677 = vmatprep.subr.mxu0 %v521
      %678 = vmatpush1.msra.mxu0 %v520
      %679 = vmatprep.subr.mxu0 %v527
      %680 = vmatpush1.msra.mxu0 %v526
      %681 = vmatprep.subr.mxu0 %v533
      %682 = vmatpush1.msra.mxu0 %v532
      %683 = vmatprep.subr.mxu0 %v539
      %684 = vmatpush1.msra.mxu0 %v538
      %685 = vmatprep.mubr.f32.mxu0 %v155
      %686 = vmatmul.mubr.f32.gmra.mrb[0].mxu0 %v154
      %v687 = vpop.f32.mrb[0].mxu0
      %v688 = vadd.f32 %v611, %v687
      %v689 = vpop.f32.mrb[0].mxu0
      %v690 = vadd.f32 %v613, %v689
      %691 = vmatprep.mubr.f32.mxu0 %v159
      %692 = vmatmul.mubr.f32.gmra.mrb[0].mxu0 %v158
      %v693 = vpop.f32.mrb[0].mxu0
      %v694 = vadd.f32 %v617, %v693
      %v695 = vpop.f32.mrb[0].mxu0
      %v696 = vadd.f32 %v619, %v695
      %697 = vdwg.mxu0
      %698 = vmatprep.subr.mxu0 %v163
      %699 = vmatpush1.msra.mxu0 %v162
      %700 = vmatprep.subr.mxu0 %v169
      %701 = vmatpush1.msra.mxu0 %v168
      %702 = vmatprep.subr.mxu0 %v175
      %703 = vmatpush1.msra.mxu0 %v174
      %704 = vmatprep.subr.mxu0 %v181
      %705 = vmatpush1.msra.mxu0 %v180
      %706 = vmatprep.subr.mxu0 %v187
      %707 = vmatpush1.msra.mxu0 %v186
      %708 = vmatprep.subr.mxu0 %v193
      %709 = vmatpush1.msra.mxu0 %v192
      %710 = vmatprep.subr.mxu0 %v199
      %711 = vmatpush1.msra.mxu0 %v198
      %712 = vmatprep.subr.mxu0 %v205
      %713 = vmatpush1.msra.mxu0 %v204
      %714 = vmatprep.subr.mxu0 %v211
      %715 = vmatpush1.msra.mxu0 %v210
      %716 = vmatprep.subr.mxu0 %v217
      %717 = vmatpush1.msra.mxu0 %v216
      %718 = vmatprep.subr.mxu0 %v223
      %719 = vmatpush1.msra.mxu0 %v222
      %720 = vmatprep.subr.mxu0 %v229
      %721 = vmatpush1.msra.mxu0 %v228
      %722 = vmatprep.subr.mxu0 %v235
      %723 = vmatpush1.msra.mxu0 %v234
      %724 = vmatprep.subr.mxu0 %v241
      %725 = vmatpush1.msra.mxu0 %v240
      %726 = vmatprep.subr.mxu0 %v247
      %727 = vmatpush1.msra.mxu0 %v246
      %728 = vmatprep.subr.mxu0 %v253
      %729 = vmatpush1.msra.mxu0 %v252
      %730 = vmatprep.subr.mxu0 %v259
      %731 = vmatpush1.msra.mxu0 %v258
      %732 = vmatprep.subr.mxu0 %v265
      %733 = vmatpush1.msra.mxu0 %v264
      %734 = vmatprep.subr.mxu0 %v271
      %735 = vmatpush1.msra.mxu0 %v270
      %736 = vmatprep.subr.mxu0 %v277
      %737 = vmatpush1.msra.mxu0 %v276
      %738 = vmatprep.subr.mxu0 %v283
      %739 = vmatpush1.msra.mxu0 %v282
      %740 = vmatprep.subr.mxu0 %v289
      %741 = vmatpush1.msra.mxu0 %v288
      %742 = vmatprep.subr.mxu0 %v295
      %743 = vmatpush1.msra.mxu0 %v294
      %744 = vmatprep.subr.mxu0 %v301
      %745 = vmatpush1.msra.mxu0 %v300
      %746 = vmatprep.subr.mxu0 %v307
      %747 = vmatpush1.msra.mxu0 %v306
      %748 = vmatprep.subr.mxu0 %v313
      %749 = vmatpush1.msra.mxu0 %v312
      %750 = vmatprep.subr.mxu0 %v319
      %751 = vmatpush1.msra.mxu0 %v318
      %752 = vmatprep.subr.mxu0 %v325
      %753 = vmatpush1.msra.mxu0 %v324
      %754 = vmatprep.subr.mxu0 %v331
      %755 = vmatpush1.msra.mxu0 %v330
      %756 = vmatprep.subr.mxu0 %v337
      %757 = vmatpush1.msra.mxu0 %v336
      %758 = vmatprep.subr.mxu0 %v343
      %759 = vmatpush1.msra.mxu0 %v342
      %760 = vmatprep.subr.mxu0 %v349
      %761 = vmatpush1.msra.mxu0 %v348
      %762 = vmatprep.mubr.f32.mxu0 %v153
      %763 = vmatmul.mubr.f32.gmra.mrb[0].mxu0 %v152
      %v764 = vpop.f32.mrb[0].mxu0
      %v765 = vadd.f32 0.0, %v764
      %v766 = vpop.f32.mrb[0].mxu0
      %v767 = vadd.f32 0.0, %v766
      %768 = vmatprep.mubr.f32.mxu0 %v157
      %769 = vmatmul.mubr.f32.gmra.mrb[0].mxu0 %v156
      %v770 = vpop.f32.mrb[0].mxu0
      %v771 = vadd.f32 0.0, %v770
      %v772 = vpop.f32.mrb[0].mxu0
      %v773 = vadd.f32 0.0, %v772
      %774 = vdwg.mxu0
      %775 = vmatprep.subr.mxu0 %v355
      %776 = vmatpush1.msra.mxu0 %v354
      %777 = vmatprep.subr.mxu0 %v361
      %778 = vmatpush1.msra.mxu0 %v360
      %779 = vmatprep.subr.mxu0 %v367
      %780 = vmatpush1.msra.mxu0 %v366
      %781 = vmatprep.subr.mxu0 %v373
      %782 = vmatpush1.msra.mxu0 %v372
      %783 = vmatprep.subr.mxu0 %v379
      %784 = vmatpush1.msra.mxu0 %v378
      %785 = vmatprep.subr.mxu0 %v385
      %786 = vmatpush1.msra.mxu0 %v384
      %787 = vmatprep.subr.mxu0 %v391
      %788 = vmatpush1.msra.mxu0 %v390
      %789 = vmatprep.subr.mxu0 %v397
      %790 = vmatpush1.msra.mxu0 %v396
      %791 = vmatprep.subr.mxu0 %v403
      %792 = vmatpush1.msra.mxu0 %v402
      %793 = vmatprep.subr.mxu0 %v409
      %794 = vmatpush1.msra.mxu0 %v408
      %795 = vmatprep.subr.mxu0 %v415
      %796 = vmatpush1.msra.mxu0 %v414
      %797 = vmatprep.subr.mxu0 %v421
      %798 = vmatpush1.msra.mxu0 %v420
      %799 = vmatprep.subr.mxu0 %v427
      %800 = vmatpush1.msra.mxu0 %v426
      %801 = vmatprep.subr.mxu0 %v433
      %802 = vmatpush1.msra.mxu0 %v432
      %803 = vmatprep.subr.mxu0 %v439
      %804 = vmatpush1.msra.mxu0 %v438
      %805 = vmatprep.subr.mxu0 %v445
      %806 = vmatpush1.msra.mxu0 %v444
      %807 = vmatprep.subr.mxu0 %v451
      %808 = vmatpush1.msra.mxu0 %v450
      %809 = vmatprep.subr.mxu0 %v457
      %810 = vmatpush1.msra.mxu0 %v456
      %811 = vmatprep.subr.mxu0 %v463
      %812 = vmatpush1.msra.mxu0 %v462
      %813 = vmatprep.subr.mxu0 %v469
      %814 = vmatpush1.msra.mxu0 %v468
      %815 = vmatprep.subr.mxu0 %v475
      %816 = vmatpush1.msra.mxu0 %v474
      %817 = vmatprep.subr.mxu0 %v481
      %818 = vmatpush1.msra.mxu0 %v480
      %819 = vmatprep.subr.mxu0 %v487
      %820 = vmatpush1.msra.mxu0 %v486
      %821 = vmatprep.subr.mxu0 %v493
      %822 = vmatpush1.msra.mxu0 %v492
      %823 = vmatprep.subr.mxu0 %v499
      %824 = vmatpush1.msra.mxu0 %v498
      %825 = vmatprep.subr.mxu0 %v505
      %826 = vmatpush1.msra.mxu0 %v504
      %827 = vmatprep.subr.mxu0 %v511
      %828 = vmatpush1.msra.mxu0 %v510
      %829 = vmatprep.subr.mxu0 %v517
      %830 = vmatpush1.msra.mxu0 %v516
      %831 = vmatprep.subr.mxu0 %v523
      %832 = vmatpush1.msra.mxu0 %v522
      %833 = vmatprep.subr.mxu0 %v529
      %834 = vmatpush1.msra.mxu0 %v528
      %835 = vmatprep.subr.mxu0 %v535
      %836 = vmatpush1.msra.mxu0 %v534
      %837 = vmatprep.subr.mxu0 %v541
      %838 = vmatpush1.msra.mxu0 %v540
      %839 = vmatprep.mubr.f32.mxu0 %v155
      %840 = vmatmul.mubr.f32.gmra.mrb[0].mxu0 %v154
      %v841 = vpop.f32.mrb[0].mxu0
      %v842 = vadd.f32 %v765, %v841
      %v843 = vpop.f32.mrb[0].mxu0
      %v844 = vadd.f32 %v767, %v843
      %845 = vmatprep.mubr.f32.mxu0 %v159
      %846 = vmatmul.mubr.f32.gmra.mrb[0].mxu0 %v158
      %v847 = vpop.f32.mrb[0].mxu0
      %v848 = vadd.f32 %v771, %v847
      %v849 = vpop.f32.mrb[0].mxu0
      %v850 = vadd.f32 %v773, %v849
      %851 = vdwg.mxu0
      %852 = vmatprep.subr.mxu0 %v165
      %853 = vmatpush1.msra.mxu0 %v164
      %854 = vmatprep.subr.mxu0 %v171
      %855 = vmatpush1.msra.mxu0 %v170
      %856 = vmatprep.subr.mxu0 %v177
      %857 = vmatpush1.msra.mxu0 %v176
      %858 = vmatprep.subr.mxu0 %v183
      %859 = vmatpush1.msra.mxu0 %v182
      %860 = vmatprep.subr.mxu0 %v189
      %861 = vmatpush1.msra.mxu0 %v188
      %862 = vmatprep.subr.mxu0 %v195
      %863 = vmatpush1.msra.mxu0 %v194
      %864 = vmatprep.subr.mxu0 %v201
      %865 = vmatpush1.msra.mxu0 %v200
      %866 = vmatprep.subr.mxu0 %v207
      %867 = vmatpush1.msra.mxu0 %v206
      %868 = vmatprep.subr.mxu0 %v213
      %869 = vmatpush1.msra.mxu0 %v212
      %870 = vmatprep.subr.mxu0 %v219
      %871 = vmatpush1.msra.mxu0 %v218
      %872 = vmatprep.subr.mxu0 %v225
      %873 = vmatpush1.msra.mxu0 %v224
      %874 = vmatprep.subr.mxu0 %v231
      %875 = vmatpush1.msra.mxu0 %v230
      %876 = vmatprep.subr.mxu0 %v237
      %877 = vmatpush1.msra.mxu0 %v236
      %878 = vmatprep.subr.mxu0 %v243
      %879 = vmatpush1.msra.mxu0 %v242
      %880 = vmatprep.subr.mxu0 %v249
      %881 = vmatpush1.msra.mxu0 %v248
      %882 = vmatprep.subr.mxu0 %v255
      %883 = vmatpush1.msra.mxu0 %v254
      %884 = vmatprep.subr.mxu0 %v261
      %885 = vmatpush1.msra.mxu0 %v260
      %886 = vmatprep.subr.mxu0 %v267
      %887 = vmatpush1.msra.mxu0 %v266
      %888 = vmatprep.subr.mxu0 %v273
      %889 = vmatpush1.msra.mxu0 %v272
      %890 = vmatprep.subr.mxu0 %v279
      %891 = vmatpush1.msra.mxu0 %v278
      %892 = vmatprep.subr.mxu0 %v285
      %893 = vmatpush1.msra.mxu0 %v284
      %894 = vmatprep.subr.mxu0 %v291
      %895 = vmatpush1.msra.mxu0 %v290
      %896 = vmatprep.subr.mxu0 %v297
      %897 = vmatpush1.msra.mxu0 %v296
      %898 = vmatprep.subr.mxu0 %v303
      %899 = vmatpush1.msra.mxu0 %v302
      %900 = vmatprep.subr.mxu0 %v309
      %901 = vmatpush1.msra.mxu0 %v308
      %902 = vmatprep.subr.mxu0 %v315
      %903 = vmatpush1.msra.mxu0 %v314
      %904 = vmatprep.subr.mxu0 %v321
      %905 = vmatpush1.msra.mxu0 %v320
      %906 = vmatprep.subr.mxu0 %v327
      %907 = vmatpush1.msra.mxu0 %v326
      %908 = vmatprep.subr.mxu0 %v333
      %909 = vmatpush1.msra.mxu0 %v332
      %910 = vmatprep.subr.mxu0 %v339
      %911 = vmatpush1.msra.mxu0 %v338
      %912 = vmatprep.subr.mxu0 %v345
      %913 = vmatpush1.msra.mxu0 %v344
      %914 = vmatprep.subr.mxu0 %v351
      %915 = vmatpush1.msra.mxu0 %v350
      %916 = vmatprep.mubr.f32.mxu0 %v153
      %917 = vmatmul.mubr.f32.gmra.mrb[0].mxu0 %v152
      %v918 = vpop.f32.mrb[0].mxu0
      %v919 = vadd.f32 0.0, %v918
      %v920 = vpop.f32.mrb[0].mxu0
      %v921 = vadd.f32 0.0, %v920
      %922 = vmatprep.mubr.f32.mxu0 %v157
      %923 = vmatmul.mubr.f32.gmra.mrb[0].mxu0 %v156
      %v924 = vpop.f32.mrb[0].mxu0
      %v925 = vadd.f32 0.0, %v924
      %v926 = vpop.f32.mrb[0].mxu0
      %v927 = vadd.f32 0.0, %v926
      %928 = vdwg.mxu0
      %929 = vmatprep.subr.mxu0 %v357
      %930 = vmatpush1.msra.mxu0 %v356
      %931 = vmatprep.subr.mxu0 %v363
      %932 = vmatpush1.msra.mxu0 %v362
      %933 = vmatprep.subr.mxu0 %v369
      %934 = vmatpush1.msra.mxu0 %v368
      %935 = vmatprep.subr.mxu0 %v375
      %936 = vmatpush1.msra.mxu0 %v374
      %937 = vmatprep.subr.mxu0 %v381
      %938 = vmatpush1.msra.mxu0 %v380
      %939 = vmatprep.subr.mxu0 %v387
      %940 = vmatpush1.msra.mxu0 %v386
      %941 = vmatprep.subr.mxu0 %v393
      %942 = vmatpush1.msra.mxu0 %v392
      %943 = vmatprep.subr.mxu0 %v399
      %944 = vmatpush1.msra.mxu0 %v398
      %945 = vmatprep.subr.mxu0 %v405
      %946 = vmatpush1.msra.mxu0 %v404
      %947 = vmatprep.subr.mxu0 %v411
      %948 = vmatpush1.msra.mxu0 %v410
      %949 = vmatprep.subr.mxu0 %v417
      %950 = vmatpush1.msra.mxu0 %v416
      %951 = vmatprep.subr.mxu0 %v423
      %952 = vmatpush1.msra.mxu0 %v422
      %953 = vmatprep.subr.mxu0 %v429
      %954 = vmatpush1.msra.mxu0 %v428
      %955 = vmatprep.subr.mxu0 %v435
      %956 = vmatpush1.msra.mxu0 %v434
      %957 = vmatprep.subr.mxu0 %v441
      %958 = vmatpush1.msra.mxu0 %v440
      %959 = vmatprep.subr.mxu0 %v447
      %960 = vmatpush1.msra.mxu0 %v446
      %961 = vmatprep.subr.mxu0 %v453
      %962 = vmatpush1.msra.mxu0 %v452
      %963 = vmatprep.subr.mxu0 %v459
      %964 = vmatpush1.msra.mxu0 %v458
      %965 = vmatprep.subr.mxu0 %v465
      %966 = vmatpush1.msra.mxu0 %v464
      %967 = vmatprep.subr.mxu0 %v471
      %968 = vmatpush1.msra.mxu0 %v470
      %969 = vmatprep.subr.mxu0 %v477
      %970 = vmatpush1.msra.mxu0 %v476
      %971 = vmatprep.subr.mxu0 %v483
      %972 = vmatpush1.msra.mxu0 %v482
      %973 = vmatprep.subr.mxu0 %v489
      %974 = vmatpush1.msra.mxu0 %v488
      %975 = vmatprep.subr.mxu0 %v495
      %976 = vmatpush1.msra.mxu0 %v494
      %977 = vmatprep.subr.mxu0 %v501
      %978 = vmatpush1.msra.mxu0 %v500
      %979 = vmatprep.subr.mxu0 %v507
      %980 = vmatpush1.msra.mxu0 %v506
      %981 = vmatprep.subr.mxu0 %v513
      %982 = vmatpush1.msra.mxu0 %v512
      %983 = vmatprep.subr.mxu0 %v519
      %984 = vmatpush1.msra.mxu0 %v518
      %985 = vmatprep.subr.mxu0 %v525
      %986 = vmatpush1.msra.mxu0 %v524
      %987 = vmatprep.subr.mxu0 %v531
      %988 = vmatpush1.msra.mxu0 %v530
      %989 = vmatprep.subr.mxu0 %v537
      %990 = vmatpush1.msra.mxu0 %v536
      %991 = vmatprep.subr.mxu0 %v543
      %992 = vmatpush1.msra.mxu0 %v542
      %993 = vmatprep.mubr.f32.mxu0 %v155
      %994 = vmatmul.mubr.f32.gmra.mrb[0].mxu0 %v154
      %v995 = vpop.f32.mrb[0].mxu0
      %v996 = vadd.f32 %v919, %v995
      %v997 = vpop.f32.mrb[0].mxu0
      %v998 = vadd.f32 %v921, %v997
      %999 = vmatprep.mubr.f32.mxu0 %v159
      %1000 = vmatmul.mubr.f32.gmra.mrb[0].mxu0 %v158
      %v1001 = vpop.f32.mrb[0].mxu0
      %v1002 = vadd.f32 %v925, %v1001
      %v1003 = vpop.f32.mrb[0].mxu0
      %v1004 = vadd.f32 %v927, %v1003
      %1005 = vdwg.mxu0
      %1006 = vst [vmem:[%s150] sm:$0xff] %v688
      %1007 = vst [vmem:[%s150 + $0x8] sm:$0xff] %v690
      %1008 = vst [vmem:[%s150 + $0x10] sm:$0xff] %v842
      %1009 = vst [vmem:[%s150 + $0x18] sm:$0xff] %v844
      %1010 = vst [vmem:[%s150 + $0x20] sm:$0xff] %v996
      %1011 = vst [vmem:[%s150 + $0x28] sm:$0xff] %v998
      %1012 = vst [vmem:[%s150 + $0x30] sm:$0xff] %v694
      %1013 = vst [vmem:[%s150 + $0x38] sm:$0xff] %v696
      %1014 = vst [vmem:[%s150 + $0x40] sm:$0xff] %v848
      %1015 = vst [vmem:[%s150 + $0x48] sm:$0xff] %v850
      %1016 = vst [vmem:[%s150 + $0x50] sm:$0xff] %v1002
      %1017 = vst [vmem:[%s150 + $0x58] sm:$0xff] %v1004
      %s1018 = smul.u32 2, %s13
      %p1019 = scmp.lt.s32.totalorder %s1018, 13
      %s1020 = scalar_select %p1019, %s1018, 13
      %s1021 = smul.addr %s1020, 6
      %s1022 = smul.addr %s1021, 8
      %s1023 = scalar_lea.vmem %s2, %s1022
      // Predicated region
      $region29: #{feature_extractor_forward.3} parent=27 // pred_check
        %p1024 = pneg %p78
      $region30: #{feature_extractor_forward.3} parent=27 // pred_check_branch
        %1026 = sbr.rel (%p1024) target = $region32
      $region31: #{feature_extractor_forward.3} parent=27 // pred_region
        %s1027 = smul.u32 2, %s13
      $region32: #{feature_extractor_forward.3} parent=27 // pred_fallthru
        _
    $region28: #{feature_extractor_forward.3} parent=5 // pred_fallthru
      _
    %p1028 = scmp.le.s32.totalorder 2, %s8
    // Predicated region
    $region33: #{feature_extractor_forward.3} parent=5 // pred_check
      %p1029 = pneg %p1028
    $region34: #{feature_extractor_forward.3} parent=5 // pred_check_branch
      %1031 = sbr.rel (%p1029) target = $region36
    $region35: #{feature_extractor_forward.3} parent=5 // pred_region
      %s1032 = ssub.s32 %s8, 2
      // Predicated region
      $region37: #{feature_extractor_forward.3} parent=35 // pred_check
        %p1033 = pneg %p84
      $region38: #{feature_extractor_forward.3} parent=35 // pred_check_branch
        %1035 = sbr.rel (%p1033) target = $region40
      $region39: #{feature_extractor_forward.3} parent=35 // pred_region
        %s1036 = smul.u32 2, %s14
        %p1037 = scmp.lt.s32.totalorder %s1036, 13
        %s1038 = scalar_select %p1037, %s1036, 13
        %s1039 = smul.addr %s1038, 6
        %s1040 = smul.addr %s1039, 8
        %s1041 = scalar_lea.vmem %s2, %s1040
      $region40: #{feature_extractor_forward.3} parent=35 // pred_fallthru
        _
    $region36: #{feature_extractor_forward.3} parent=5 // pred_fallthru
      _
  $region6: #{feature_extractor_forward.3} parent=0 // loop_footer
    %s12 = sadd.s32 1, %s8
  $region7: #{feature_extractor_forward.3} parent=0 // loop_footer_branch
    %7 = sbr.rel target = $region3
  $region8: #{feature_extractor_forward.3} parent=0 // loop_exit
    _

// kernel: feature_extractor_forward.5
$region0: #{feature_extractor_forward.5}
  #allocation0 [shape = 'u32[]', space=smem, size = 0x4, offset = 0x4, fixed_abs, tag = 'smem constant byte address 0x4 - core index']
  #allocation1 [shape = 'u32[144,128]{1,0:T(1,128)}', space=vmem, size = 0x12000, scoped, tag = 'internal scratch']
  %s0 = inlined_call_operand.vmem [shape: f32[2,7,8,768], index: 0, kind: input, shape index: {}]
  %s1 = inlined_call_operand.vmem [shape: f32[2,1,384], index: 1, kind: input, shape index: {}]
  %s2 = inlined_call_operand.vmem [shape: f32[2,1,384], index: 2, kind: input, shape index: {}]
  %s3 = inlined_call_operand.vmem [shape: f32[2,3,384], index: 3, kind: input, shape index: {}]
  %s4 = inlined_call_operand.vmem [shape: f32[2,3,384], index: 4, kind: input, shape index: {}]
  %s5 = inlined_call_operand.vmem [shape: f32[2,3,384], index: 5, kind: input, shape index: {}]
  %s6 = inlined_call_operand.vmem [shape: f32[2,2,6,384], index: 6, kind: input, shape index: {}]
  %s7 = inlined_call_operand.vmem [shape: f32[2,2,6,384], index: 7, kind: input, shape index: {}]
  %s8 = inlined_call_operand.vmem [shape: f32[2,8,384], index: 8, kind: output, shape index: {0}]
  %s9 = inlined_call_operand.vmem [shape: f32[2,8,384], index: 9, kind: output, shape index: {1}]
  %s10 = inlined_call_operand.vmem [shape: f32[2,3,8,384], index: 10, kind: output, shape index: {2}]
  %s11 = inlined_call_operand.vmem [shape: f32[2,2,8,384], index: 11, kind: output, shape index: {3}]
  %12 = xla_tuple %s8, %s9, %s10, %s11
  %s13 = sld [smem:[#allocation0]]
  $region89: #{feature_extractor_forward.5} parent=0
    _
  %s15 = ssub.s32 1, %s13
  %s16 = scalar_select 0, %s15, %s13
  loop: start=0, step=1, limit=4
  $region2: #{feature_extractor_forward.5} parent=0 // loop_pre_header
    _
  $region3: #{feature_extractor_forward.5} parent=0 // loop_header
    %s18 = sphi 0, %s22
    %p19 = scmp.ge.s32.totalorder %s18, 4
    %s25 = sphi 0, %s37
    %s26 = sphi 0, %s33
    %s27 = sphi 0, %s25
    %s28 = sphi 0, %s26
    %s29 = sphi 0, %s27
    %s30 = sphi 0, %s28
    %s42 = sphi 0, %s44
    %s45 = sphi 0, %s42
    %s46 = sphi 0, %s45
    %s62 = sphi 0, %s46
    %s68 = sphi 0, %s70
    %s71 = sphi 0, %s68
    %s72 = sphi 0, %s71
    %s88 = sphi 0, %s72
    %s94 = sphi 0, %s96
    %s97 = sphi 0, %s94
    %s98 = sphi 0, %s97
    %s114 = sphi 0, %s98
    %s120 = sphi 0, %s122
    %s123 = sphi 0, %s120
    %s124 = sphi 0, %s123
    %s140 = sphi 0, %s124
    %s146 = sphi 0, %s148
    %s149 = sphi 0, %s146
    %s150 = sphi 0, %s149
    %s166 = sphi 0, %s150
    %s172 = sphi 0, %s174
    %s175 = sphi 0, %s172
    %s176 = sphi 0, %s175
    %s192 = sphi 0, %s176
    %s198 = sphi 0, %s200
    %s201 = sphi 0, %s198
    %s202 = sphi 0, %s201
    %s218 = sphi 0, %s202
    %s224 = sphi 0, %s226
    %s227 = sphi 0, %s224
    %s228 = sphi 0, %s227
    %s244 = sphi 0, %s228
    %s252 = sphi 0, %s254
    %s255 = sphi 0, %s252
    %s256 = sphi 0, %s255
    %s272 = sphi 0, %s256
    %s280 = sphi 0, %s282
    %s283 = sphi 0, %s280
    %s284 = sphi 0, %s283
    %s300 = sphi 0, %s284
    %s308 = sphi 0, %s310
    %s311 = sphi 0, %s308
    %s312 = sphi 0, %s311
    %s328 = sphi 0, %s312
    %s336 = sphi 0, %s338
    %s339 = sphi 0, %s336
    %s340 = sphi 0, %s339
    %s356 = sphi 0, %s340
  $region4: #{feature_extractor_forward.5} parent=0 // loop_header_branch
    %21 = sbr.rel (%p19) target = $region8
  $region5: #{feature_extractor_forward.5} parent=0 // loop_body
    %s23 = ssub.s32 %s18, 1
    %s24 = ssub.s32 %s18, 2
    %s31 = sadd.s32 1, %s26
    %p32 = scmp.ge.s32.totalorder %s31, 1
    %s33 = scalar_select %p32, 0, %s31
    %s34 = sadd.s32 1, %s25
    %s35 = scalar_select %p32, %s34, %s25
    %p36 = scmp.ge.s32.totalorder %s35, 2
    %s37 = scalar_select %p36, 0, %s35
    %s38 = ssub.s32 %s25, %s37
    %s39 = ssub.s32 %s26, %s33
    %s40 = sor.u32 %s38, %s39
    %p41 = scmp.eq.s32.totalorder %s40, 0
    %s43 = sadd.s32 %s42, 1
    %s44 = scalar_select %p41, %s42, %s43
    %p47 = pneg %p41
    %p48 = scmp.eq.s32.totalorder %s18, 1
    %p49 = por %p47, %p48
    %p50 = scmp.ne.s32.totalorder %s42, %s45
    %p51 = scmp.eq.s32.totalorder %s18, 0
    %p52 = por %p50, %p51
    %p53 = scmp.ne.s32.totalorder %s42, %s45
    %p54 = scmp.eq.s32.totalorder %s23, 1
    %p55 = por %p53, %p54
    %p56 = scmp.ne.s32.totalorder %s45, %s46
    %p57 = scmp.eq.s32.totalorder %s23, 0
    %p58 = por %p56, %p57
    %p59 = scmp.ne.s32.totalorder %s45, %s46
    %p60 = scmp.eq.s32.totalorder %s24, 1
    %p61 = por %p59, %p60
    %p63 = scmp.ne.s32.totalorder %s46, %s62
    %p64 = scmp.eq.s32.totalorder %s24, 0
    %p65 = por %p63, %p64
    %s66 = ssub.s32 %s25, %s37
    %p67 = scmp.eq.s32.totalorder %s66, 0
    %s69 = sadd.s32 %s68, 1
    %s70 = scalar_select %p67, %s68, %s69
    %p73 = pneg %p67
    %p74 = scmp.eq.s32.totalorder %s18, 1
    %p75 = por %p73, %p74
    %p76 = scmp.ne.s32.totalorder %s68, %s71
    %p77 = scmp.eq.s32.totalorder %s18, 0
    %p78 = por %p76, %p77
    %p79 = scmp.ne.s32.totalorder %s68, %s71
    %p80 = scmp.eq.s32.totalorder %s23, 1
    %p81 = por %p79, %p80
    %p82 = scmp.ne.s32.totalorder %s71, %s72
    %p83 = scmp.eq.s32.totalorder %s23, 0
    %p84 = por %p82, %p83
    %p85 = scmp.ne.s32.totalorder %s71, %s72
    %p86 = scmp.eq.s32.totalorder %s24, 1
    %p87 = por %p85, %p86
    %p89 = scmp.ne.s32.totalorder %s72, %s88
    %p90 = scmp.eq.s32.totalorder %s24, 0
    %p91 = por %p89, %p90
    %s92 = ssub.s32 %s25, %s37
    %p93 = scmp.eq.s32.totalorder %s92, 0
    %s95 = sadd.s32 %s94, 1
    %s96 = scalar_select %p93, %s94, %s95
    %p99 = pneg %p93
    %p100 = scmp.eq.s32.totalorder %s18, 1
    %p101 = por %p99, %p100
    %p102 = scmp.ne.s32.totalorder %s94, %s97
    %p103 = scmp.eq.s32.totalorder %s18, 0
    %p104 = por %p102, %p103
    %p105 = scmp.ne.s32.totalorder %s94, %s97
    %p106 = scmp.eq.s32.totalorder %s23, 1
    %p107 = por %p105, %p106
    %p108 = scmp.ne.s32.totalorder %s97, %s98
    %p109 = scmp.eq.s32.totalorder %s23, 0
    %p110 = por %p108, %p109
    %p111 = scmp.ne.s32.totalorder %s97, %s98
    %p112 = scmp.eq.s32.totalorder %s24, 1
    %p113 = por %p111, %p112
    %p115 = scmp.ne.s32.totalorder %s98, %s114
    %p116 = scmp.eq.s32.totalorder %s24, 0
    %p117 = por %p115, %p116
    %s118 = ssub.s32 %s25, %s37
    %p119 = scmp.eq.s32.totalorder %s118, 0
    %s121 = sadd.s32 %s120, 1
    %s122 = scalar_select %p119, %s120, %s121
    %p125 = pneg %p119
    %p126 = scmp.eq.s32.totalorder %s18, 1
    %p127 = por %p125, %p126
    %p128 = scmp.ne.s32.totalorder %s120, %s123
    %p129 = scmp.eq.s32.totalorder %s18, 0
    %p130 = por %p128, %p129
    %p131 = scmp.ne.s32.totalorder %s120, %s123
    %p132 = scmp.eq.s32.totalorder %s23, 1
    %p133 = por %p131, %p132
    %p134 = scmp.ne.s32.totalorder %s123, %s124
    %p135 = scmp.eq.s32.totalorder %s23, 0
    %p136 = por %p134, %p135
    %p137 = scmp.ne.s32.totalorder %s123, %s124
    %p138 = scmp.eq.s32.totalorder %s24, 1
    %p139 = por %p137, %p138
    %p141 = scmp.ne.s32.totalorder %s124, %s140
    %p142 = scmp.eq.s32.totalorder %s24, 0
    %p143 = por %p141, %p142
    %s144 = ssub.s32 %s25, %s37
    %p145 = scmp.eq.s32.totalorder %s144, 0
    %s147 = sadd.s32 %s146, 1
    %s148 = scalar_select %p145, %s146, %s147
    %p151 = pneg %p145
    %p152 = scmp.eq.s32.totalorder %s18, 1
    %p153 = por %p151, %p152
    %p154 = scmp.ne.s32.totalorder %s146, %s149
    %p155 = scmp.eq.s32.totalorder %s18, 0
    %p156 = por %p154, %p155
    %p157 = scmp.ne.s32.totalorder %s146, %s149
    %p158 = scmp.eq.s32.totalorder %s23, 1
    %p159 = por %p157, %p158
    %p160 = scmp.ne.s32.totalorder %s149, %s150
    %p161 = scmp.eq.s32.totalorder %s23, 0
    %p162 = por %p160, %p161
    %p163 = scmp.ne.s32.totalorder %s149, %s150
    %p164 = scmp.eq.s32.totalorder %s24, 1
    %p165 = por %p163, %p164
    %p167 = scmp.ne.s32.totalorder %s150, %s166
    %p168 = scmp.eq.s32.totalorder %s24, 0
    %p169 = por %p167, %p168
    %s170 = ssub.s32 %s25, %s37
    %p171 = scmp.eq.s32.totalorder %s170, 0
    %s173 = sadd.s32 %s172, 1
    %s174 = scalar_select %p171, %s172, %s173
    %p177 = pneg %p171
    %p178 = scmp.eq.s32.totalorder %s18, 1
    %p179 = por %p177, %p178
    %p180 = scmp.ne.s32.totalorder %s172, %s175
    %p181 = scmp.eq.s32.totalorder %s18, 0
    %p182 = por %p180, %p181
    %p183 = scmp.ne.s32.totalorder %s172, %s175
    %p184 = scmp.eq.s32.totalorder %s23, 1
    %p185 = por %p183, %p184
    %p186 = scmp.ne.s32.totalorder %s175, %s176
    %p187 = scmp.eq.s32.totalorder %s23, 0
    %p188 = por %p186, %p187
    %p189 = scmp.ne.s32.totalorder %s175, %s176
    %p190 = scmp.eq.s32.totalorder %s24, 1
    %p191 = por %p189, %p190
    %p193 = scmp.ne.s32.totalorder %s176, %s192
    %p194 = scmp.eq.s32.totalorder %s24, 0
    %p195 = por %p193, %p194
    %s196 = ssub.s32 %s25, %s37
    %p197 = scmp.eq.s32.totalorder %s196, 0
    %s199 = sadd.s32 %s198, 1
    %s200 = scalar_select %p197, %s198, %s199
    %p203 = pneg %p197
    %p204 = scmp.eq.s32.totalorder %s18, 1
    %p205 = por %p203, %p204
    %p206 = scmp.ne.s32.totalorder %s198, %s201
    %p207 = scmp.eq.s32.totalorder %s18, 0
    %p208 = por %p206, %p207
    %p209 = scmp.ne.s32.totalorder %s198, %s201
    %p210 = scmp.eq.s32.totalorder %s23, 1
    %p211 = por %p209, %p210
    %p212 = scmp.ne.s32.totalorder %s201, %s202
    %p213 = scmp.eq.s32.totalorder %s23, 0
    %p214 = por %p212, %p213
    %p215 = scmp.ne.s32.totalorder %s201, %s202
    %p216 = scmp.eq.s32.totalorder %s24, 1
    %p217 = por %p215, %p216
    %p219 = scmp.ne.s32.totalorder %s202, %s218
    %p220 = scmp.eq.s32.totalorder %s24, 0
    %p221 = por %p219, %p220
    %s222 = ssub.s32 %s25, %s37
    %p223 = scmp.eq.s32.totalorder %s222, 0
    %s225 = sadd.s32 %s224, 1
    %s226 = scalar_select %p223, %s224, %s225
    %p229 = pneg %p223
    %p230 = scmp.eq.s32.totalorder %s18, 1
    %p231 = por %p229, %p230
    %p232 = scmp.ne.s32.totalorder %s224, %s227
    %p233 = scmp.eq.s32.totalorder %s18, 0
    %p234 = por %p232, %p233
    %p235 = scmp.ne.s32.totalorder %s224, %s227
    %p236 = scmp.eq.s32.totalorder %s23, 1
    %p237 = por %p235, %p236
    %p238 = scmp.ne.s32.totalorder %s227, %s228
    %p239 = scmp.eq.s32.totalorder %s23, 0
    %p240 = por %p238, %p239
    %p241 = scmp.ne.s32.totalorder %s227, %s228
    %p242 = scmp.eq.s32.totalorder %s24, 1
    %p243 = por %p241, %p242
    %p245 = scmp.ne.s32.totalorder %s228, %s244
    %p246 = scmp.eq.s32.totalorder %s24, 0
    %p247 = por %p245, %p246
    %s248 = ssub.s32 %s25, %s37
    %s249 = ssub.s32 %s26, %s33
    %s250 = sor.u32 %s248, %s249
    %p251 = scmp.eq.s32.totalorder %s250, 0
    %s253 = sadd.s32 %s252, 1
    %s254 = scalar_select %p251, %s252, %s253
    %p257 = pneg %p251
    %p258 = scmp.eq.s32.totalorder %s18, 1
    %p259 = por %p257, %p258
    %p260 = scmp.ne.s32.totalorder %s252, %s255
    %p261 = scmp.eq.s32.totalorder %s18, 0
    %p262 = por %p260, %p261
    %p263 = scmp.ne.s32.totalorder %s252, %s255
    %p264 = scmp.eq.s32.totalorder %s23, 1
    %p265 = por %p263, %p264
    %p266 = scmp.ne.s32.totalorder %s255, %s256
    %p267 = scmp.eq.s32.totalorder %s23, 0
    %p268 = por %p266, %p267
    %p269 = scmp.ne.s32.totalorder %s255, %s256
    %p270 = scmp.eq.s32.totalorder %s24, 1
    %p271 = por %p269, %p270
    %p273 = scmp.ne.s32.totalorder %s256, %s272
    %p274 = scmp.eq.s32.totalorder %s24, 0
    %p275 = por %p273, %p274
    %s276 = ssub.s32 %s25, %s37
    %s277 = ssub.s32 %s26, %s33
    %s278 = sor.u32 %s276, %s277
    %p279 = scmp.eq.s32.totalorder %s278, 0
    %s281 = sadd.s32 %s280, 1
    %s282 = scalar_select %p279, %s280, %s281
    %p285 = pneg %p279
    %p286 = scmp.eq.s32.totalorder %s18, 1
    %p287 = por %p285, %p286
    %p288 = scmp.ne.s32.totalorder %s280, %s283
    %p289 = scmp.eq.s32.totalorder %s18, 0
    %p290 = por %p288, %p289
    %p291 = scmp.ne.s32.totalorder %s280, %s283
    %p292 = scmp.eq.s32.totalorder %s23, 1
    %p293 = por %p291, %p292
    %p294 = scmp.ne.s32.totalorder %s283, %s284
    %p295 = scmp.eq.s32.totalorder %s23, 0
    %p296 = por %p294, %p295
    %p297 = scmp.ne.s32.totalorder %s283, %s284
    %p298 = scmp.eq.s32.totalorder %s24, 1
    %p299 = por %p297, %p298
    %p301 = scmp.ne.s32.totalorder %s284, %s300
    %p302 = scmp.eq.s32.totalorder %s24, 0
    %p303 = por %p301, %p302
    %s304 = ssub.s32 %s25, %s37
    %s305 = ssub.s32 %s26, %s33
    %s306 = sor.u32 %s304, %s305
    %p307 = scmp.eq.s32.totalorder %s306, 0
    %s309 = sadd.s32 %s308, 1
    %s310 = scalar_select %p307, %s308, %s309
    %p313 = pneg %p307
    %p314 = scmp.eq.s32.totalorder %s18, 1
    %p315 = por %p313, %p314
    %p316 = scmp.ne.s32.totalorder %s308, %s311
    %p317 = scmp.eq.s32.totalorder %s18, 0
    %p318 = por %p316, %p317
    %p319 = scmp.ne.s32.totalorder %s308, %s311
    %p320 = scmp.eq.s32.totalorder %s23, 1
    %p321 = por %p319, %p320
    %p322 = scmp.ne.s32.totalorder %s311, %s312
    %p323 = scmp.eq.s32.totalorder %s23, 0
    %p324 = por %p322, %p323
    %p325 = scmp.ne.s32.totalorder %s311, %s312
    %p326 = scmp.eq.s32.totalorder %s24, 1
    %p327 = por %p325, %p326
    %p329 = scmp.ne.s32.totalorder %s312, %s328
    %p330 = scmp.eq.s32.totalorder %s24, 0
    %p331 = por %p329, %p330
    %s332 = ssub.s32 %s25, %s37
    %s333 = ssub.s32 %s26, %s33
    %s334 = sor.u32 %s332, %s333
    %p335 = scmp.eq.s32.totalorder %s334, 0
    %s337 = sadd.s32 %s336, 1
    %s338 = scalar_select %p335, %s336, %s337
    %p341 = pneg %p335
    %p342 = scmp.eq.s32.totalorder %s18, 1
    %p343 = por %p341, %p342
    %p344 = scmp.ne.s32.totalorder %s336, %s339
    %p345 = scmp.eq.s32.totalorder %s18, 0
    %p346 = por %p344, %p345
    %p347 = scmp.ne.s32.totalorder %s336, %s339
    %p348 = scmp.eq.s32.totalorder %s23, 1
    %p349 = por %p347, %p348
    %p350 = scmp.ne.s32.totalorder %s339, %s340
    %p351 = scmp.eq.s32.totalorder %s23, 0
    %p352 = por %p350, %p351
    %p353 = scmp.ne.s32.totalorder %s339, %s340
    %p354 = scmp.eq.s32.totalorder %s24, 1
    %p355 = por %p353, %p354
    %p357 = scmp.ne.s32.totalorder %s340, %s356
    %p358 = scmp.eq.s32.totalorder %s24, 0
    %p359 = por %p357, %p358
    %p360 = scmp.le.s32.totalorder 1, %s18
    %p361 = scmp.lt.s32.totalorder %s18, 3
    %p362 = pnand %p360, %p361
    %p363 = pneg %p362
    // Predicated region
    $region9: #{feature_extractor_forward.5} parent=5 // pred_check
      _
    $region10: #{feature_extractor_forward.5} parent=5 // pred_check_branch
      %365 = sbr.rel (%p362) target = $region12
    $region11: #{feature_extractor_forward.5} parent=5 // pred_region
      %s366 = ssub.s32 %s18, 1
    $region12: #{feature_extractor_forward.5} parent=5 // pred_fallthru
      _
    %p367 = scmp.lt.s32.totalorder %s18, 2
    // Predicated region
    $region13: #{feature_extractor_forward.5} parent=5 // pred_check
      %p368 = pneg %p367
    $region14: #{feature_extractor_forward.5} parent=5 // pred_check_branch
      %370 = sbr.rel (%p368) target = $region16
    $region15: #{feature_extractor_forward.5} parent=5 // pred_region
      // Predicated region
      $region17: #{feature_extractor_forward.5} parent=15 // pred_check
        %p371 = pneg %p52
      $region18: #{feature_extractor_forward.5} parent=15 // pred_check_branch
        %373 = sbr.rel (%p371) target = $region20
      $region19: #{feature_extractor_forward.5} parent=15 // pred_region
        %p374 = scmp.lt.s32.totalorder %s25, 1
        %s375 = scalar_select %p374, %s25, 1
        %p376 = scmp.lt.s32.totalorder %s26, 0
        %s377 = scalar_select %p376, %s26, 0
        %s378 = smul.addr %s377, 6
        %s379 = smul.addr %s375, 42
        %s380 = sadd.s32 %s378, %s379
        %s381 = smul.addr %s380, 8
        %s382 = scalar_lea.vmem %s0, %s381
      $region20: #{feature_extractor_forward.5} parent=15 // pred_fallthru
        _
      // Predicated region
      $region21: #{feature_extractor_forward.5} parent=15 // pred_check
        %p383 = pneg %p78
      $region22: #{feature_extractor_forward.5} parent=15 // pred_check_branch
        %385 = sbr.rel (%p383) target = $region24
      $region23: #{feature_extractor_forward.5} parent=15 // pred_region
        %p386 = scmp.lt.s32.totalorder %s25, 1
        %s387 = scalar_select %p386, %s25, 1
        %s388 = smul.addr %s387, 3
        %s389 = scalar_lea.vmem %s1, %s388
      $region24: #{feature_extractor_forward.5} parent=15 // pred_fallthru
        _
      // Predicated region
      $region25: #{feature_extractor_forward.5} parent=15 // pred_check
        %p390 = pneg %p104
      $region26: #{feature_extractor_forward.5} parent=15 // pred_check_branch
        %392 = sbr.rel (%p390) target = $region28
      $region27: #{feature_extractor_forward.5} parent=15 // pred_region
        %p393 = scmp.lt.s32.totalorder %s25, 1
        %s394 = scalar_select %p393, %s25, 1
        %s395 = smul.addr %s394, 3
        %s396 = scalar_lea.vmem %s2, %s395
      $region28: #{feature_extractor_forward.5} parent=15 // pred_fallthru
        _
      // Predicated region
      $region29: #{feature_extractor_forward.5} parent=15 // pred_check
        %p397 = pneg %p130
      $region30: #{feature_extractor_forward.5} parent=15 // pred_check_branch
        %399 = sbr.rel (%p397) target = $region32
      $region31: #{feature_extractor_forward.5} parent=15 // pred_region
        %p400 = scmp.lt.s32.totalorder %s25, 1
        %s401 = scalar_select %p400, %s25, 1
        %s402 = smul.addr %s401, 3
        %s403 = smul.addr %s402, 4
        %s404 = scalar_lea.vmem %s3, %s403
      $region32: #{feature_extractor_forward.5} parent=15 // pred_fallthru
        _
      // Predicated region
      $region33: #{feature_extractor_forward.5} parent=15 // pred_check
        %p405 = pneg %p156
      $region34: #{feature_extractor_forward.5} parent=15 // pred_check_branch
        %407 = sbr.rel (%p405) target = $region36
      $region35: #{feature_extractor_forward.5} parent=15 // pred_region
        %p408 = scmp.lt.s32.totalorder %s25, 1
        %s409 = scalar_select %p408, %s25, 1
        %s410 = smul.addr %s409, 3
        %s411 = smul.addr %s410, 4
        %s412 = scalar_lea.vmem %s4, %s411
      $region36: #{feature_extractor_forward.5} parent=15 // pred_fallthru
        _
      // Predicated region
      $region37: #{feature_extractor_forward.5} parent=15 // pred_check
        %p413 = pneg %p182
      $region38: #{feature_extractor_forward.5} parent=15 // pred_check_branch
        %415 = sbr.rel (%p413) target = $region40
      $region39: #{feature_extractor_forward.5} parent=15 // pred_region
        %p416 = scmp.lt.s32.totalorder %s25, 1
        %s417 = scalar_select %p416, %s25, 1
        %s418 = smul.addr %s417, 3
        %s419 = smul.addr %s418, 4
        %s420 = scalar_lea.vmem %s5, %s419
      $region40: #{feature_extractor_forward.5} parent=15 // pred_fallthru
        _
      // Predicated region
      $region41: #{feature_extractor_forward.5} parent=15 // pred_check
        %p421 = pneg %p208
      $region42: #{feature_extractor_forward.5} parent=15 // pred_check_branch
        %423 = sbr.rel (%p421) target = $region44
      $region43: #{feature_extractor_forward.5} parent=15 // pred_region
        %p424 = scmp.lt.s32.totalorder %s25, 1
        %s425 = scalar_select %p424, %s25, 1
        %s426 = smul.addr %s425, 6
        %s427 = smul.addr %s426, 8
        %s428 = scalar_lea.vmem %s6, %s427
      $region44: #{feature_extractor_forward.5} parent=15 // pred_fallthru
        _
      // Predicated region
      $region45: #{feature_extractor_forward.5} parent=15 // pred_check
        %p429 = pneg %p234
      $region46: #{feature_extractor_forward.5} parent=15 // pred_check_branch
        %431 = sbr.rel (%p429) target = $region48
      $region47: #{feature_extractor_forward.5} parent=15 // pred_region
        %p432 = scmp.lt.s32.totalorder %s25, 1
        %s433 = scalar_select %p432, %s25, 1
        %s434 = smul.addr %s433, 6
        %s435 = smul.addr %s434, 8
        %s436 = scalar_lea.vmem %s7, %s435
      $region48: #{feature_extractor_forward.5} parent=15 // pred_fallthru
        _
    $region16: #{feature_extractor_forward.5} parent=5 // pred_fallthru
      _
    %p437 = scmp.le.s32.totalorder 1, %s18
    %p438 = scmp.lt.s32.totalorder %s18, 3
    %p439 = pnand %p437, %p438
    %p440 = pneg %p439
    // Predicated region
    $region49: #{feature_extractor_forward.5} parent=5 // pred_check
      _
    $region50: #{feature_extractor_forward.5} parent=5 // pred_check_branch
      %442 = sbr.rel (%p439) target = $region52
    $region51: #{feature_extractor_forward.5} parent=5 // pred_region
      %s443 = ssub.s32 %s18, 1
      %p444 = scmp.lt.s32.totalorder %s27, 1
      %s445 = scalar_select %p444, %s27, 1
      %p446 = scmp.lt.s32.totalorder %s28, 0
      %s447 = scalar_select %p446, %s28, 0
      %s448 = smul.addr %s447, 6
      %s449 = smul.addr %s445, 42
      %s450 = sadd.s32 %s448, %s449
      %s451 = smul.addr %s450, 8
      %s452 = scalar_lea.vmem %s0, %s451
      %p453 = pneg %p58
      %p454 = pneg %p55
      %p455 = scmp.lt.s32.totalorder %s27, 1
      %s456 = scalar_select %p455, %s27, 1
      %s457 = smul.addr %s456, 3
      %s458 = scalar_lea.vmem %s1, %s457
      %p459 = pneg %p84
      %p460 = pneg %p81
      %p461 = scmp.lt.s32.totalorder %s27, 1
      %s462 = scalar_select %p461, %s27, 1
      %s463 = smul.addr %s462, 3
      %s464 = scalar_lea.vmem %s2, %s463
      %p465 = pneg %p110
      %p466 = pneg %p107
      %p467 = scmp.lt.s32.totalorder %s27, 1
      %s468 = scalar_select %p467, %s27, 1
      %s469 = smul.addr %s468, 3
      %s470 = smul.addr %s469, 4
      %s471 = scalar_lea.vmem %s3, %s470
      %p472 = pneg %p136
      %p473 = pneg %p133
      %p474 = scmp.lt.s32.totalorder %s27, 1
      %s475 = scalar_select %p474, %s27, 1
      %s476 = smul.addr %s475, 3
      %s477 = smul.addr %s476, 4
      %s478 = scalar_lea.vmem %s4, %s477
      %p479 = pneg %p162
      %p480 = pneg %p159
      %p481 = scmp.lt.s32.totalorder %s27, 1
      %s482 = scalar_select %p481, %s27, 1
      %s483 = smul.addr %s482, 3
      %s484 = smul.addr %s483, 4
      %s485 = scalar_lea.vmem %s5, %s484
      %p486 = pneg %p188
      %p487 = pneg %p185
      %p488 = scmp.lt.s32.totalorder %s27, 1
      %s489 = scalar_select %p488, %s27, 1
      %s490 = smul.addr %s489, 6
      %s491 = smul.addr %s490, 8
      %s492 = scalar_lea.vmem %s6, %s491
      %p493 = pneg %p214
      %p494 = pneg %p211
      %p495 = scmp.lt.s32.totalorder %s27, 1
      %s496 = scalar_select %p495, %s27, 1
      %s497 = smul.addr %s496, 6
      %s498 = smul.addr %s497, 8
      %s499 = scalar_lea.vmem %s7, %s498
      %p500 = pneg %p240
      %p501 = pneg %p237
      %p502 = pneg %p268
      %p503 = pneg %p265
      %p504 = scmp.lt.s32.totalorder %s27, 1
      %s505 = scalar_select %p504, %s27, 1
      %p506 = scmp.lt.s32.totalorder %s28, 0
      %s507 = scalar_select %p506, %s28, 0
      %s508 = smul.addr %s507, 3
      %s509 = smul.addr %s505, 3
      %s510 = sadd.s32 %s508, %s509
      %s511 = smul.addr %s510, 8
      %s512 = scalar_lea.vmem %s8, %s511
      %p513 = pneg %p296
      %p514 = pneg %p293
      %p515 = scmp.lt.s32.totalorder %s27, 1
      %s516 = scalar_select %p515, %s27, 1
      %p517 = scmp.lt.s32.totalorder %s28, 0
      %s518 = scalar_select %p517, %s28, 0
      %s519 = smul.addr %s518, 3
      %s520 = smul.addr %s516, 3
      %s521 = sadd.s32 %s519, %s520
      %s522 = smul.addr %s521, 8
      %s523 = scalar_lea.vmem %s9, %s522
      %p524 = pneg %p324
      %p525 = pneg %p321
      %p526 = scmp.lt.s32.totalorder %s27, 1
      %s527 = scalar_select %p526, %s27, 1
      %p528 = scmp.lt.s32.totalorder %s28, 0
      %s529 = scalar_select %p528, %s28, 0
      %s530 = smul.addr %s529, 3
      %s531 = smul.addr %s527, 9
      %s532 = sadd.s32 %s530, %s531
      %s533 = smul.addr %s532, 8
      %s534 = scalar_lea.vmem %s10, %s533
      %p535 = pneg %p352
      %p536 = pneg %p349
      %p537 = scmp.lt.s32.totalorder %s27, 1
      %s538 = scalar_select %p537, %s27, 1
      %p539 = scmp.lt.s32.totalorder %s28, 0
      %s540 = scalar_select %p539, %s28, 0
      %s541 = smul.addr %s540, 3
      %s542 = smul.addr %s538, 6
      %s543 = sadd.s32 %s541, %s542
      %s544 = smul.addr %s543, 8
      %s545 = scalar_lea.vmem %s11, %s544
      %p546 = scmp.lt.s32.totalorder %s27, 1
      %s547 = scalar_select %p546, %s27, 1
      %p548 = scmp.lt.s32.totalorder %s28, 0
      %s549 = scalar_select %p548, %s28, 0
      %s550 = smul.addr %s549, 6
      %s551 = smul.addr %s547, 42
      %s552 = sadd.s32 %s550, %s551
      %s553 = smul.addr %s552, 8
      %s554 = scalar_lea.vmem %s0, %s553
      %p555 = scmp.lt.s32.totalorder %s27, 1
      %s556 = scalar_select %p555, %s27, 1
      %s557 = smul.addr %s556, 3
      %s558 = scalar_lea.vmem %s1, %s557
      %p559 = scmp.lt.s32.totalorder %s27, 1
      %s560 = scalar_select %p559, %s27, 1
      %s561 = smul.addr %s560, 3
      %s562 = scalar_lea.vmem %s2, %s561
      %p563 = scmp.lt.s32.totalorder %s27, 1
      %s564 = scalar_select %p563, %s27, 1
      %s565 = smul.addr %s564, 3
      %s566 = smul.addr %s565, 4
      %s567 = scalar_lea.vmem %s3, %s566
      %p568 = scmp.lt.s32.totalorder %s27, 1
      %s569 = scalar_select %p568, %s27, 1
      %s570 = smul.addr %s569, 3
      %s571 = smul.addr %s570, 4
      %s572 = scalar_lea.vmem %s4, %s571
      %p573 = scmp.lt.s32.totalorder %s27, 1
      %s574 = scalar_select %p573, %s27, 1
      %s575 = smul.addr %s574, 3
      %s576 = smul.addr %s575, 4
      %s577 = scalar_lea.vmem %s5, %s576
      %p578 = scmp.lt.s32.totalorder %s27, 1
      %s579 = scalar_select %p578, %s27, 1
      %s580 = smul.addr %s579, 6
      %s581 = smul.addr %s580, 8
      %s582 = scalar_lea.vmem %s6, %s581
      %p583 = scmp.lt.s32.totalorder %s27, 1
      %s584 = scalar_select %p583, %s27, 1
      %s585 = smul.addr %s584, 6
      %s586 = smul.addr %s585, 8
      %s587 = scalar_lea.vmem %s7, %s586
      %p588 = scmp.lt.s32.totalorder %s27, 1
      %s589 = scalar_select %p588, %s27, 1
      %p590 = scmp.lt.s32.totalorder %s28, 0
      %s591 = scalar_select %p590, %s28, 0
      %s592 = smul.addr %s591, 3
      %s593 = smul.addr %s589, 3
      %s594 = sadd.s32 %s592, %s593
      %s595 = smul.addr %s594, 8
      %s596 = scalar_lea.vmem %s8, %s595
      %p597 = scmp.lt.s32.totalorder %s27, 1
      %s598 = scalar_select %p597, %s27, 1
      %p599 = scmp.lt.s32.totalorder %s28, 0
      %s600 = scalar_select %p599, %s28, 0
      %s601 = smul.addr %s600, 3
      %s602 = smul.addr %s598, 3
      %s603 = sadd.s32 %s601, %s602
      %s604 = smul.addr %s603, 8
      %s605 = scalar_lea.vmem %s9, %s604
      %p606 = scmp.lt.s32.totalorder %s27, 1
      %s607 = scalar_select %p606, %s27, 1
      %p608 = scmp.lt.s32.totalorder %s28, 0
      %s609 = scalar_select %p608, %s28, 0
      %s610 = smul.addr %s609, 3
      %s611 = smul.addr %s607, 9
      %s612 = sadd.s32 %s610, %s611
      %s613 = smul.addr %s612, 8
      %s614 = scalar_lea.vmem %s10, %s613
      %p615 = scmp.lt.s32.totalorder %s27, 1
      %s616 = scalar_select %p615, %s27, 1
      %p617 = scmp.lt.s32.totalorder %s28, 0
      %s618 = scalar_select %p617, %s28, 0
      %s619 = smul.addr %s618, 3
      %s620 = smul.addr %s616, 6
      %s621 = sadd.s32 %s619, %s620
      %s622 = smul.addr %s621, 8
      %s623 = scalar_lea.vmem %s11, %s622
      %v624 = vld [vmem:[%s554] sm:$0xff]
      %v625 = vld [vmem:[%s554 + $0x8] sm:$0xff]
      %v626 = vld [vmem:[%s554 + $0x10] sm:$0xff]
      %v627 = vld [vmem:[%s554 + $0x18] sm:$0xff]
      %v628 = vld [vmem:[%s554 + $0x20] sm:$0xff]
      %v629 = vld [vmem:[%s554 + $0x28] sm:$0xff]
      %v630 = vld [vmem:[%s554 + $0x30] sm:$0xff]
      %v631 = vld [vmem:[%s554 + $0x38] sm:$0xff]
      %v632 = vld [vmem:[%s554 + $0x40] sm:$0xff]
      %v633 = vld [vmem:[%s554 + $0x48] sm:$0xff]
      %v634 = vld [vmem:[%s554 + $0x50] sm:$0xff]
      %v635 = vld [vmem:[%s554 + $0x58] sm:$0xff]
      %v636 = vld [vmem:[%s554 + $0x60] sm:$0xff]
      %v637 = vld [vmem:[%s554 + $0x68] sm:$0xff]
      %v638 = vld [vmem:[%s554 + $0x70] sm:$0xff]
      %v639 = vld [vmem:[%s554 + $0x78] sm:$0xff]
      %v640 = vld [vmem:[%s554 + $0x80] sm:$0xff]
      %v641 = vld [vmem:[%s554 + $0x88] sm:$0xff]
      %v642 = vld [vmem:[%s554 + $0x90] sm:$0xff]
      %v643 = vld [vmem:[%s554 + $0x98] sm:$0xff]
      %v644 = vld [vmem:[%s554 + $0xa0] sm:$0xff]
      %v645 = vld [vmem:[%s554 + $0xa8] sm:$0xff]
      %v646 = vld [vmem:[%s554 + $0xb0] sm:$0xff]
      %v647 = vld [vmem:[%s554 + $0xb8] sm:$0xff]
      %v648 = vld [vmem:[%s554 + $0xc0] sm:$0xff]
      %v649 = vld [vmem:[%s554 + $0xc8] sm:$0xff]
      %v650 = vld [vmem:[%s554 + $0xd0] sm:$0xff]
      %v651 = vld [vmem:[%s554 + $0xd8] sm:$0xff]
      %v652 = vld [vmem:[%s554 + $0xe0] sm:$0xff]
      %v653 = vld [vmem:[%s554 + $0xe8] sm:$0xff]
      %v654 = vld [vmem:[%s554 + $0xf0] sm:$0xff]
      %v655 = vld [vmem:[%s554 + $0xf8] sm:$0xff]
      %v656 = vld [vmem:[%s554 + $0x100] sm:$0xff]
      %v657 = vld [vmem:[%s554 + $0x108] sm:$0xff]
      %v658 = vld [vmem:[%s554 + $0x110] sm:$0xff]
      %v659 = vld [vmem:[%s554 + $0x118] sm:$0xff]
      %v660 = vld [vmem:[%s554 + $0x120] sm:$0xff]
      %v661 = vld [vmem:[%s554 + $0x128] sm:$0xff]
      %v662 = vld [vmem:[%s554 + $0x130] sm:$0xff]
      %v663 = vld [vmem:[%s554 + $0x138] sm:$0xff]
      %v664 = vld [vmem:[%s554 + $0x140] sm:$0xff]
      %v665 = vld [vmem:[%s554 + $0x148] sm:$0xff]
      %v666 = vmul.f32 %v624, %v624
      %v667 = vmul.f32 %v625, %v625
      %v668 = vmul.f32 %v626, %v626
      %v669 = vmul.f32 %v627, %v627
      %v670 = vmul.f32 %v628, %v628
      %v671 = vmul.f32 %v629, %v629
      %v672 = vadd.f32 %v666, %v669
      %v673 = vadd.f32 %v667, %v670
      %v674 = vadd.f32 %v668, %v671
      %v675 = vrsqrt.pop %v672
      %v676 = vmul.f32 %v672, %v675
      %vm677 = vcmp.eq.f32.partialorder %v672, inf
      %v678 = vsel %vm677, %v672, %v676
      %vm679 = vcmp.eq.f32.partialorder %v672, 0.0
      %v680 = vand.u32 %v672, 2147483648
      %v681 = vsel %vm679, %v680, %v678
      %v682 = vrsqrt.pop %v673
      %v683 = vmul.f32 %v673, %v682
      %vm684 = vcmp.eq.f32.partialorder %v673, inf
      %v685 = vsel %vm684, %v673, %v683
      %vm686 = vcmp.eq.f32.partialorder %v673, 0.0
      %v687 = vand.u32 %v673, 2147483648
      %v688 = vsel %vm686, %v687, %v685
      %v689 = vrsqrt.pop %v674
      %v690 = vmul.f32 %v674, %v689
      %vm691 = vcmp.eq.f32.partialorder %v674, inf
      %v692 = vsel %vm691, %v674, %v690
      %vm693 = vcmp.eq.f32.partialorder %v674, 0.0
      %v694 = vand.u32 %v674, 2147483648
      %v695 = vsel %vm693, %v694, %v692
      %696 = vst [vmem:[%s596] sm:$0xff] %v681
      %697 = vst [vmem:[%s596 + $0x8] sm:$0xff] %v688
      %698 = vst [vmem:[%s596 + $0x10] sm:$0xff] %v695
      %v699 = vmax.f32 %v681, 1.1920929e-07
      %v700 = vmax.f32 %v688, 1.1920929e-07
      %v701 = vmax.f32 %v695, 1.1920929e-07
      %v702 = vlog2.pop %v699
      %v703 = vmul.f32 %v702, 0.6931472
      %v704 = vlog2.pop %v700
      %v705 = vmul.f32 %v704, 0.6931472
      %v706 = vlog2.pop %v701
      %v707 = vmul.f32 %v706, 0.6931472
      %v708 = vld [vmem:[%s558] sm:$0x7]
      %v710 = vlaneseq
      %v711 = vshrl.u32 %v710, 7
      %v712 = vsub.s32 0, %v711
      %v713 = vrot.slane %v708, %v712
      %v714 = vlaneseq
      %v715 = vshrl.u32 %v714, 7
      %v716 = vsub.s32 1, %v715
      %v717 = vrot.slane %v708, %v716
      %v718 = vlaneseq
      %v719 = vshrl.u32 %v718, 7
      %v720 = vsub.s32 2, %v719
      %v721 = vrot.slane %v708, %v720
      %v725 = vsub.f32 %v703, %v713
      %v726 = vsub.f32 %v705, %v717
      %v727 = vsub.f32 %v707, %v721
      %v728 = vld [vmem:[%s562] sm:$0x7]
      %v730 = vlaneseq
      %v731 = vshrl.u32 %v730, 7
      %v732 = vsub.s32 0, %v731
      %v733 = vrot.slane %v728, %v732
      %v734 = vlaneseq
      %v735 = vshrl.u32 %v734, 7
      %v736 = vsub.s32 1, %v735
      %v737 = vrot.slane %v728, %v736
      %v738 = vlaneseq
      %v739 = vshrl.u32 %v738, 7
      %v740 = vsub.s32 2, %v739
      %v741 = vrot.slane %v728, %v740
      %v745 = vmul.f32 %v725, %v733
      %v746 = vmul.f32 %v726, %v737
      %v747 = vmul.f32 %v727, %v741
      %748 = vst [vmem:[%s605] sm:$0xff] %v745
      %749 = vst [vmem:[%s605 + $0x8] sm:$0xff] %v746
      %750 = vst [vmem:[%s605 + $0x10] sm:$0xff] %v747
      %v751 = vmul.f32 %v630, %v630
      %v752 = vmul.f32 %v631, %v631
      %v753 = vmul.f32 %v632, %v632
      %v754 = vmul.f32 %v636, %v636
      %v755 = vmul.f32 %v637, %v637
      %v756 = vmul.f32 %v638, %v638
      %v757 = vmul.f32 %v642, %v642
      %v758 = vmul.f32 %v643, %v643
      %v759 = vmul.f32 %v644, %v644
      %v760 = vmul.f32 %v633, %v633
      %v761 = vmul.f32 %v634, %v634
      %v762 = vmul.f32 %v635, %v635
      %v763 = vmul.f32 %v639, %v639
      %v764 = vmul.f32 %v640, %v640
      %v765 = vmul.f32 %v641, %v641
      %v766 = vmul.f32 %v645, %v645
      %v767 = vmul.f32 %v646, %v646
      %v768 = vmul.f32 %v647, %v647
      %v769 = vadd.f32 %v751, %v760
      %v770 = vadd.f32 %v752, %v761
      %v771 = vadd.f32 %v753, %v762
      %v772 = vadd.f32 %v754, %v763
      %v773 = vadd.f32 %v755, %v764
      %v774 = vadd.f32 %v756, %v765
      %v775 = vadd.f32 %v757, %v766
      %v776 = vadd.f32 %v758, %v767
      %v777 = vadd.f32 %v759, %v768
      %v778 = vmul.f32 %v648, %v648
      %v779 = vmul.f32 %v649, %v649
      %v780 = vmul.f32 %v650, %v650
      %v781 = vmul.f32 %v654, %v654
      %v782 = vmul.f32 %v655, %v655
      %v783 = vmul.f32 %v656, %v656
      %v784 = vmul.f32 %v660, %v660
      %v785 = vmul.f32 %v661, %v661
      %v786 = vmul.f32 %v662, %v662
      %v787 = vmul.f32 %v651, %v651
      %v788 = vmul.f32 %v652, %v652
      %v789 = vmul.f32 %v653, %v653
      %v790 = vmul.f32 %v657, %v657
      %v791 = vmul.f32 %v658, %v658
      %v792 = vmul.f32 %v659, %v659
      %v793 = vmul.f32 %v663, %v663
      %v794 = vmul.f32 %v664, %v664
      %v795 = vmul.f32 %v665, %v665
      %v796 = vadd.f32 %v778, %v787
      %v797 = vadd.f32 %v779, %v788
      %v798 = vadd.f32 %v780, %v789
      %v799 = vadd.f32 %v781, %v790
      %v800 = vadd.f32 %v782, %v791
      %v801 = vadd.f32 %v783, %v792
      %v802 = vadd.f32 %v784, %v793
      %v803 = vadd.f32 %v785, %v794
      %v804 = vadd.f32 %v786, %v795
      %v805 = vmul.f32 %v769, %v796
      %v806 = vmul.f32 %v770, %v797
      %v807 = vmul.f32 %v771, %v798
      %v808 = vmul.f32 %v772, %v799
      %v809 = vmul.f32 %v773, %v800
      %v810 = vmul.f32 %v774, %v801
      %v811 = vmul.f32 %v775, %v802
      %v812 = vmul.f32 %v776, %v803
      %v813 = vmul.f32 %v777, %v804
      %v814 = vadd.f32 %v805, 1.4210855e-14
      %v815 = vadd.f32 %v806, 1.4210855e-14
      %v816 = vadd.f32 %v807, 1.4210855e-14
      %v817 = vadd.f32 %v808, 1.4210855e-14
      %v818 = vadd.f32 %v809, 1.4210855e-14
      %v819 = vadd.f32 %v810, 1.4210855e-14
      %v820 = vadd.f32 %v811, 1.4210855e-14
      %v821 = vadd.f32 %v812, 1.4210855e-14
      %v822 = vadd.f32 %v813, 1.4210855e-14
      %v823 = vrsqrt.pop %v814
      %v824 = vrsqrt.pop %v815
      %v825 = vrsqrt.pop %v816
      %v826 = vrsqrt.pop %v817
      %v827 = vrsqrt.pop %v818
      %v828 = vrsqrt.pop %v819
      %v829 = vrsqrt.pop %v820
      %v830 = vrsqrt.pop %v821
      %v831 = vrsqrt.pop %v822
      %v832 = vmul.f32 %v630, %v648
      %v833 = vmul.f32 %v631, %v649
      %v834 = vmul.f32 %v632, %v650
      %v835 = vmul.f32 %v636, %v654
      %v836 = vmul.f32 %v637, %v655
      %v837 = vmul.f32 %v638, %v656
      %v838 = vmul.f32 %v642, %v660
      %v839 = vmul.f32 %v643, %v661
      %v840 = vmul.f32 %v644, %v662
      %v841 = vmul.f32 %v633, %v651
      %v842 = vmul.f32 %v634, %v652
      %v843 = vmul.f32 %v635, %v653
      %v844 = vmul.f32 %v639, %v657
      %v845 = vmul.f32 %v640, %v658
      %v846 = vmul.f32 %v641, %v659
      %v847 = vmul.f32 %v645, %v663
      %v848 = vmul.f32 %v646, %v664
      %v849 = vmul.f32 %v647, %v665
      %v850 = vadd.f32 %v832, %v841
      %v851 = vadd.f32 %v833, %v842
      %v852 = vadd.f32 %v834, %v843
      %v853 = vadd.f32 %v835, %v844
      %v854 = vadd.f32 %v836, %v845
      %v855 = vadd.f32 %v837, %v846
      %v856 = vadd.f32 %v838, %v847
      %v857 = vadd.f32 %v839, %v848
      %v858 = vadd.f32 %v840, %v849
      %v859 = vmul.f32 %v850, %v823
      %v860 = vmul.f32 %v851, %v824
      %v861 = vmul.f32 %v852, %v825
      %v862 = vmul.f32 %v853, %v826
      %v863 = vmul.f32 %v854, %v827
      %v864 = vmul.f32 %v855, %v828
      %v865 = vmul.f32 %v856, %v829
      %v866 = vmul.f32 %v857, %v830
      %v867 = vmul.f32 %v858, %v831
      %v868 = vmul.f32 %v633, %v648
      %v869 = vmul.f32 %v634, %v649
      %v870 = vmul.f32 %v635, %v650
      %v871 = vmul.f32 %v639, %v654
      %v872 = vmul.f32 %v640, %v655
      %v873 = vmul.f32 %v641, %v656
      %v874 = vmul.f32 %v645, %v660
      %v875 = vmul.f32 %v646, %v661
      %v876 = vmul.f32 %v647, %v662
      %v877 = vmul.f32 %v630, %v651
      %v878 = vmul.f32 %v631, %v652
      %v879 = vmul.f32 %v632, %v653
      %v880 = vmul.f32 %v636, %v657
      %v881 = vmul.f32 %v637, %v658
      %v882 = vmul.f32 %v638, %v659
      %v883 = vmul.f32 %v642, %v663
      %v884 = vmul.f32 %v643, %v664
      %v885 = vmul.f32 %v644, %v665
      %v886 = vsub.f32 %v868, %v877
      %v887 = vsub.f32 %v869, %v878
      %v888 = vsub.f32 %v870, %v879
      %v889 = vsub.f32 %v871, %v880
      %v890 = vsub.f32 %v872, %v881
      %v891 = vsub.f32 %v873, %v882
      %v892 = vsub.f32 %v874, %v883
      %v893 = vsub.f32 %v875, %v884
      %v894 = vsub.f32 %v876, %v885
      %v895 = vmul.f32 %v886, %v823
      %v896 = vmul.f32 %v887, %v824
      %v897 = vmul.f32 %v888, %v825
      %v898 = vmul.f32 %v889, %v826
      %v899 = vmul.f32 %v890, %v827
      %v900 = vmul.f32 %v891, %v828
      %v901 = vmul.f32 %v892, %v829
      %v902 = vmul.f32 %v893, %v830
      %v903 = vmul.f32 %v894, %v831
      %v904 = vld [vmem:[%s567] sm:$0x77]
      %v905 = vld [vmem:[%s567 + $0x8] sm:$0x7]
      %v909 = vunpack.c.l.s4 1966171168
      %v910 = vunpack.c.0.s8 %v909
      %v911 = vlaneseq
      %v912 = vshrl.u32 %v911, 7
      %v913 = vsub.s32 %v910, %v912
      %v914 = vrot.slane %v904, %v913
      %v916 = vunpack.c.l.s4 1966171168
      %v917 = vunpack.c.0.s8 %v916
      %v918 = vlaneseq
      %v919 = vshrl.u32 %v918, 7
      %v920 = vsub.s32 %v917, %v919
      %v921 = vrot.slane %v905, %v920
      %v922 = vcombine.low %v914, %v921
      %v923 = vcombine.high %v914, %v921
      %v925 = vunpack.c.l.s4 1966171168
      %v926 = vunpack.c.0.s8 %v925
      %v927 = vlaneseq
      %v928 = vshrl.u32 %v927, 7
      %v929 = vsub.s32 %v926, %v928
      %v930 = vrot.slane %v922, %v929
      %v932 = vunpack.c.l.s4 1966171168
      %v933 = vunpack.c.0.s8 %v932
      %v934 = vlaneseq
      %v935 = vshrl.u32 %v934, 7
      %v936 = vsub.s32 %v933, %v935
      %v937 = vrot.slane %v923, %v936
      %v938 = vcombine.high %v930, %v930
      %v939 = vld [vmem:[%s572] sm:$0x77]
      %v940 = vld [vmem:[%s572 + $0x8] sm:$0x7]
      %v944 = vunpack.c.l.s4 1966171168
      %v945 = vunpack.c.0.s8 %v944
      %v946 = vlaneseq
      %v947 = vshrl.u32 %v946, 7
      %v948 = vsub.s32 %v945, %v947
      %v949 = vrot.slane %v939, %v948
      %v951 = vunpack.c.l.s4 1966171168
      %v952 = vunpack.c.0.s8 %v951
      %v953 = vlaneseq
      %v954 = vshrl.u32 %v953, 7
      %v955 = vsub.s32 %v952, %v954
      %v956 = vrot.slane %v940, %v955
      %v957 = vcombine.low %v949, %v956
      %v958 = vcombine.high %v949, %v956
      %v960 = vunpack.c.l.s4 1966171168
      %v961 = vunpack.c.0.s8 %v960
      %v962 = vlaneseq
      %v963 = vshrl.u32 %v962, 7
      %v964 = vsub.s32 %v961, %v963
      %v965 = vrot.slane %v957, %v964
      %v967 = vunpack.c.l.s4 1966171168
      %v968 = vunpack.c.0.s8 %v967
      %v969 = vlaneseq
      %v970 = vshrl.u32 %v969, 7
      %v971 = vsub.s32 %v968, %v970
      %v972 = vrot.slane %v958, %v971
      %v973 = vcombine.high %v965, %v965
      %v974 = vlaneseq
      %v975 = vshrl.u32 %v974, 7
      %v976 = vsub.s32 0, %v975
      %v977 = vrot.slane %v930, %v976
      %v978 = vlaneseq
      %v979 = vshrl.u32 %v978, 7
      %v980 = vsub.s32 1, %v979
      %v981 = vrot.slane %v930, %v980
      %v982 = vlaneseq
      %v983 = vshrl.u32 %v982, 7
      %v984 = vsub.s32 2, %v983
      %v985 = vrot.slane %v930, %v984
      %v986 = vlaneseq
      %v987 = vshrl.u32 %v986, 7
      %v988 = vsub.s32 0, %v987
      %v989 = vrot.slane %v937, %v988
      %v990 = vlaneseq
      %v991 = vshrl.u32 %v990, 7
      %v992 = vsub.s32 1, %v991
      %v993 = vrot.slane %v937, %v992
      %v994 = vlaneseq
      %v995 = vshrl.u32 %v994, 7
      %v996 = vsub.s32 2, %v995
      %v997 = vrot.slane %v937, %v996
      %v998 = vlaneseq
      %v999 = vshrl.u32 %v998, 7
      %v1000 = vsub.s32 0, %v999
      %v1001 = vrot.slane %v938, %v1000
      %v1002 = vlaneseq
      %v1003 = vshrl.u32 %v1002, 7
      %v1004 = vsub.s32 1, %v1003
      %v1005 = vrot.slane %v938, %v1004
      %v1006 = vlaneseq
      %v1007 = vshrl.u32 %v1006, 7
      %v1008 = vsub.s32 2, %v1007
      %v1009 = vrot.slane %v938, %v1008
      %v1019 = vmul.f32 %v859, %v977
      %v1020 = vmul.f32 %v860, %v981
      %v1021 = vmul.f32 %v861, %v985
      %v1022 = vmul.f32 %v862, %v989
      %v1023 = vmul.f32 %v863, %v993
      %v1024 = vmul.f32 %v864, %v997
      %v1025 = vmul.f32 %v865, %v1001
      %v1026 = vmul.f32 %v866, %v1005
      %v1027 = vmul.f32 %v867, %v1009
      %v1028 = vlaneseq
      %v1029 = vshrl.u32 %v1028, 7
      %v1030 = vsub.s32 0, %v1029
      %v1031 = vrot.slane %v965, %v1030
      %v1032 = vlaneseq
      %v1033 = vshrl.u32 %v1032, 7
      %v1034 = vsub.s32 1, %v1033
      %v1035 = vrot.slane %v965, %v1034
      %v1036 = vlaneseq
      %v1037 = vshrl.u32 %v1036, 7
      %v1038 = vsub.s32 2, %v1037
      %v1039 = vrot.slane %v965, %v1038
      %v1040 = vlaneseq
      %v1041 = vshrl.u32 %v1040, 7
      %v1042 = vsub.s32 0, %v1041
      %v1043 = vrot.slane %v972, %v1042
      %v1044 = vlaneseq
      %v1045 = vshrl.u32 %v1044, 7
      %v1046 = vsub.s32 1, %v1045
      %v1047 = vrot.slane %v972, %v1046
      %v1048 = vlaneseq
      %v1049 = vshrl.u32 %v1048, 7
      %v1050 = vsub.s32 2, %v1049
      %v1051 = vrot.slane %v972, %v1050
      %v1052 = vlaneseq
      %v1053 = vshrl.u32 %v1052, 7
      %v1054 = vsub.s32 0, %v1053
      %v1055 = vrot.slane %v973, %v1054
      %v1056 = vlaneseq
      %v1057 = vshrl.u32 %v1056, 7
      %v1058 = vsub.s32 1, %v1057
      %v1059 = vrot.slane %v973, %v1058
      %v1060 = vlaneseq
      %v1061 = vshrl.u32 %v1060, 7
      %v1062 = vsub.s32 2, %v1061
      %v1063 = vrot.slane %v973, %v1062
      %v1073 = vmul.f32 %v895, %v1031
      %v1074 = vmul.f32 %v896, %v1035
      %v1075 = vmul.f32 %v897, %v1039
      %v1076 = vmul.f32 %v898, %v1043
      %v1077 = vmul.f32 %v899, %v1047
      %v1078 = vmul.f32 %v900, %v1051
      %v1079 = vmul.f32 %v901, %v1055
      %v1080 = vmul.f32 %v902, %v1059
      %v1081 = vmul.f32 %v903, %v1063
      %v1082 = vadd.f32 %v1019, %v1073
      %v1083 = vadd.f32 %v1020, %v1074
      %v1084 = vadd.f32 %v1021, %v1075
      %v1085 = vadd.f32 %v1022, %v1076
      %v1086 = vadd.f32 %v1023, %v1077
      %v1087 = vadd.f32 %v1024, %v1078
      %v1088 = vadd.f32 %v1025, %v1079
      %v1089 = vadd.f32 %v1026, %v1080
      %v1090 = vadd.f32 %v1027, %v1081
      %v1091 = vld [vmem:[%s577] sm:$0x77]
      %v1092 = vld [vmem:[%s577 + $0x8] sm:$0x7]
      %v1096 = vunpack.c.l.s4 1966171168
      %v1097 = vunpack.c.0.s8 %v1096
      %v1098 = vlaneseq
      %v1099 = vshrl.u32 %v1098, 7
      %v1100 = vsub.s32 %v1097, %v1099
      %v1101 = vrot.slane %v1091, %v1100
      %v1103 = vunpack.c.l.s4 1966171168
      %v1104 = vunpack.c.0.s8 %v1103
      %v1105 = vlaneseq
      %v1106 = vshrl.u32 %v1105, 7
      %v1107 = vsub.s32 %v1104, %v1106
      %v1108 = vrot.slane %v1092, %v1107
      %v1109 = vcombine.low %v1101, %v1108
      %v1110 = vcombine.high %v1101, %v1108
      %v1112 = vunpack.c.l.s4 1966171168
      %v1113 = vunpack.c.0.s8 %v1112
      %v1114 = vlaneseq
      %v1115 = vshrl.u32 %v1114, 7
      %v1116 = vsub.s32 %v1113, %v1115
      %v1117 = vrot.slane %v1109, %v1116
      %v1119 = vunpack.c.l.s4 1966171168
      %v1120 = vunpack.c.0.s8 %v1119
      %v1121 = vlaneseq
      %v1122 = vshrl.u32 %v1121, 7
      %v1123 = vsub.s32 %v1120, %v1122
      %v1124 = vrot.slane %v1110, %v1123
      %v1125 = vcombine.high %v1117, %v1117
      %v1126 = vlaneseq
      %v1127 = vshrl.u32 %v1126, 7
      %v1128 = vsub.s32 0, %v1127
      %v1129 = vrot.slane %v1117, %v1128
      %v1130 = vlaneseq
      %v1131 = vshrl.u32 %v1130, 7
      %v1132 = vsub.s32 1, %v1131
      %v1133 = vrot.slane %v1117, %v1132
      %v1134 = vlaneseq
      %v1135 = vshrl.u32 %v1134, 7
      %v1136 = vsub.s32 2, %v1135
      %v1137 = vrot.slane %v1117, %v1136
      %v1138 = vlaneseq
      %v1139 = vshrl.u32 %v1138, 7
      %v1140 = vsub.s32 0, %v1139
      %v1141 = vrot.slane %v1124, %v1140
      %v1142 = vlaneseq
      %v1143 = vshrl.u32 %v1142, 7
      %v1144 = vsub.s32 1, %v1143
      %v1145 = vrot.slane %v1124, %v1144
      %v1146 = vlaneseq
      %v1147 = vshrl.u32 %v1146, 7
      %v1148 = vsub.s32 2, %v1147
      %v1149 = vrot.slane %v1124, %v1148
      %v1150 = vlaneseq
      %v1151 = vshrl.u32 %v1150, 7
      %v1152 = vsub.s32 0, %v1151
      %v1153 = vrot.slane %v1125, %v1152
      %v1154 = vlaneseq
      %v1155 = vshrl.u32 %v1154, 7
      %v1156 = vsub.s32 1, %v1155
      %v1157 = vrot.slane %v1125, %v1156
      %v1158 = vlaneseq
      %v1159 = vshrl.u32 %v1158, 7
      %v1160 = vsub.s32 2, %v1159
      %v1161 = vrot.slane %v1125, %v1160
      %v1171 = vmul.f32 %v1082, %v1129
      %v1172 = vmul.f32 %v1083, %v1133
      %v1173 = vmul.f32 %v1084, %v1137
      %v1174 = vmul.f32 %v1085, %v1141
      %v1175 = vmul.f32 %v1086, %v1145
      %v1176 = vmul.f32 %v1087, %v1149
      %v1177 = vmul.f32 %v1088, %v1153
      %v1178 = vmul.f32 %v1089, %v1157
      %v1179 = vmul.f32 %v1090, %v1161
      %1180 = vst [vmem:[%s614] sm:$0xff] %v1171
      %1181 = vst [vmem:[%s614 + $0x8] sm:$0xff] %v1172
      %1182 = vst [vmem:[%s614 + $0x10] sm:$0xff] %v1173
      %1183 = vst [vmem:[%s614 + $0x18] sm:$0xff] %v1174
      %1184 = vst [vmem:[%s614 + $0x20] sm:$0xff] %v1175
      %1185 = vst [vmem:[%s614 + $0x28] sm:$0xff] %v1176
      %1186 = vst [vmem:[%s614 + $0x30] sm:$0xff] %v1177
      %1187 = vst [vmem:[%s614 + $0x38] sm:$0xff] %v1178
      %1188 = vst [vmem:[%s614 + $0x40] sm:$0xff] %v1179
      %v1189 = vld [vmem:[%s582] sm:$0x3f]
      %v1190 = vld [vmem:[%s582 + $0x8] sm:$0x3f]
      %v1191 = vld [vmem:[%s582 + $0x10] sm:$0x3f]
      %v1192 = vld [vmem:[%s582 + $0x18] sm:$0x3f]
      %v1193 = vld [vmem:[%s582 + $0x20] sm:$0x3f]
      %v1194 = vld [vmem:[%s582 + $0x28] sm:$0x3f]
      %v1195 = vld [vmem:[%s587] sm:$0x3f]
      %v1196 = vld [vmem:[%s587 + $0x8] sm:$0x3f]
      %v1197 = vld [vmem:[%s587 + $0x10] sm:$0x3f]
      %v1198 = vld [vmem:[%s587 + $0x18] sm:$0x3f]
      %v1199 = vld [vmem:[%s587 + $0x20] sm:$0x3f]
      %v1200 = vld [vmem:[%s587 + $0x28] sm:$0x3f]
      %v1201 = vmul.f32 %v769, %v672
      %v1202 = vmul.f32 %v770, %v673
      %v1203 = vmul.f32 %v771, %v674
      %v1204 = vadd.f32 %v1201, 1.4210855e-14
      %v1205 = vadd.f32 %v1202, 1.4210855e-14
      %v1206 = vadd.f32 %v1203, 1.4210855e-14
      %v1207 = vrsqrt.pop %v1204
      %v1208 = vrsqrt.pop %v1205
      %v1209 = vrsqrt.pop %v1206
      %v1210 = vmul.f32 %v630, %v624
      %v1211 = vmul.f32 %v631, %v625
      %v1212 = vmul.f32 %v632, %v626
      %v1213 = vmul.f32 %v633, %v627
      %v1214 = vmul.f32 %v634, %v628
      %v1215 = vmul.f32 %v635, %v629
      %v1216 = vadd.f32 %v1210, %v1213
      %v1217 = vadd.f32 %v1211, %v1214
      %v1218 = vadd.f32 %v1212, %v1215
      %v1219 = vmul.f32 %v633, %v624
      %v1220 = vmul.f32 %v634, %v625
      %v1221 = vmul.f32 %v635, %v626
      %v1222 = vmul.f32 %v630, %v627
      %v1223 = vmul.f32 %v631, %v628
      %v1224 = vmul.f32 %v632, %v629
      %v1225 = vsub.f32 %v1219, %v1222
      %v1226 = vsub.f32 %v1220, %v1223
      %v1227 = vsub.f32 %v1221, %v1224
      %v1228 = vlaneseq
      %v1229 = vshrl.u32 %v1228, 7
      %v1230 = vsub.s32 0, %v1229
      %v1231 = vrot.slane %v1189, %v1230
      %v1232 = vlaneseq
      %v1233 = vshrl.u32 %v1232, 7
      %v1234 = vsub.s32 0, %v1233
      %v1235 = vrot.slane %v1190, %v1234
      %v1236 = vlaneseq
      %v1237 = vshrl.u32 %v1236, 7
      %v1238 = vsub.s32 0, %v1237
      %v1239 = vrot.slane %v1191, %v1238
      %v1240 = vmul.f32 %v1216, %v1231
      %v1241 = vmul.f32 %v1217, %v1235
      %v1242 = vmul.f32 %v1218, %v1239
      %v1243 = vlaneseq
      %v1244 = vshrl.u32 %v1243, 7
      %v1245 = vsub.s32 0, %v1244
      %v1246 = vrot.slane %v1195, %v1245
      %v1247 = vlaneseq
      %v1248 = vshrl.u32 %v1247, 7
      %v1249 = vsub.s32 0, %v1248
      %v1250 = vrot.slane %v1196, %v1249
      %v1251 = vlaneseq
      %v1252 = vshrl.u32 %v1251, 7
      %v1253 = vsub.s32 0, %v1252
      %v1254 = vrot.slane %v1197, %v1253
      %v1255 = vmul.f32 %v1225, %v1246
      %v1256 = vmul.f32 %v1226, %v1250
      %v1257 = vmul.f32 %v1227, %v1254
      %v1258 = vadd.f32 %v1240, %v1255
      %v1259 = vadd.f32 %v1241, %v1256
      %v1260 = vadd.f32 %v1242, %v1257
      %v1261 = vmul.f32 %v1258, %v1207
      %v1262 = vmul.f32 %v1259, %v1208
      %v1263 = vmul.f32 %v1260, %v1209
      %v1264 = vadd.f32 %v1261, 0.0
      %v1265 = vadd.f32 %v1262, 0.0
      %v1266 = vadd.f32 %v1263, 0.0
      %v1267 = vlaneseq
      %v1268 = vshrl.u32 %v1267, 7
      %v1269 = vsub.s32 0, %v1268
      %v1270 = vrot.slane %v1192, %v1269
      %v1271 = vlaneseq
      %v1272 = vshrl.u32 %v1271, 7
      %v1273 = vsub.s32 0, %v1272
      %v1274 = vrot.slane %v1193, %v1273
      %v1275 = vlaneseq
      %v1276 = vshrl.u32 %v1275, 7
      %v1277 = vsub.s32 0, %v1276
      %v1278 = vrot.slane %v1194, %v1277
      %v1279 = vmul.f32 %v1216, %v1270
      %v1280 = vmul.f32 %v1217, %v1274
      %v1281 = vmul.f32 %v1218, %v1278
      %v1282 = vlaneseq
      %v1283 = vshrl.u32 %v1282, 7
      %v1284 = vsub.s32 0, %v1283
      %v1285 = vrot.slane %v1198, %v1284
      %v1286 = vlaneseq
      %v1287 = vshrl.u32 %v1286, 7
      %v1288 = vsub.s32 0, %v1287
      %v1289 = vrot.slane %v1199, %v1288
      %v1290 = vlaneseq
      %v1291 = vshrl.u32 %v1290, 7
      %v1292 = vsub.s32 0, %v1291
      %v1293 = vrot.slane %v1200, %v1292
      %v1294 = vmul.f32 %v1225, %v1285
      %v1295 = vmul.f32 %v1226, %v1289
      %v1296 = vmul.f32 %v1227, %v1293
      %v1297 = vadd.f32 %v1279, %v1294
      %v1298 = vadd.f32 %v1280, %v1295
      %v1299 = vadd.f32 %v1281, %v1296
      %v1300 = vmul.f32 %v1297, %v1207
      %v1301 = vmul.f32 %v1298, %v1208
      %v1302 = vmul.f32 %v1299, %v1209
      %v1303 = vadd.f32 %v1300, 0.0
      %v1304 = vadd.f32 %v1301, 0.0
      %v1305 = vadd.f32 %v1302, 0.0
      %v1306 = vmul.f32 %v772, %v672
      %v1307 = vmul.f32 %v773, %v673
      %v1308 = vmul.f32 %v774, %v674
      %v1309 = vadd.f32 %v1306, 1.4210855e-14
      %v1310 = vadd.f32 %v1307, 1.4210855e-14
      %v1311 = vadd.f32 %v1308, 1.4210855e-14
      %v1312 = vrsqrt.pop %v1309
      %v1313 = vrsqrt.pop %v1310
      %v1314 = vrsqrt.pop %v1311
      %v1315 = vmul.f32 %v636, %v624
      %v1316 = vmul.f32 %v637, %v625
      %v1317 = vmul.f32 %v638, %v626
      %v1318 = vmul.f32 %v639, %v627
      %v1319 = vmul.f32 %v640, %v628
      %v1320 = vmul.f32 %v641, %v629
      %v1321 = vadd.f32 %v1315, %v1318
      %v1322 = vadd.f32 %v1316, %v1319
      %v1323 = vadd.f32 %v1317, %v1320
      %v1324 = vmul.f32 %v639, %v624
      %v1325 = vmul.f32 %v640, %v625
      %v1326 = vmul.f32 %v641, %v626
      %v1327 = vmul.f32 %v636, %v627
      %v1328 = vmul.f32 %v637, %v628
      %v1329 = vmul.f32 %v638, %v629
      %v1330 = vsub.f32 %v1324, %v1327
      %v1331 = vsub.f32 %v1325, %v1328
      %v1332 = vsub.f32 %v1326, %v1329
      %v1333 = vlaneseq
      %v1334 = vshrl.u32 %v1333, 7
      %v1335 = vsub.s32 1, %v1334
      %v1336 = vrot.slane %v1189, %v1335
      %v1337 = vlaneseq
      %v1338 = vshrl.u32 %v1337, 7
      %v1339 = vsub.s32 1, %v1338
      %v1340 = vrot.slane %v1190, %v1339
      %v1341 = vlaneseq
      %v1342 = vshrl.u32 %v1341, 7
      %v1343 = vsub.s32 1, %v1342
      %v1344 = vrot.slane %v1191, %v1343
      %v1345 = vmul.f32 %v1321, %v1336
      %v1346 = vmul.f32 %v1322, %v1340
      %v1347 = vmul.f32 %v1323, %v1344
      %v1348 = vlaneseq
      %v1349 = vshrl.u32 %v1348, 7
      %v1350 = vsub.s32 1, %v1349
      %v1351 = vrot.slane %v1195, %v1350
      %v1352 = vlaneseq
      %v1353 = vshrl.u32 %v1352, 7
      %v1354 = vsub.s32 1, %v1353
      %v1355 = vrot.slane %v1196, %v1354
      %v1356 = vlaneseq
      %v1357 = vshrl.u32 %v1356, 7
      %v1358 = vsub.s32 1, %v1357
      %v1359 = vrot.slane %v1197, %v1358
      %v1360 = vmul.f32 %v1330, %v1351
      %v1361 = vmul.f32 %v1331, %v1355
      %v1362 = vmul.f32 %v1332, %v1359
      %v1363 = vadd.f32 %v1345, %v1360
      %v1364 = vadd.f32 %v1346, %v1361
      %v1365 = vadd.f32 %v1347, %v1362
      %v1366 = vmul.f32 %v1363, %v1312
      %v1367 = vmul.f32 %v1364, %v1313
      %v1368 = vmul.f32 %v1365, %v1314
      %v1369 = vadd.f32 %v1264, %v1366
      %v1370 = vadd.f32 %v1265, %v1367
      %v1371 = vadd.f32 %v1266, %v1368
      %v1372 = vlaneseq
      %v1373 = vshrl.u32 %v1372, 7
      %v1374 = vsub.s32 1, %v1373
      %v1375 = vrot.slane %v1192, %v1374
      %v1376 = vlaneseq
      %v1377 = vshrl.u32 %v1376, 7
      %v1378 = vsub.s32 1, %v1377
      %v1379 = vrot.slane %v1193, %v1378
      %v1380 = vlaneseq
      %v1381 = vshrl.u32 %v1380, 7
      %v1382 = vsub.s32 1, %v1381
      %v1383 = vrot.slane %v1194, %v1382
      %v1384 = vmul.f32 %v1321, %v1375
      %v1385 = vmul.f32 %v1322, %v1379
      %v1386 = vmul.f32 %v1323, %v1383
      %v1387 = vlaneseq
      %v1388 = vshrl.u32 %v1387, 7
      %v1389 = vsub.s32 1, %v1388
      %v1390 = vrot.slane %v1198, %v1389
      %v1391 = vlaneseq
      %v1392 = vshrl.u32 %v1391, 7
      %v1393 = vsub.s32 1, %v1392
      %v1394 = vrot.slane %v1199, %v1393
      %v1395 = vlaneseq
      %v1396 = vshrl.u32 %v1395, 7
      %v1397 = vsub.s32 1, %v1396
      %v1398 = vrot.slane %v1200, %v1397
      %v1399 = vmul.f32 %v1330, %v1390
      %v1400 = vmul.f32 %v1331, %v1394
      %v1401 = vmul.f32 %v1332, %v1398
      %v1402 = vadd.f32 %v1384, %v1399
      %v1403 = vadd.f32 %v1385, %v1400
      %v1404 = vadd.f32 %v1386, %v1401
      %v1405 = vmul.f32 %v1402, %v1312
      %v1406 = vmul.f32 %v1403, %v1313
      %v1407 = vmul.f32 %v1404, %v1314
      %v1408 = vadd.f32 %v1303, %v1405
      %v1409 = vadd.f32 %v1304, %v1406
      %v1410 = vadd.f32 %v1305, %v1407
      %v1411 = vmul.f32 %v775, %v672
      %v1412 = vmul.f32 %v776, %v673
      %v1413 = vmul.f32 %v777, %v674
      %v1414 = vadd.f32 %v1411, 1.4210855e-14
      %v1415 = vadd.f32 %v1412, 1.4210855e-14
      %v1416 = vadd.f32 %v1413, 1.4210855e-14
      %v1417 = vrsqrt.pop %v1414
      %v1418 = vrsqrt.pop %v1415
      %v1419 = vrsqrt.pop %v1416
      %v1420 = vmul.f32 %v642, %v624
      %v1421 = vmul.f32 %v643, %v625
      %v1422 = vmul.f32 %v644, %v626
      %v1423 = vmul.f32 %v645, %v627
      %v1424 = vmul.f32 %v646, %v628
      %v1425 = vmul.f32 %v647, %v629
      %v1426 = vadd.f32 %v1420, %v1423
      %v1427 = vadd.f32 %v1421, %v1424
      %v1428 = vadd.f32 %v1422, %v1425
      %v1429 = vmul.f32 %v645, %v624
      %v1430 = vmul.f32 %v646, %v625
      %v1431 = vmul.f32 %v647, %v626
      %v1432 = vmul.f32 %v642, %v627
      %v1433 = vmul.f32 %v643, %v628
      %v1434 = vmul.f32 %v644, %v629
      %v1435 = vsub.f32 %v1429, %v1432
      %v1436 = vsub.f32 %v1430, %v1433
      %v1437 = vsub.f32 %v1431, %v1434
      %v1438 = vlaneseq
      %v1439 = vshrl.u32 %v1438, 7
      %v1440 = vsub.s32 2, %v1439
      %v1441 = vrot.slane %v1189, %v1440
      %v1442 = vlaneseq
      %v1443 = vshrl.u32 %v1442, 7
      %v1444 = vsub.s32 2, %v1443
      %v1445 = vrot.slane %v1190, %v1444
      %v1446 = vlaneseq
      %v1447 = vshrl.u32 %v1446, 7
      %v1448 = vsub.s32 2, %v1447
      %v1449 = vrot.slane %v1191, %v1448
      %v1450 = vmul.f32 %v1426, %v1441
      %v1451 = vmul.f32 %v1427, %v1445
      %v1452 = vmul.f32 %v1428, %v1449
      %v1453 = vlaneseq
      %v1454 = vshrl.u32 %v1453, 7
      %v1455 = vsub.s32 2, %v1454
      %v1456 = vrot.slane %v1195, %v1455
      %v1457 = vlaneseq
      %v1458 = vshrl.u32 %v1457, 7
      %v1459 = vsub.s32 2, %v1458
      %v1460 = vrot.slane %v1196, %v1459
      %v1461 = vlaneseq
      %v1462 = vshrl.u32 %v1461, 7
      %v1463 = vsub.s32 2, %v1462
      %v1464 = vrot.slane %v1197, %v1463
      %v1465 = vmul.f32 %v1435, %v1456
      %v1466 = vmul.f32 %v1436, %v1460
      %v1467 = vmul.f32 %v1437, %v1464
      %v1468 = vadd.f32 %v1450, %v1465
      %v1469 = vadd.f32 %v1451, %v1466
      %v1470 = vadd.f32 %v1452, %v1467
      %v1471 = vmul.f32 %v1468, %v1417
      %v1472 = vmul.f32 %v1469, %v1418
      %v1473 = vmul.f32 %v1470, %v1419
      %v1474 = vadd.f32 %v1369, %v1471
      %v1475 = vadd.f32 %v1370, %v1472
      %v1476 = vadd.f32 %v1371, %v1473
      %v1477 = vlaneseq
      %v1478 = vshrl.u32 %v1477, 7
      %v1479 = vsub.s32 2, %v1478
      %v1480 = vrot.slane %v1192, %v1479
      %v1481 = vlaneseq
      %v1482 = vshrl.u32 %v1481, 7
      %v1483 = vsub.s32 2, %v1482
      %v1484 = vrot.slane %v1193, %v1483
      %v1485 = vlaneseq
      %v1486 = vshrl.u32 %v1485, 7
      %v1487 = vsub.s32 2, %v1486
      %v1488 = vrot.slane %v1194, %v1487
      %v1489 = vmul.f32 %v1426, %v1480
      %v1490 = vmul.f32 %v1427, %v1484
      %v1491 = vmul.f32 %v1428, %v1488
      %v1492 = vlaneseq
      %v1493 = vshrl.u32 %v1492, 7
      %v1494 = vsub.s32 2, %v1493
      %v1495 = vrot.slane %v1198, %v1494
      %v1496 = vlaneseq
      %v1497 = vshrl.u32 %v1496, 7
      %v1498 = vsub.s32 2, %v1497
      %v1499 = vrot.slane %v1199, %v1498
      %v1500 = vlaneseq
      %v1501 = vshrl.u32 %v1500, 7
      %v1502 = vsub.s32 2, %v1501
      %v1503 = vrot.slane %v1200, %v1502
      %v1504 = vmul.f32 %v1435, %v1495
      %v1505 = vmul.f32 %v1436, %v1499
      %v1506 = vmul.f32 %v1437, %v1503
      %v1507 = vadd.f32 %v1489, %v1504
      %v1508 = vadd.f32 %v1490, %v1505
      %v1509 = vadd.f32 %v1491, %v1506
      %v1510 = vmul.f32 %v1507, %v1417
      %v1511 = vmul.f32 %v1508, %v1418
      %v1512 = vmul.f32 %v1509, %v1419
      %v1513 = vadd.f32 %v1408, %v1510
      %v1514 = vadd.f32 %v1409, %v1511
      %v1515 = vadd.f32 %v1410, %v1512
      %v1516 = vmul.f32 %v796, %v672
      %v1517 = vmul.f32 %v797, %v673
      %v1518 = vmul.f32 %v798, %v674
      %v1519 = vadd.f32 %v1516, 1.4210855e-14
      %v1520 = vadd.f32 %v1517, 1.4210855e-14
      %v1521 = vadd.f32 %v1518, 1.4210855e-14
      %v1522 = vrsqrt.pop %v1519
      %v1523 = vrsqrt.pop %v1520
      %v1524 = vrsqrt.pop %v1521
      %v1525 = vmul.f32 %v648, %v624
      %v1526 = vmul.f32 %v649, %v625
      %v1527 = vmul.f32 %v650, %v626
      %v1528 = vmul.f32 %v651, %v627
      %v1529 = vmul.f32 %v652, %v628
      %v1530 = vmul.f32 %v653, %v629
      %v1531 = vadd.f32 %v1525, %v1528
      %v1532 = vadd.f32 %v1526, %v1529
      %v1533 = vadd.f32 %v1527, %v1530
      %v1534 = vmul.f32 %v651, %v624
      %v1535 = vmul.f32 %v652, %v625
      %v1536 = vmul.f32 %v653, %v626
      %v1537 = vmul.f32 %v648, %v627
      %v1538 = vmul.f32 %v649, %v628
      %v1539 = vmul.f32 %v650, %v629
      %v1540 = vsub.f32 %v1534, %v1537
      %v1541 = vsub.f32 %v1535, %v1538
      %v1542 = vsub.f32 %v1536, %v1539
      %v1543 = vlaneseq
      %v1544 = vshrl.u32 %v1543, 7
      %v1545 = vsub.s32 3, %v1544
      %v1546 = vrot.slane %v1189, %v1545
      %v1547 = vlaneseq
      %v1548 = vshrl.u32 %v1547, 7
      %v1549 = vsub.s32 3, %v1548
      %v1550 = vrot.slane %v1190, %v1549
      %v1551 = vlaneseq
      %v1552 = vshrl.u32 %v1551, 7
      %v1553 = vsub.s32 3, %v1552
      %v1554 = vrot.slane %v1191, %v1553
      %v1555 = vmul.f32 %v1531, %v1546
      %v1556 = vmul.f32 %v1532, %v1550
      %v1557 = vmul.f32 %v1533, %v1554
      %v1558 = vlaneseq
      %v1559 = vshrl.u32 %v1558, 7
      %v1560 = vsub.s32 3, %v1559
      %v1561 = vrot.slane %v1195, %v1560
      %v1562 = vlaneseq
      %v1563 = vshrl.u32 %v1562, 7
      %v1564 = vsub.s32 3, %v1563
      %v1565 = vrot.slane %v1196, %v1564
      %v1566 = vlaneseq
      %v1567 = vshrl.u32 %v1566, 7
      %v1568 = vsub.s32 3, %v1567
      %v1569 = vrot.slane %v1197, %v1568
      %v1570 = vmul.f32 %v1540, %v1561
      %v1571 = vmul.f32 %v1541, %v1565
      %v1572 = vmul.f32 %v1542, %v1569
      %v1573 = vadd.f32 %v1555, %v1570
      %v1574 = vadd.f32 %v1556, %v1571
      %v1575 = vadd.f32 %v1557, %v1572
      %v1576 = vmul.f32 %v1573, %v1522
      %v1577 = vmul.f32 %v1574, %v1523
      %v1578 = vmul.f32 %v1575, %v1524
      %v1579 = vadd.f32 %v1474, %v1576
      %v1580 = vadd.f32 %v1475, %v1577
      %v1581 = vadd.f32 %v1476, %v1578
      %v1582 = vlaneseq
      %v1583 = vshrl.u32 %v1582, 7
      %v1584 = vsub.s32 3, %v1583
      %v1585 = vrot.slane %v1192, %v1584
      %v1586 = vlaneseq
      %v1587 = vshrl.u32 %v1586, 7
      %v1588 = vsub.s32 3, %v1587
      %v1589 = vrot.slane %v1193, %v1588
      %v1590 = vlaneseq
      %v1591 = vshrl.u32 %v1590, 7
      %v1592 = vsub.s32 3, %v1591
      %v1593 = vrot.slane %v1194, %v1592
      %v1594 = vmul.f32 %v1531, %v1585
      %v1595 = vmul.f32 %v1532, %v1589
      %v1596 = vmul.f32 %v1533, %v1593
      %v1597 = vlaneseq
      %v1598 = vshrl.u32 %v1597, 7
      %v1599 = vsub.s32 3, %v1598
      %v1600 = vrot.slane %v1198, %v1599
      %v1601 = vlaneseq
      %v1602 = vshrl.u32 %v1601, 7
      %v1603 = vsub.s32 3, %v1602
      %v1604 = vrot.slane %v1199, %v1603
      %v1605 = vlaneseq
      %v1606 = vshrl.u32 %v1605, 7
      %v1607 = vsub.s32 3, %v1606
      %v1608 = vrot.slane %v1200, %v1607
      %v1609 = vmul.f32 %v1540, %v1600
      %v1610 = vmul.f32 %v1541, %v1604
      %v1611 = vmul.f32 %v1542, %v1608
      %v1612 = vadd.f32 %v1594, %v1609
      %v1613 = vadd.f32 %v1595, %v1610
      %v1614 = vadd.f32 %v1596, %v1611
      %v1615 = vmul.f32 %v1612, %v1522
      %v1616 = vmul.f32 %v1613, %v1523
      %v1617 = vmul.f32 %v1614, %v1524
      %v1618 = vadd.f32 %v1513, %v1615
      %v1619 = vadd.f32 %v1514, %v1616
      %v1620 = vadd.f32 %v1515, %v1617
      %v1621 = vmul.f32 %v799, %v672
      %v1622 = vmul.f32 %v800, %v673
      %v1623 = vmul.f32 %v801, %v674
      %v1624 = vadd.f32 %v1621, 1.4210855e-14
      %v1625 = vadd.f32 %v1622, 1.4210855e-14
      %v1626 = vadd.f32 %v1623, 1.4210855e-14
      %v1627 = vrsqrt.pop %v1624
      %v1628 = vrsqrt.pop %v1625
      %v1629 = vrsqrt.pop %v1626
      %v1630 = vmul.f32 %v654, %v624
      %v1631 = vmul.f32 %v655, %v625
      %v1632 = vmul.f32 %v656, %v626
      %v1633 = vmul.f32 %v657, %v627
      %v1634 = vmul.f32 %v658, %v628
      %v1635 = vmul.f32 %v659, %v629
      %v1636 = vadd.f32 %v1630, %v1633
      %v1637 = vadd.f32 %v1631, %v1634
      %v1638 = vadd.f32 %v1632, %v1635
      %v1639 = vmul.f32 %v657, %v624
      %v1640 = vmul.f32 %v658, %v625
      %v1641 = vmul.f32 %v659, %v626
      %v1642 = vmul.f32 %v654, %v627
      %v1643 = vmul.f32 %v655, %v628
      %v1644 = vmul.f32 %v656, %v629
      %v1645 = vsub.f32 %v1639, %v1642
      %v1646 = vsub.f32 %v1640, %v1643
      %v1647 = vsub.f32 %v1641, %v1644
      %v1648 = vlaneseq
      %v1649 = vshrl.u32 %v1648, 7
      %v1650 = vsub.s32 4, %v1649
      %v1651 = vrot.slane %v1189, %v1650
      %v1652 = vlaneseq
      %v1653 = vshrl.u32 %v1652, 7
      %v1654 = vsub.s32 4, %v1653
      %v1655 = vrot.slane %v1190, %v1654
      %v1656 = vlaneseq
      %v1657 = vshrl.u32 %v1656, 7
      %v1658 = vsub.s32 4, %v1657
      %v1659 = vrot.slane %v1191, %v1658
      %v1660 = vmul.f32 %v1636, %v1651
      %v1661 = vmul.f32 %v1637, %v1655
      %v1662 = vmul.f32 %v1638, %v1659
      %v1663 = vlaneseq
      %v1664 = vshrl.u32 %v1663, 7
      %v1665 = vsub.s32 4, %v1664
      %v1666 = vrot.slane %v1195, %v1665
      %v1667 = vlaneseq
      %v1668 = vshrl.u32 %v1667, 7
      %v1669 = vsub.s32 4, %v1668
      %v1670 = vrot.slane %v1196, %v1669
      %v1671 = vlaneseq
      %v1672 = vshrl.u32 %v1671, 7
      %v1673 = vsub.s32 4, %v1672
      %v1674 = vrot.slane %v1197, %v1673
      %v1675 = vmul.f32 %v1645, %v1666
      %v1676 = vmul.f32 %v1646, %v1670
      %v1677 = vmul.f32 %v1647, %v1674
      %v1678 = vadd.f32 %v1660, %v1675
      %v1679 = vadd.f32 %v1661, %v1676
      %v1680 = vadd.f32 %v1662, %v1677
      %v1681 = vmul.f32 %v1678, %v1627
      %v1682 = vmul.f32 %v1679, %v1628
      %v1683 = vmul.f32 %v1680, %v1629
      %v1684 = vadd.f32 %v1579, %v1681
      %v1685 = vadd.f32 %v1580, %v1682
      %v1686 = vadd.f32 %v1581, %v1683
      %v1687 = vlaneseq
      %v1688 = vshrl.u32 %v1687, 7
      %v1689 = vsub.s32 4, %v1688
      %v1690 = vrot.slane %v1192, %v1689
      %v1691 = vlaneseq
      %v1692 = vshrl.u32 %v1691, 7
      %v1693 = vsub.s32 4, %v1692
      %v1694 = vrot.slane %v1193, %v1693
      %v1695 = vlaneseq
      %v1696 = vshrl.u32 %v1695, 7
      %v1697 = vsub.s32 4, %v1696
      %v1698 = vrot.slane %v1194, %v1697
      %v1699 = vmul.f32 %v1636, %v1690
      %v1700 = vmul.f32 %v1637, %v1694
      %v1701 = vmul.f32 %v1638, %v1698
      %v1702 = vlaneseq
      %v1703 = vshrl.u32 %v1702, 7
      %v1704 = vsub.s32 4, %v1703
      %v1705 = vrot.slane %v1198, %v1704
      %v1706 = vlaneseq
      %v1707 = vshrl.u32 %v1706, 7
      %v1708 = vsub.s32 4, %v1707
      %v1709 = vrot.slane %v1199, %v1708
      %v1710 = vlaneseq
      %v1711 = vshrl.u32 %v1710, 7
      %v1712 = vsub.s32 4, %v1711
      %v1713 = vrot.slane %v1200, %v1712
      %v1714 = vmul.f32 %v1645, %v1705
      %v1715 = vmul.f32 %v1646, %v1709
      %v1716 = vmul.f32 %v1647, %v1713
      %v1717 = vadd.f32 %v1699, %v1714
      %v1718 = vadd.f32 %v1700, %v1715
      %v1719 = vadd.f32 %v1701, %v1716
      %v1720 = vmul.f32 %v1717, %v1627
      %v1721 = vmul.f32 %v1718, %v1628
      %v1722 = vmul.f32 %v1719, %v1629
      %v1723 = vadd.f32 %v1618, %v1720
      %v1724 = vadd.f32 %v1619, %v1721
      %v1725 = vadd.f32 %v1620, %v1722
      %v1726 = vmul.f32 %v802, %v672
      %v1727 = vmul.f32 %v803, %v673
      %v1728 = vmul.f32 %v804, %v674
      %v1729 = vadd.f32 %v1726, 1.4210855e-14
      %v1730 = vadd.f32 %v1727, 1.4210855e-14
      %v1731 = vadd.f32 %v1728, 1.4210855e-14
      %v1732 = vrsqrt.pop %v1729
      %v1733 = vrsqrt.pop %v1730
      %v1734 = vrsqrt.pop %v1731
      %v1735 = vmul.f32 %v660, %v624
      %v1736 = vmul.f32 %v661, %v625
      %v1737 = vmul.f32 %v662, %v626
      %v1738 = vmul.f32 %v663, %v627
      %v1739 = vmul.f32 %v664, %v628
      %v1740 = vmul.f32 %v665, %v629
      %v1741 = vadd.f32 %v1735, %v1738
      %v1742 = vadd.f32 %v1736, %v1739
      %v1743 = vadd.f32 %v1737, %v1740
      %v1744 = vmul.f32 %v663, %v624
      %v1745 = vmul.f32 %v664, %v625
      %v1746 = vmul.f32 %v665, %v626
      %v1747 = vmul.f32 %v660, %v627
      %v1748 = vmul.f32 %v661, %v628
      %v1749 = vmul.f32 %v662, %v629
      %v1750 = vsub.f32 %v1744, %v1747
      %v1751 = vsub.f32 %v1745, %v1748
      %v1752 = vsub.f32 %v1746, %v1749
      %v1753 = vlaneseq
      %v1754 = vshrl.u32 %v1753, 7
      %v1755 = vsub.s32 5, %v1754
      %v1756 = vrot.slane %v1189, %v1755
      %v1757 = vlaneseq
      %v1758 = vshrl.u32 %v1757, 7
      %v1759 = vsub.s32 5, %v1758
      %v1760 = vrot.slane %v1190, %v1759
      %v1761 = vlaneseq
      %v1762 = vshrl.u32 %v1761, 7
      %v1763 = vsub.s32 5, %v1762
      %v1764 = vrot.slane %v1191, %v1763
      %v1765 = vmul.f32 %v1741, %v1756
      %v1766 = vmul.f32 %v1742, %v1760
      %v1767 = vmul.f32 %v1743, %v1764
      %v1768 = vlaneseq
      %v1769 = vshrl.u32 %v1768, 7
      %v1770 = vsub.s32 5, %v1769
      %v1771 = vrot.slane %v1195, %v1770
      %v1772 = vlaneseq
      %v1773 = vshrl.u32 %v1772, 7
      %v1774 = vsub.s32 5, %v1773
      %v1775 = vrot.slane %v1196, %v1774
      %v1776 = vlaneseq
      %v1777 = vshrl.u32 %v1776, 7
      %v1778 = vsub.s32 5, %v1777
      %v1779 = vrot.slane %v1197, %v1778
      %v1780 = vmul.f32 %v1750, %v1771
      %v1781 = vmul.f32 %v1751, %v1775
      %v1782 = vmul.f32 %v1752, %v1779
      %v1783 = vadd.f32 %v1765, %v1780
      %v1784 = vadd.f32 %v1766, %v1781
      %v1785 = vadd.f32 %v1767, %v1782
      %v1786 = vmul.f32 %v1783, %v1732
      %v1787 = vmul.f32 %v1784, %v1733
      %v1788 = vmul.f32 %v1785, %v1734
      %v1789 = vadd.f32 %v1684, %v1786
      %v1790 = vadd.f32 %v1685, %v1787
      %v1791 = vadd.f32 %v1686, %v1788
      %v1792 = vlaneseq
      %v1793 = vshrl.u32 %v1792, 7
      %v1794 = vsub.s32 5, %v1793
      %v1795 = vrot.slane %v1192, %v1794
      %v1796 = vlaneseq
      %v1797 = vshrl.u32 %v1796, 7
      %v1798 = vsub.s32 5, %v1797
      %v1799 = vrot.slane %v1193, %v1798
      %v1800 = vlaneseq
      %v1801 = vshrl.u32 %v1800, 7
      %v1802 = vsub.s32 5, %v1801
      %v1803 = vrot.slane %v1194, %v1802
      %v1804 = vmul.f32 %v1741, %v1795
      %v1805 = vmul.f32 %v1742, %v1799
      %v1806 = vmul.f32 %v1743, %v1803
      %v1807 = vlaneseq
      %v1808 = vshrl.u32 %v1807, 7
      %v1809 = vsub.s32 5, %v1808
      %v1810 = vrot.slane %v1198, %v1809
      %v1811 = vlaneseq
      %v1812 = vshrl.u32 %v1811, 7
      %v1813 = vsub.s32 5, %v1812
      %v1814 = vrot.slane %v1199, %v1813
      %v1815 = vlaneseq
      %v1816 = vshrl.u32 %v1815, 7
      %v1817 = vsub.s32 5, %v1816
      %v1818 = vrot.slane %v1200, %v1817
      %v1819 = vmul.f32 %v1750, %v1810
      %v1820 = vmul.f32 %v1751, %v1814
      %v1821 = vmul.f32 %v1752, %v1818
      %v1822 = vadd.f32 %v1804, %v1819
      %v1823 = vadd.f32 %v1805, %v1820
      %v1824 = vadd.f32 %v1806, %v1821
      %v1825 = vmul.f32 %v1822, %v1732
      %v1826 = vmul.f32 %v1823, %v1733
      %v1827 = vmul.f32 %v1824, %v1734
      %v1828 = vadd.f32 %v1723, %v1825
      %v1829 = vadd.f32 %v1724, %v1826
      %v1830 = vadd.f32 %v1725, %v1827
      %v1831 = vmul.f32 %v1789, 0.16666667
      %v1832 = vmul.f32 %v1790, 0.16666667
      %v1833 = vmul.f32 %v1791, 0.16666667
      %1834 = vst [vmem:[%s623] sm:$0xff] %v1831
      %1835 = vst [vmem:[%s623 + $0x8] sm:$0xff] %v1832
      %1836 = vst [vmem:[%s623 + $0x10] sm:$0xff] %v1833
      %v1837 = vmul.f32 %v1828, 0.16666667
      %v1838 = vmul.f32 %v1829, 0.16666667
      %v1839 = vmul.f32 %v1830, 0.16666667
      %s1840 = scalar_lea.vmem %s623, 24
      %1841 = vst [vmem:[%s1840] sm:$0xff] %v1837
      %1842 = vst [vmem:[%s1840 + $0x8] sm:$0xff] %v1838
      %1843 = vst [vmem:[%s1840 + $0x10] sm:$0xff] %v1839
      %p1844 = scmp.lt.s32.totalorder %s27, 1
      %s1845 = scalar_select %p1844, %s27, 1
      %p1846 = scmp.lt.s32.totalorder %s28, 0
      %s1847 = scalar_select %p1846, %s28, 0
      %s1848 = smul.addr %s1847, 3
      %s1849 = smul.addr %s1845, 3
      %s1850 = sadd.s32 %s1848, %s1849
      %s1851 = smul.addr %s1850, 8
      %s1852 = scalar_lea.vmem %s8, %s1851
      %p1853 = scmp.lt.s32.totalorder %s27, 1
      %s1854 = scalar_select %p1853, %s27, 1
      %p1855 = scmp.lt.s32.totalorder %s28, 0
      %s1856 = scalar_select %p1855, %s28, 0
      %s1857 = smul.addr %s1856, 3
      %s1858 = smul.addr %s1854, 3
      %s1859 = sadd.s32 %s1857, %s1858
      %s1860 = smul.addr %s1859, 8
      %s1861 = scalar_lea.vmem %s9, %s1860
      %p1862 = scmp.lt.s32.totalorder %s27, 1
      %s1863 = scalar_select %p1862, %s27, 1
      %p1864 = scmp.lt.s32.totalorder %s28, 0
      %s1865 = scalar_select %p1864, %s28, 0
      %s1866 = smul.addr %s1865, 3
      %s1867 = smul.addr %s1863, 9
      %s1868 = sadd.s32 %s1866, %s1867
      %s1869 = smul.addr %s1868, 8
      %s1870 = scalar_lea.vmem %s10, %s1869
      %p1871 = scmp.lt.s32.totalorder %s27, 1
      %s1872 = scalar_select %p1871, %s27, 1
      %p1873 = scmp.lt.s32.totalorder %s28, 0
      %s1874 = scalar_select %p1873, %s28, 0
      %s1875 = smul.addr %s1874, 3
      %s1876 = smul.addr %s1872, 6
      %s1877 = sadd.s32 %s1875, %s1876
      %s1878 = smul.addr %s1877, 8
      %s1879 = scalar_lea.vmem %s11, %s1878
      // Predicated region
      $region53: #{feature_extractor_forward.5} parent=51 // pred_check
        %p1880 = pneg %p265
      $region54: #{feature_extractor_forward.5} parent=51 // pred_check_branch
        %1882 = sbr.rel (%p1880) target = $region56
      $region55: #{feature_extractor_forward.5} parent=51 // pred_region
        _
      $region56: #{feature_extractor_forward.5} parent=51 // pred_fallthru
        _
      // Predicated region
      $region57: #{feature_extractor_forward.5} parent=51 // pred_check
        %p1883 = pneg %p293
      $region58: #{feature_extractor_forward.5} parent=51 // pred_check_branch
        %1885 = sbr.rel (%p1883) target = $region60
      $region59: #{feature_extractor_forward.5} parent=51 // pred_region
        _
      $region60: #{feature_extractor_forward.5} parent=51 // pred_fallthru
        _
      // Predicated region
      $region61: #{feature_extractor_forward.5} parent=51 // pred_check
        %p1886 = pneg %p321
      $region62: #{feature_extractor_forward.5} parent=51 // pred_check_branch
        %1888 = sbr.rel (%p1886) target = $region64
      $region63: #{feature_extractor_forward.5} parent=51 // pred_region
        _
      $region64: #{feature_extractor_forward.5} parent=51 // pred_fallthru
        _
      // Predicated region
      $region65: #{feature_extractor_forward.5} parent=51 // pred_check
        %p1889 = pneg %p349
      $region66: #{feature_extractor_forward.5} parent=51 // pred_check_branch
        %1891 = sbr.rel (%p1889) target = $region68
      $region67: #{feature_extractor_forward.5} parent=51 // pred_region
        _
      $region68: #{feature_extractor_forward.5} parent=51 // pred_fallthru
        _
    $region52: #{feature_extractor_forward.5} parent=5 // pred_fallthru
      _
    %p1892 = scmp.le.s32.totalorder 2, %s18
    // Predicated region
    $region69: #{feature_extractor_forward.5} parent=5 // pred_check
      %p1893 = pneg %p1892
    $region70: #{feature_extractor_forward.5} parent=5 // pred_check_branch
      %1895 = sbr.rel (%p1893) target = $region72
    $region71: #{feature_extractor_forward.5} parent=5 // pred_region
      %s1896 = ssub.s32 %s18, 2
      // Predicated region
      $region73: #{feature_extractor_forward.5} parent=71 // pred_check
        %p1897 = pneg %p271
      $region74: #{feature_extractor_forward.5} parent=71 // pred_check_branch
        %1899 = sbr.rel (%p1897) target = $region76
      $region75: #{feature_extractor_forward.5} parent=71 // pred_region
        %p1900 = scmp.lt.s32.totalorder %s29, 1
        %s1901 = scalar_select %p1900, %s29, 1
        %p1902 = scmp.lt.s32.totalorder %s30, 0
        %s1903 = scalar_select %p1902, %s30, 0
        %s1904 = smul.addr %s1903, 3
        %s1905 = smul.addr %s1901, 3
        %s1906 = sadd.s32 %s1904, %s1905
        %s1907 = smul.addr %s1906, 8
        %s1908 = scalar_lea.vmem %s8, %s1907
      $region76: #{feature_extractor_forward.5} parent=71 // pred_fallthru
        _
      // Predicated region
      $region77: #{feature_extractor_forward.5} parent=71 // pred_check
        %p1909 = pneg %p299
      $region78: #{feature_extractor_forward.5} parent=71 // pred_check_branch
        %1911 = sbr.rel (%p1909) target = $region80
      $region79: #{feature_extractor_forward.5} parent=71 // pred_region
        %p1912 = scmp.lt.s32.totalorder %s29, 1
        %s1913 = scalar_select %p1912, %s29, 1
        %p1914 = scmp.lt.s32.totalorder %s30, 0
        %s1915 = scalar_select %p1914, %s30, 0
        %s1916 = smul.addr %s1915, 3
        %s1917 = smul.addr %s1913, 3
        %s1918 = sadd.s32 %s1916, %s1917
        %s1919 = smul.addr %s1918, 8
        %s1920 = scalar_lea.vmem %s9, %s1919
      $region80: #{feature_extractor_forward.5} parent=71 // pred_fallthru
        _
      // Predicated region
      $region81: #{feature_extractor_forward.5} parent=71 // pred_check
        %p1921 = pneg %p327
      $region82: #{feature_extractor_forward.5} parent=71 // pred_check_branch
        %1923 = sbr.rel (%p1921) target = $region84
      $region83: #{feature_extractor_forward.5} parent=71 // pred_region
        %p1924 = scmp.lt.s32.totalorder %s29, 1
        %s1925 = scalar_select %p1924, %s29, 1
        %p1926 = scmp.lt.s32.totalorder %s30, 0
        %s1927 = scalar_select %p1926, %s30, 0
        %s1928 = smul.addr %s1927, 3
        %s1929 = smul.addr %s1925, 9
        %s1930 = sadd.s32 %s1928, %s1929
        %s1931 = smul.addr %s1930, 8
        %s1932 = scalar_lea.vmem %s10, %s1931
      $region84: #{feature_extractor_forward.5} parent=71 // pred_fallthru
        _
      // Predicated region
      $region85: #{feature_extractor_forward.5} parent=71 // pred_check
        %p1933 = pneg %p355
      $region86: #{feature_extractor_forward.5} parent=71 // pred_check_branch
        %1935 = sbr.rel (%p1933) target = $region88
      $region87: #{feature_extractor_forward.5} parent=71 // pred_region
        %p1936 = scmp.lt.s32.totalorder %s29, 1
        %s1937 = scalar_select %p1936, %s29, 1
        %p1938 = scmp.lt.s32.totalorder %s30, 0
        %s1939 = scalar_select %p1938, %s30, 0
        %s1940 = smul.addr %s1939, 3
        %s1941 = smul.addr %s1937, 6
        %s1942 = sadd.s32 %s1940, %s1941
        %s1943 = smul.addr %s1942, 8
        %s1944 = scalar_lea.vmem %s11, %s1943
      $region88: #{feature_extractor_forward.5} parent=71 // pred_fallthru
        _
    $region72: #{feature_extractor_forward.5} parent=5 // pred_fallthru
      _
  $region6: #{feature_extractor_forward.5} parent=0 // loop_footer
    %s22 = sadd.s32 1, %s18
  $region7: #{feature_extractor_forward.5} parent=0 // loop_footer_branch
    %17 = sbr.rel target = $region3
  $region8: #{feature_extractor_forward.5} parent=0 // loop_exit
    _

</llo_original>
